<compile_context>
chip_gen: v6e
topology: v6e:2x2x1
jax: 0.10.0
libtpu: 0.0.40
codegen_flags: <defaults>
</compile_context>

<pallas_src>
import jax
import jax.numpy as jnp
import numpy as np
from jax.experimental import pallas as pl
from jax.experimental.pallas import tpu as pltpu


# ---------------------------------------------------------------------------
# Fused Pallas kernel (one image per grid step, channel-last)
# ---------------------------------------------------------------------------
def _ceblock_kernel(x_ref, wgap_ref, wtaps_ref, vecs_ref, o_ref, pad_ref):
    H, W, C = o_ref.shape
    Wp = W + 2                       # padded row width
    out_rows = H * Wp                # conv output rows (incl. 2 junk cols/row)

    x = x_ref[...]                                       # (H*W, C) f32
    v = vecs_ref[...]                                    # (4, C): s0,b0,b1,b2

    # --- global average pool + BN(activation='none') ------------------------
    gap = jnp.sum(x, axis=0, keepdims=True) * (1.0 / float(H * W))   # (1, C)
    feat = gap * v[0:1, :] + v[1:2, :]

    # --- conv_gap: 1x1 conv (BN scale pre-folded into weights) + bias + ReLU
    feat = jnp.dot(feat, wgap_ref[...], preferred_element_type=jnp.float32)
    feat = jnp.maximum(feat + v[2:3, :], 0.0)            # (1, C)

    # --- broadcast residual, written zero-padded into VMEM scratch ----------
    pad_ref[...] = jnp.zeros_like(pad_ref)
    y = x + feat                                         # (H*W, C)
    for h in range(H):
        pad_ref[pl.ds((h + 1) * Wp + 1, W), :] = y[h * W:(h + 1) * W, :]

    # --- conv_last: 3x3 conv as 9 row-shifted MXU matmuls + bias + ReLU -----
    acc = jnp.zeros((out_rows, C), jnp.float32)
    for kh in range(3):
        for kw in range(3):
            t = kh * 3 + kw
            off = kh * Wp + kw
            acc = acc + jnp.dot(pad_ref[pl.ds(off, out_rows), :],
                                wtaps_ref[t],
                                preferred_element_type=jnp.float32)
    acc = jnp.maximum(acc + v[3:4, :], 0.0)

    # store only the W valid columns of each output row (lane-dense stores)
    for h in range(H):
        o_ref[h, :, :] = acc[h * Wp:h * Wp + W, :]


# ---------------------------------------------------------------------------
# Wrapper: layout / weight preparation glue + pallas_call
# ---------------------------------------------------------------------------
def _bn_fold(bn, eps=1e-5):
    gamma, beta, mean, var = bn
    scale = gamma / jnp.sqrt(var + eps)
    return scale, beta - mean * scale


def ceblock_pallas(x_nchw, params):
    n, c, h, w = x_nchw.shape
    x_flat = jnp.transpose(x_nchw, (0, 2, 3, 1)).reshape(n, h * w, c)

    s0, b0 = _bn_fold(params['bn0'])
    s1, b1 = _bn_fold(params['gap_bn'])
    s2, b2 = _bn_fold(params['last_bn'])

    # 1x1 conv weight: (Cout, Cin, 1, 1) -> (Cin, Cout), BN scale folded in.
    wgap = jnp.transpose(params['gap_w'][:, :, 0, 0], (1, 0)) * s1[None, :]
    # 3x3 conv weight: (Cout, Cin, 3, 3) -> (9, Cin, Cout), BN scale folded in.
    wtaps = (jnp.transpose(params['last_w'], (2, 3, 1, 0)).reshape(9, c, c)
             * s2[None, None, :])
    vecs = jnp.stack([s0, b0, b1, b2], axis=0)           # (4, C)

    pad_rows = (h + 2) * (w + 2) + 2                     # taps read up to +2

    out = pl.pallas_call(
        _ceblock_kernel,
        out_shape=jax.ShapeDtypeStruct((n, h, w, c), jnp.float32),
        grid=(n,),
        in_specs=[
            pl.BlockSpec((None, h * w, c), lambda i: (i, 0, 0)),   # x (image)
            pl.BlockSpec((c, c), lambda i: (0, 0)),                # wgap
            pl.BlockSpec((9, c, c), lambda i: (0, 0, 0)),          # wtaps
            pl.BlockSpec((4, c), lambda i: (0, 0)),                # bn vecs
        ],
        out_specs=pl.BlockSpec((None, h, w, c), lambda i: (i, 0, 0, 0)),
        scratch_shapes=[pltpu.VMEM((pad_rows, c), jnp.float32)],
        compiler_params=pltpu.CompilerParams(
            dimension_semantics=("parallel",)),
    )(x_flat, wgap, wtaps, vecs)

    return jnp.transpose(out, (0, 3, 1, 2))              # NHWC -> NCHW


# ---------------------------------------------------------------------------
# Pure-JAX reference (lax convs) and synthetic parameters
# ---------------------------------------------------------------------------
def ceblock_ref(x, params):
    def bn(y, fold):
        s, b = fold
        return y * s[None, :, None, None] + b[None, :, None, None]

    s0 = _bn_fold(params['bn0'])
    s1 = _bn_fold(params['gap_bn'])
    s2 = _bn_fold(params['last_bn'])

    feat = jnp.mean(x, axis=(2, 3), keepdims=True)
    feat = bn(feat, s0)
    feat = jax.lax.conv_general_dilated(
        feat, params['gap_w'], (1, 1), ((0, 0), (0, 0)),
        dimension_numbers=('NCHW', 'OIHW', 'NCHW'),
        precision=jax.lax.Precision.HIGHEST)
    feat = jnp.maximum(bn(feat, s1), 0.0)
    feat = feat + x
    out = jax.lax.conv_general_dilated(
        feat, params['last_w'], (1, 1), ((1, 1), (1, 1)),
        dimension_numbers=('NCHW', 'OIHW', 'NCHW'),
        precision=jax.lax.Precision.HIGHEST)
    return jnp.maximum(bn(out, s2), 0.0)


def _kaiming(key, shape):
    fan_in = shape[1] * shape[2] * shape[3]
    return jax.random.normal(key, shape, jnp.float32) * jnp.sqrt(1.0 / fan_in)


def _bn_raw(key, c):
    k1, k2, k3, k4 = jax.random.split(key, 4)
    gamma = 0.5 + jax.random.uniform(k1, (c,), jnp.float32)
    beta = 0.1 * jax.random.normal(k2, (c,), jnp.float32)
    mean = 0.1 * jax.random.normal(k3, (c,), jnp.float32)
    var = 0.5 + jax.random.uniform(k4, (c,), jnp.float32)
    return gamma, beta, mean, var


# ---------------------------------------------------------------------------
if __name__ == "__main__":
    C = 128                         # CEBlock is hard-wired to 128 channels
    N, H, W = 2, 16, 16

    key = jax.random.PRNGKey(0)
    kx, kg, kl, kb0, kb1, kb2 = jax.random.split(key, 6)

    params = dict(
        bn0=_bn_raw(kb0, C),
        gap_w=_kaiming(kg, (C, C, 1, 1)),
        gap_bn=_bn_raw(kb1, C),
        last_w=_kaiming(kl, (C, C, 3, 3)),
        last_bn=_bn_raw(kb2, C),
    )
    x = jax.random.normal(kx, (N, C, H, W), jnp.float32)

    out = jax.block_until_ready(jax.jit(ceblock_pallas)(x, params))
    ref = jax.block_until_ready(ceblock_ref(x, params))

    assert out.shape == (N, C, H, W), out.shape
    err = np.max(np.abs(np.asarray(out) - np.asarray(ref)))
    assert np.allclose(np.asarray(out), np.asarray(ref), atol=2e-2, rtol=2e-2), err

    print("KERNEL_OK")
</pallas_src>

<mosaic_0001>
module attributes {stable_mosaic.version = 11 : i64} {
  func.func @_ceblock_kernel(%arg0: i32, %arg1: memref<1x256x128xf32, #tpu.memory_space<vmem>>, %arg2: memref<128x128xf32, #tpu.memory_space<vmem>>, %arg3: memref<9x128x128xf32, #tpu.memory_space<vmem>>, %arg4: memref<4x128xf32, #tpu.memory_space<vmem>>, %arg5: memref<1x16x16x128xf32, #tpu.memory_space<vmem>>, %arg6: memref<326x128xf32, #tpu.memory_space<vmem>>) attributes {dimension_semantics = [#tpu.dimension_semantics<parallel>], iteration_bounds = array<i64: 2>, scalar_prefetch = 0 : i64, scratch_operands = 1 : i64, tpu.core_type = #tpu.core_type<tc>, window_params = [{transform_indices = @transform_0, window_bounds = array<i64: 1, 256, 128>}, {pipeline_mode = #tpu.pipeline_mode<synchronous>, transform_indices = @transform_1, window_bounds = array<i64: 128, 128>}, {pipeline_mode = #tpu.pipeline_mode<synchronous>, transform_indices = @transform_2, window_bounds = array<i64: 9, 128, 128>}, {pipeline_mode = #tpu.pipeline_mode<synchronous>, transform_indices = @transform_3, window_bounds = array<i64: 4, 128>}, {transform_indices = @transform_4, window_bounds = array<i64: 1, 16, 16, 128>}]} {
    %c0 = arith.constant 0 : index
    %c0_0 = arith.constant 0 : index
    %c0_1 = arith.constant 0 : index
    %0 = vector.load %arg1[%c0, %c0_0, %c0_1] : memref<1x256x128xf32, #tpu.memory_space<vmem>>, vector<1x256x128xf32>
    %1 = vector.shape_cast %0 : vector<1x256x128xf32> to vector<256x128xf32>
    %c0_2 = arith.constant 0 : index
    %c0_3 = arith.constant 0 : index
    %2 = vector.load %arg4[%c0_2, %c0_3] : memref<4x128xf32, #tpu.memory_space<vmem>>, vector<4x128xf32>
    %cst = arith.constant dense<0.000000e+00> : vector<128xf32>
    %3 = vector.multi_reduction <add>, %1, %cst [0] : vector<256x128xf32> to vector<128xf32>
    %4 = vector.shape_cast %3 : vector<128xf32> to vector<1x128xf32>
    %cst_4 = arith.constant 3.906250e-03 : f32
    %5 = vector.broadcast %cst_4 : f32 to vector<1x128xf32>
    %6 = arith.mulf %4, %5 : vector<1x128xf32>
    %7 = vector.extract_strided_slice %2 {offsets = [0, 0], sizes = [1, 128], strides = [1, 1]} : vector<4x128xf32> to vector<1x128xf32>
    %8 = arith.mulf %6, %7 : vector<1x128xf32>
    %9 = vector.extract_strided_slice %2 {offsets = [1, 0], sizes = [1, 128], strides = [1, 1]} : vector<4x128xf32> to vector<1x128xf32>
    %10 = arith.addf %8, %9 : vector<1x128xf32>
    %c0_5 = arith.constant 0 : index
    %c0_6 = arith.constant 0 : index
    %11 = vector.load %arg2[%c0_5, %c0_6] : memref<128x128xf32, #tpu.memory_space<vmem>>, vector<128x128xf32>
    %cst_7 = arith.constant dense<0.000000e+00> : vector<1x128xf32>
    %12 = tpu.matmul %10, %11, %cst_7 {dimension_numbers = #tpu.dot_dimension_numbers<[1], [0], [0], [1], [0, 0, 1, 1], [], []>} : vector<1x128xf32>, vector<128x128xf32>, vector<1x128xf32> -> vector<1x128xf32>
    %13 = vector.extract_strided_slice %2 {offsets = [2, 0], sizes = [1, 128], strides = [1, 1]} : vector<4x128xf32> to vector<1x128xf32>
    %14 = arith.addf %12, %13 : vector<1x128xf32>
    %cst_8 = arith.constant 0.000000e+00 : f32
    %15 = vector.broadcast %cst_8 : f32 to vector<1x128xf32>
    %16 = arith.maximumf %14, %15 : vector<1x128xf32>
    %cst_9 = arith.constant 0.000000e+00 : f32
    %17 = vector.broadcast %cst_9 : f32 to vector<326x128xf32>
    %c0_10 = arith.constant 0 : index
    %c0_11 = arith.constant 0 : index
    %18 = vector.load %arg6[%c0_10, %c0_11] : memref<326x128xf32, #tpu.memory_space<vmem>>, vector<326x128xf32>
    tpu.vector_store %arg6[%c0_10, %c0_11], %17 {strides = array<i32>} : memref<326x128xf32, #tpu.memory_space<vmem>>, vector<326x128xf32>,
    %19 = vector.broadcast %16 : vector<1x128xf32> to vector<256x128xf32>
    %20 = arith.addf %1, %19 : vector<256x128xf32>
    %21 = vector.extract_strided_slice %20 {offsets = [0, 0], sizes = [16, 128], strides = [1, 1]} : vector<256x128xf32> to vector<16x128xf32>
    %c19 = arith.constant 19 : index
    %c0_12 = arith.constant 0 : index
    %22 = vector.load %arg6[%c19, %c0_12] : memref<326x128xf32, #tpu.memory_space<vmem>>, vector<16x128xf32>
    tpu.vector_store %arg6[%c19, %c0_12], %21 {strides = array<i32>} : memref<326x128xf32, #tpu.memory_space<vmem>>, vector<16x128xf32>,
    %23 = vector.extract_strided_slice %20 {offsets = [16, 0], sizes = [16, 128], strides = [1, 1]} : vector<256x128xf32> to vector<16x128xf32>
    %c37 = arith.constant 37 : index
    %c0_13 = arith.constant 0 : index
    %24 = vector.load %arg6[%c37, %c0_13] : memref<326x128xf32, #tpu.memory_space<vmem>>, vector<16x128xf32>
    tpu.vector_store %arg6[%c37, %c0_13], %23 {strides = array<i32>} : memref<326x128xf32, #tpu.memory_space<vmem>>, vector<16x128xf32>,
    %25 = vector.extract_strided_slice %20 {offsets = [32, 0], sizes = [16, 128], strides = [1, 1]} : vector<256x128xf32> to vector<16x128xf32>
    %c55 = arith.constant 55 : index
    %c0_14 = arith.constant 0 : index
    %26 = vector.load %arg6[%c55, %c0_14] : memref<326x128xf32, #tpu.memory_space<vmem>>, vector<16x128xf32>
    tpu.vector_store %arg6[%c55, %c0_14], %25 {strides = array<i32>} : memref<326x128xf32, #tpu.memory_space<vmem>>, vector<16x128xf32>,
    %27 = vector.extract_strided_slice %20 {offsets = [48, 0], sizes = [16, 128], strides = [1, 1]} : vector<256x128xf32> to vector<16x128xf32>
    %c73 = arith.constant 73 : index
    %c0_15 = arith.constant 0 : index
    %28 = vector.load %arg6[%c73, %c0_15] : memref<326x128xf32, #tpu.memory_space<vmem>>, vector<16x128xf32>
    tpu.vector_store %arg6[%c73, %c0_15], %27 {strides = array<i32>} : memref<326x128xf32, #tpu.memory_space<vmem>>, vector<16x128xf32>,
    %29 = vector.extract_strided_slice %20 {offsets = [64, 0], sizes = [16, 128], strides = [1, 1]} : vector<256x128xf32> to vector<16x128xf32>
    %c91 = arith.constant 91 : index
    %c0_16 = arith.constant 0 : index
    %30 = vector.load %arg6[%c91, %c0_16] : memref<326x128xf32, #tpu.memory_space<vmem>>, vector<16x128xf32>
    tpu.vector_store %arg6[%c91, %c0_16], %29 {strides = array<i32>} : memref<326x128xf32, #tpu.memory_space<vmem>>, vector<16x128xf32>,
    %31 = vector.extract_strided_slice %20 {offsets = [80, 0], sizes = [16, 128], strides = [1, 1]} : vector<256x128xf32> to vector<16x128xf32>
    %c109 = arith.constant 109 : index
    %c0_17 = arith.constant 0 : index
    %32 = vector.load %arg6[%c109, %c0_17] : memref<326x128xf32, #tpu.memory_space<vmem>>, vector<16x128xf32>
    tpu.vector_store %arg6[%c109, %c0_17], %31 {strides = array<i32>} : memref<326x128xf32, #tpu.memory_space<vmem>>, vector<16x128xf32>,
    %33 = vector.extract_strided_slice %20 {offsets = [96, 0], sizes = [16, 128], strides = [1, 1]} : vector<256x128xf32> to vector<16x128xf32>
    %c127 = arith.constant 127 : index
    %c0_18 = arith.constant 0 : index
    %34 = vector.load %arg6[%c127, %c0_18] : memref<326x128xf32, #tpu.memory_space<vmem>>, vector<16x128xf32>
    tpu.vector_store %arg6[%c127, %c0_18], %33 {strides = array<i32>} : memref<326x128xf32, #tpu.memory_space<vmem>>, vector<16x128xf32>,
    %35 = vector.extract_strided_slice %20 {offsets = [112, 0], sizes = [16, 128], strides = [1, 1]} : vector<256x128xf32> to vector<16x128xf32>
    %c145 = arith.constant 145 : index
    %c0_19 = arith.constant 0 : index
    %36 = vector.load %arg6[%c145, %c0_19] : memref<326x128xf32, #tpu.memory_space<vmem>>, vector<16x128xf32>
    tpu.vector_store %arg6[%c145, %c0_19], %35 {strides = array<i32>} : memref<326x128xf32, #tpu.memory_space<vmem>>, vector<16x128xf32>,
    %37 = vector.extract_strided_slice %20 {offsets = [128, 0], sizes = [16, 128], strides = [1, 1]} : vector<256x128xf32> to vector<16x128xf32>
    %c163 = arith.constant 163 : index
    %c0_20 = arith.constant 0 : index
    %38 = vector.load %arg6[%c163, %c0_20] : memref<326x128xf32, #tpu.memory_space<vmem>>, vector<16x128xf32>
    tpu.vector_store %arg6[%c163, %c0_20], %37 {strides = array<i32>} : memref<326x128xf32, #tpu.memory_space<vmem>>, vector<16x128xf32>,
    %39 = vector.extract_strided_slice %20 {offsets = [144, 0], sizes = [16, 128], strides = [1, 1]} : vector<256x128xf32> to vector<16x128xf32>
    %c181 = arith.constant 181 : index
    %c0_21 = arith.constant 0 : index
    %40 = vector.load %arg6[%c181, %c0_21] : memref<326x128xf32, #tpu.memory_space<vmem>>, vector<16x128xf32>
    tpu.vector_store %arg6[%c181, %c0_21], %39 {strides = array<i32>} : memref<326x128xf32, #tpu.memory_space<vmem>>, vector<16x128xf32>,
    %41 = vector.extract_strided_slice %20 {offsets = [160, 0], sizes = [16, 128], strides = [1, 1]} : vector<256x128xf32> to vector<16x128xf32>
    %c199 = arith.constant 199 : index
    %c0_22 = arith.constant 0 : index
    %42 = vector.load %arg6[%c199, %c0_22] : memref<326x128xf32, #tpu.memory_space<vmem>>, vector<16x128xf32>
    tpu.vector_store %arg6[%c199, %c0_22], %41 {strides = array<i32>} : memref<326x128xf32, #tpu.memory_space<vmem>>, vector<16x128xf32>,
    %43 = vector.extract_strided_slice %20 {offsets = [176, 0], sizes = [16, 128], strides = [1, 1]} : vector<256x128xf32> to vector<16x128xf32>
    %c217 = arith.constant 217 : index
    %c0_23 = arith.constant 0 : index
    %44 = vector.load %arg6[%c217, %c0_23] : memref<326x128xf32, #tpu.memory_space<vmem>>, vector<16x128xf32>
    tpu.vector_store %arg6[%c217, %c0_23], %43 {strides = array<i32>} : memref<326x128xf32, #tpu.memory_space<vmem>>, vector<16x128xf32>,
    %45 = vector.extract_strided_slice %20 {offsets = [192, 0], sizes = [16, 128], strides = [1, 1]} : vector<256x128xf32> to vector<16x128xf32>
    %c235 = arith.constant 235 : index
    %c0_24 = arith.constant 0 : index
    %46 = vector.load %arg6[%c235, %c0_24] : memref<326x128xf32, #tpu.memory_space<vmem>>, vector<16x128xf32>
    tpu.vector_store %arg6[%c235, %c0_24], %45 {strides = array<i32>} : memref<326x128xf32, #tpu.memory_space<vmem>>, vector<16x128xf32>,
    %47 = vector.extract_strided_slice %20 {offsets = [208, 0], sizes = [16, 128], strides = [1, 1]} : vector<256x128xf32> to vector<16x128xf32>
    %c253 = arith.constant 253 : index
    %c0_25 = arith.constant 0 : index
    %48 = vector.load %arg6[%c253, %c0_25] : memref<326x128xf32, #tpu.memory_space<vmem>>, vector<16x128xf32>
    tpu.vector_store %arg6[%c253, %c0_25], %47 {strides = array<i32>} : memref<326x128xf32, #tpu.memory_space<vmem>>, vector<16x128xf32>,
    %49 = vector.extract_strided_slice %20 {offsets = [224, 0], sizes = [16, 128], strides = [1, 1]} : vector<256x128xf32> to vector<16x128xf32>
    %c271 = arith.constant 271 : index
    %c0_26 = arith.constant 0 : index
    %50 = vector.load %arg6[%c271, %c0_26] : memref<326x128xf32, #tpu.memory_space<vmem>>, vector<16x128xf32>
    tpu.vector_store %arg6[%c271, %c0_26], %49 {strides = array<i32>} : memref<326x128xf32, #tpu.memory_space<vmem>>, vector<16x128xf32>,
    %51 = vector.extract_strided_slice %20 {offsets = [240, 0], sizes = [16, 128], strides = [1, 1]} : vector<256x128xf32> to vector<16x128xf32>
    %c289 = arith.constant 289 : index
    %c0_27 = arith.constant 0 : index
    %52 = vector.load %arg6[%c289, %c0_27] : memref<326x128xf32, #tpu.memory_space<vmem>>, vector<16x128xf32>
    tpu.vector_store %arg6[%c289, %c0_27], %51 {strides = array<i32>} : memref<326x128xf32, #tpu.memory_space<vmem>>, vector<16x128xf32>,
    %cst_28 = arith.constant 0.000000e+00 : f32
    %53 = vector.broadcast %cst_28 : f32 to vector<288x128xf32>
    %c0_29 = arith.constant 0 : index
    %c0_30 = arith.constant 0 : index
    %54 = vector.load %arg6[%c0_29, %c0_30] : memref<326x128xf32, #tpu.memory_space<vmem>>, vector<288x128xf32>
    %c0_31 = arith.constant 0 : index
    %c0_32 = arith.constant 0 : index
    %c0_33 = arith.constant 0 : index
    %55 = vector.load %arg3[%c0_31, %c0_32, %c0_33] : memref<9x128x128xf32, #tpu.memory_space<vmem>>, vector<1x128x128xf32>
    %56 = vector.shape_cast %55 : vector<1x128x128xf32> to vector<128x128xf32>
    %cst_34 = arith.constant dense<0.000000e+00> : vector<288x128xf32>
    %57 = tpu.matmul %54, %56, %cst_34 {dimension_numbers = #tpu.dot_dimension_numbers<[1], [0], [0], [1], [0, 0, 1, 1], [], []>} : vector<288x128xf32>, vector<128x128xf32>, vector<288x128xf32> -> vector<288x128xf32>
    %58 = arith.addf %53, %57 : vector<288x128xf32>
    %c1 = arith.constant 1 : index
    %c0_35 = arith.constant 0 : index
    %59 = vector.load %arg6[%c1, %c0_35] : memref<326x128xf32, #tpu.memory_space<vmem>>, vector<288x128xf32>
    %c1_36 = arith.constant 1 : index
    %c0_37 = arith.constant 0 : index
    %c0_38 = arith.constant 0 : index
    %60 = vector.load %arg3[%c1_36, %c0_37, %c0_38] : memref<9x128x128xf32, #tpu.memory_space<vmem>>, vector<1x128x128xf32>
    %61 = vector.shape_cast %60 : vector<1x128x128xf32> to vector<128x128xf32>
    %cst_39 = arith.constant dense<0.000000e+00> : vector<288x128xf32>
    %62 = tpu.matmul %59, %61, %cst_39 {dimension_numbers = #tpu.dot_dimension_numbers<[1], [0], [0], [1], [0, 0, 1, 1], [], []>} : vector<288x128xf32>, vector<128x128xf32>, vector<288x128xf32> -> vector<288x128xf32>
    %63 = arith.addf %58, %62 : vector<288x128xf32>
    %c2 = arith.constant 2 : index
    %c0_40 = arith.constant 0 : index
    %64 = vector.load %arg6[%c2, %c0_40] : memref<326x128xf32, #tpu.memory_space<vmem>>, vector<288x128xf32>
    %c2_41 = arith.constant 2 : index
    %c0_42 = arith.constant 0 : index
    %c0_43 = arith.constant 0 : index
    %65 = vector.load %arg3[%c2_41, %c0_42, %c0_43] : memref<9x128x128xf32, #tpu.memory_space<vmem>>, vector<1x128x128xf32>
    %66 = vector.shape_cast %65 : vector<1x128x128xf32> to vector<128x128xf32>
    %cst_44 = arith.constant dense<0.000000e+00> : vector<288x128xf32>
    %67 = tpu.matmul %64, %66, %cst_44 {dimension_numbers = #tpu.dot_dimension_numbers<[1], [0], [0], [1], [0, 0, 1, 1], [], []>} : vector<288x128xf32>, vector<128x128xf32>, vector<288x128xf32> -> vector<288x128xf32>
    %68 = arith.addf %63, %67 : vector<288x128xf32>
    %c18 = arith.constant 18 : index
    %c0_45 = arith.constant 0 : index
    %69 = vector.load %arg6[%c18, %c0_45] : memref<326x128xf32, #tpu.memory_space<vmem>>, vector<288x128xf32>
    %c3 = arith.constant 3 : index
    %c0_46 = arith.constant 0 : index
    %c0_47 = arith.constant 0 : index
    %70 = vector.load %arg3[%c3, %c0_46, %c0_47] : memref<9x128x128xf32, #tpu.memory_space<vmem>>, vector<1x128x128xf32>
    %71 = vector.shape_cast %70 : vector<1x128x128xf32> to vector<128x128xf32>
    %cst_48 = arith.constant dense<0.000000e+00> : vector<288x128xf32>
    %72 = tpu.matmul %69, %71, %cst_48 {dimension_numbers = #tpu.dot_dimension_numbers<[1], [0], [0], [1], [0, 0, 1, 1], [], []>} : vector<288x128xf32>, vector<128x128xf32>, vector<288x128xf32> -> vector<288x128xf32>
    %73 = arith.addf %68, %72 : vector<288x128xf32>
    %c19_49 = arith.constant 19 : index
    %c0_50 = arith.constant 0 : index
    %74 = vector.load %arg6[%c19_49, %c0_50] : memref<326x128xf32, #tpu.memory_space<vmem>>, vector<288x128xf32>
    %c4 = arith.constant 4 : index
    %c0_51 = arith.constant 0 : index
    %c0_52 = arith.constant 0 : index
    %75 = vector.load %arg3[%c4, %c0_51, %c0_52] : memref<9x128x128xf32, #tpu.memory_space<vmem>>, vector<1x128x128xf32>
    %76 = vector.shape_cast %75 : vector<1x128x128xf32> to vector<128x128xf32>
    %cst_53 = arith.constant dense<0.000000e+00> : vector<288x128xf32>
    %77 = tpu.matmul %74, %76, %cst_53 {dimension_numbers = #tpu.dot_dimension_numbers<[1], [0], [0], [1], [0, 0, 1, 1], [], []>} : vector<288x128xf32>, vector<128x128xf32>, vector<288x128xf32> -> vector<288x128xf32>
    %78 = arith.addf %73, %77 : vector<288x128xf32>
    %c20 = arith.constant 20 : index
    %c0_54 = arith.constant 0 : index
    %79 = vector.load %arg6[%c20, %c0_54] : memref<326x128xf32, #tpu.memory_space<vmem>>, vector<288x128xf32>
    %c5 = arith.constant 5 : index
    %c0_55 = arith.constant 0 : index
    %c0_56 = arith.constant 0 : index
    %80 = vector.load %arg3[%c5, %c0_55, %c0_56] : memref<9x128x128xf32, #tpu.memory_space<vmem>>, vector<1x128x128xf32>
    %81 = vector.shape_cast %80 : vector<1x128x128xf32> to vector<128x128xf32>
    %cst_57 = arith.constant dense<0.000000e+00> : vector<288x128xf32>
    %82 = tpu.matmul %79, %81, %cst_57 {dimension_numbers = #tpu.dot_dimension_numbers<[1], [0], [0], [1], [0, 0, 1, 1], [], []>} : vector<288x128xf32>, vector<128x128xf32>, vector<288x128xf32> -> vector<288x128xf32>
    %83 = arith.addf %78, %82 : vector<288x128xf32>
    %c36 = arith.constant 36 : index
    %c0_58 = arith.constant 0 : index
    %84 = vector.load %arg6[%c36, %c0_58] : memref<326x128xf32, #tpu.memory_space<vmem>>, vector<288x128xf32>
    %c6 = arith.constant 6 : index
    %c0_59 = arith.constant 0 : index
    %c0_60 = arith.constant 0 : index
    %85 = vector.load %arg3[%c6, %c0_59, %c0_60] : memref<9x128x128xf32, #tpu.memory_space<vmem>>, vector<1x128x128xf32>
    %86 = vector.shape_cast %85 : vector<1x128x128xf32> to vector<128x128xf32>
    %cst_61 = arith.constant dense<0.000000e+00> : vector<288x128xf32>
    %87 = tpu.matmul %84, %86, %cst_61 {dimension_numbers = #tpu.dot_dimension_numbers<[1], [0], [0], [1], [0, 0, 1, 1], [], []>} : vector<288x128xf32>, vector<128x128xf32>, vector<288x128xf32> -> vector<288x128xf32>
    %88 = arith.addf %83, %87 : vector<288x128xf32>
    %c37_62 = arith.constant 37 : index
    %c0_63 = arith.constant 0 : index
    %89 = vector.load %arg6[%c37_62, %c0_63] : memref<326x128xf32, #tpu.memory_space<vmem>>, vector<288x128xf32>
    %c7 = arith.constant 7 : index
    %c0_64 = arith.constant 0 : index
    %c0_65 = arith.constant 0 : index
    %90 = vector.load %arg3[%c7, %c0_64, %c0_65] : memref<9x128x128xf32, #tpu.memory_space<vmem>>, vector<1x128x128xf32>
    %91 = vector.shape_cast %90 : vector<1x128x128xf32> to vector<128x128xf32>
    %cst_66 = arith.constant dense<0.000000e+00> : vector<288x128xf32>
    %92 = tpu.matmul %89, %91, %cst_66 {dimension_numbers = #tpu.dot_dimension_numbers<[1], [0], [0], [1], [0, 0, 1, 1], [], []>} : vector<288x128xf32>, vector<128x128xf32>, vector<288x128xf32> -> vector<288x128xf32>
    %93 = arith.addf %88, %92 : vector<288x128xf32>
    %c38 = arith.constant 38 : index
    %c0_67 = arith.constant 0 : index
    %94 = vector.load %arg6[%c38, %c0_67] : memref<326x128xf32, #tpu.memory_space<vmem>>, vector<288x128xf32>
    %c8 = arith.constant 8 : index
    %c0_68 = arith.constant 0 : index
    %c0_69 = arith.constant 0 : index
    %95 = vector.load %arg3[%c8, %c0_68, %c0_69] : memref<9x128x128xf32, #tpu.memory_space<vmem>>, vector<1x128x128xf32>
    %96 = vector.shape_cast %95 : vector<1x128x128xf32> to vector<128x128xf32>
    %cst_70 = arith.constant dense<0.000000e+00> : vector<288x128xf32>
    %97 = tpu.matmul %94, %96, %cst_70 {dimension_numbers = #tpu.dot_dimension_numbers<[1], [0], [0], [1], [0, 0, 1, 1], [], []>} : vector<288x128xf32>, vector<128x128xf32>, vector<288x128xf32> -> vector<288x128xf32>
    %98 = arith.addf %93, %97 : vector<288x128xf32>
    %99 = vector.extract_strided_slice %2 {offsets = [3, 0], sizes = [1, 128], strides = [1, 1]} : vector<4x128xf32> to vector<1x128xf32>
    %100 = vector.broadcast %99 : vector<1x128xf32> to vector<288x128xf32>
    %101 = arith.addf %98, %100 : vector<288x128xf32>
    %cst_71 = arith.constant 0.000000e+00 : f32
    %102 = vector.broadcast %cst_71 : f32 to vector<288x128xf32>
    %103 = arith.maximumf %101, %102 : vector<288x128xf32>
    %104 = vector.extract_strided_slice %103 {offsets = [0, 0], sizes = [16, 128], strides = [1, 1]} : vector<288x128xf32> to vector<16x128xf32>
    %c0_72 = arith.constant 0 : index
    %c0_73 = arith.constant 0 : index
    %c0_74 = arith.constant 0 : index
    %c0_75 = arith.constant 0 : index
    %105 = vector.load %arg5[%c0_72, %c0_73, %c0_74, %c0_75] : memref<1x16x16x128xf32, #tpu.memory_space<vmem>>, vector<1x1x16x128xf32>
    %106 = vector.shape_cast %105 : vector<1x1x16x128xf32> to vector<16x128xf32>
    %107 = vector.shape_cast %104 : vector<16x128xf32> to vector<1x1x16x128xf32>
    tpu.vector_store %arg5[%c0_72, %c0_73, %c0_74, %c0_75], %107 {strides = array<i32>} : memref<1x16x16x128xf32, #tpu.memory_space<vmem>>, vector<1x1x16x128xf32>,
    %108 = vector.extract_strided_slice %103 {offsets = [18, 0], sizes = [16, 128], strides = [1, 1]} : vector<288x128xf32> to vector<16x128xf32>
    %c0_76 = arith.constant 0 : index
    %c1_77 = arith.constant 1 : index
    %c0_78 = arith.constant 0 : index
    %c0_79 = arith.constant 0 : index
    %109 = vector.load %arg5[%c0_76, %c1_77, %c0_78, %c0_79] : memref<1x16x16x128xf32, #tpu.memory_space<vmem>>, vector<1x1x16x128xf32>
    %110 = vector.shape_cast %109 : vector<1x1x16x128xf32> to vector<16x128xf32>
    %111 = vector.shape_cast %108 : vector<16x128xf32> to vector<1x1x16x128xf32>
    tpu.vector_store %arg5[%c0_76, %c1_77, %c0_78, %c0_79], %111 {strides = array<i32>} : memref<1x16x16x128xf32, #tpu.memory_space<vmem>>, vector<1x1x16x128xf32>,
    %112 = vector.extract_strided_slice %103 {offsets = [36, 0], sizes = [16, 128], strides = [1, 1]} : vector<288x128xf32> to vector<16x128xf32>
    %c0_80 = arith.constant 0 : index
    %c2_81 = arith.constant 2 : index
    %c0_82 = arith.constant 0 : index
    %c0_83 = arith.constant 0 : index
    %113 = vector.load %arg5[%c0_80, %c2_81, %c0_82, %c0_83] : memref<1x16x16x128xf32, #tpu.memory_space<vmem>>, vector<1x1x16x128xf32>
    %114 = vector.shape_cast %113 : vector<1x1x16x128xf32> to vector<16x128xf32>
    %115 = vector.shape_cast %112 : vector<16x128xf32> to vector<1x1x16x128xf32>
    tpu.vector_store %arg5[%c0_80, %c2_81, %c0_82, %c0_83], %115 {strides = array<i32>} : memref<1x16x16x128xf32, #tpu.memory_space<vmem>>, vector<1x1x16x128xf32>,
    %116 = vector.extract_strided_slice %103 {offsets = [54, 0], sizes = [16, 128], strides = [1, 1]} : vector<288x128xf32> to vector<16x128xf32>
    %c0_84 = arith.constant 0 : index
    %c3_85 = arith.constant 3 : index
    %c0_86 = arith.constant 0 : index
    %c0_87 = arith.constant 0 : index
    %117 = vector.load %arg5[%c0_84, %c3_85, %c0_86, %c0_87] : memref<1x16x16x128xf32, #tpu.memory_space<vmem>>, vector<1x1x16x128xf32>
    %118 = vector.shape_cast %117 : vector<1x1x16x128xf32> to vector<16x128xf32>
    %119 = vector.shape_cast %116 : vector<16x128xf32> to vector<1x1x16x128xf32>
    tpu.vector_store %arg5[%c0_84, %c3_85, %c0_86, %c0_87], %119 {strides = array<i32>} : memref<1x16x16x128xf32, #tpu.memory_space<vmem>>, vector<1x1x16x128xf32>,
    %120 = vector.extract_strided_slice %103 {offsets = [72, 0], sizes = [16, 128], strides = [1, 1]} : vector<288x128xf32> to vector<16x128xf32>
    %c0_88 = arith.constant 0 : index
    %c4_89 = arith.constant 4 : index
    %c0_90 = arith.constant 0 : index
    %c0_91 = arith.constant 0 : index
    %121 = vector.load %arg5[%c0_88, %c4_89, %c0_90, %c0_91] : memref<1x16x16x128xf32, #tpu.memory_space<vmem>>, vector<1x1x16x128xf32>
    %122 = vector.shape_cast %121 : vector<1x1x16x128xf32> to vector<16x128xf32>
    %123 = vector.shape_cast %120 : vector<16x128xf32> to vector<1x1x16x128xf32>
    tpu.vector_store %arg5[%c0_88, %c4_89, %c0_90, %c0_91], %123 {strides = array<i32>} : memref<1x16x16x128xf32, #tpu.memory_space<vmem>>, vector<1x1x16x128xf32>,
    %124 = vector.extract_strided_slice %103 {offsets = [90, 0], sizes = [16, 128], strides = [1, 1]} : vector<288x128xf32> to vector<16x128xf32>
    %c0_92 = arith.constant 0 : index
    %c5_93 = arith.constant 5 : index
    %c0_94 = arith.constant 0 : index
    %c0_95 = arith.constant 0 : index
    %125 = vector.load %arg5[%c0_92, %c5_93, %c0_94, %c0_95] : memref<1x16x16x128xf32, #tpu.memory_space<vmem>>, vector<1x1x16x128xf32>
    %126 = vector.shape_cast %125 : vector<1x1x16x128xf32> to vector<16x128xf32>
    %127 = vector.shape_cast %124 : vector<16x128xf32> to vector<1x1x16x128xf32>
    tpu.vector_store %arg5[%c0_92, %c5_93, %c0_94, %c0_95], %127 {strides = array<i32>} : memref<1x16x16x128xf32, #tpu.memory_space<vmem>>, vector<1x1x16x128xf32>,
    %128 = vector.extract_strided_slice %103 {offsets = [108, 0], sizes = [16, 128], strides = [1, 1]} : vector<288x128xf32> to vector<16x128xf32>
    %c0_96 = arith.constant 0 : index
    %c6_97 = arith.constant 6 : index
    %c0_98 = arith.constant 0 : index
    %c0_99 = arith.constant 0 : index
    %129 = vector.load %arg5[%c0_96, %c6_97, %c0_98, %c0_99] : memref<1x16x16x128xf32, #tpu.memory_space<vmem>>, vector<1x1x16x128xf32>
    %130 = vector.shape_cast %129 : vector<1x1x16x128xf32> to vector<16x128xf32>
    %131 = vector.shape_cast %128 : vector<16x128xf32> to vector<1x1x16x128xf32>
    tpu.vector_store %arg5[%c0_96, %c6_97, %c0_98, %c0_99], %131 {strides = array<i32>} : memref<1x16x16x128xf32, #tpu.memory_space<vmem>>, vector<1x1x16x128xf32>,
    %132 = vector.extract_strided_slice %103 {offsets = [126, 0], sizes = [16, 128], strides = [1, 1]} : vector<288x128xf32> to vector<16x128xf32>
    %c0_100 = arith.constant 0 : index
    %c7_101 = arith.constant 7 : index
    %c0_102 = arith.constant 0 : index
    %c0_103 = arith.constant 0 : index
    %133 = vector.load %arg5[%c0_100, %c7_101, %c0_102, %c0_103] : memref<1x16x16x128xf32, #tpu.memory_space<vmem>>, vector<1x1x16x128xf32>
    %134 = vector.shape_cast %133 : vector<1x1x16x128xf32> to vector<16x128xf32>
    %135 = vector.shape_cast %132 : vector<16x128xf32> to vector<1x1x16x128xf32>
    tpu.vector_store %arg5[%c0_100, %c7_101, %c0_102, %c0_103], %135 {strides = array<i32>} : memref<1x16x16x128xf32, #tpu.memory_space<vmem>>, vector<1x1x16x128xf32>,
    %136 = vector.extract_strided_slice %103 {offsets = [144, 0], sizes = [16, 128], strides = [1, 1]} : vector<288x128xf32> to vector<16x128xf32>
    %c0_104 = arith.constant 0 : index
    %c8_105 = arith.constant 8 : index
    %c0_106 = arith.constant 0 : index
    %c0_107 = arith.constant 0 : index
    %137 = vector.load %arg5[%c0_104, %c8_105, %c0_106, %c0_107] : memref<1x16x16x128xf32, #tpu.memory_space<vmem>>, vector<1x1x16x128xf32>
    %138 = vector.shape_cast %137 : vector<1x1x16x128xf32> to vector<16x128xf32>
    %139 = vector.shape_cast %136 : vector<16x128xf32> to vector<1x1x16x128xf32>
    tpu.vector_store %arg5[%c0_104, %c8_105, %c0_106, %c0_107], %139 {strides = array<i32>} : memref<1x16x16x128xf32, #tpu.memory_space<vmem>>, vector<1x1x16x128xf32>,
    %140 = vector.extract_strided_slice %103 {offsets = [162, 0], sizes = [16, 128], strides = [1, 1]} : vector<288x128xf32> to vector<16x128xf32>
    %c0_108 = arith.constant 0 : index
    %c9 = arith.constant 9 : index
    %c0_109 = arith.constant 0 : index
    %c0_110 = arith.constant 0 : index
    %141 = vector.load %arg5[%c0_108, %c9, %c0_109, %c0_110] : memref<1x16x16x128xf32, #tpu.memory_space<vmem>>, vector<1x1x16x128xf32>
    %142 = vector.shape_cast %141 : vector<1x1x16x128xf32> to vector<16x128xf32>
    %143 = vector.shape_cast %140 : vector<16x128xf32> to vector<1x1x16x128xf32>
    tpu.vector_store %arg5[%c0_108, %c9, %c0_109, %c0_110], %143 {strides = array<i32>} : memref<1x16x16x128xf32, #tpu.memory_space<vmem>>, vector<1x1x16x128xf32>,
    %144 = vector.extract_strided_slice %103 {offsets = [180, 0], sizes = [16, 128], strides = [1, 1]} : vector<288x128xf32> to vector<16x128xf32>
    %c0_111 = arith.constant 0 : index
    %c10 = arith.constant 10 : index
    %c0_112 = arith.constant 0 : index
    %c0_113 = arith.constant 0 : index
    %145 = vector.load %arg5[%c0_111, %c10, %c0_112, %c0_113] : memref<1x16x16x128xf32, #tpu.memory_space<vmem>>, vector<1x1x16x128xf32>
    %146 = vector.shape_cast %145 : vector<1x1x16x128xf32> to vector<16x128xf32>
    %147 = vector.shape_cast %144 : vector<16x128xf32> to vector<1x1x16x128xf32>
    tpu.vector_store %arg5[%c0_111, %c10, %c0_112, %c0_113], %147 {strides = array<i32>} : memref<1x16x16x128xf32, #tpu.memory_space<vmem>>, vector<1x1x16x128xf32>,
    %148 = vector.extract_strided_slice %103 {offsets = [198, 0], sizes = [16, 128], strides = [1, 1]} : vector<288x128xf32> to vector<16x128xf32>
    %c0_114 = arith.constant 0 : index
    %c11 = arith.constant 11 : index
    %c0_115 = arith.constant 0 : index
    %c0_116 = arith.constant 0 : index
    %149 = vector.load %arg5[%c0_114, %c11, %c0_115, %c0_116] : memref<1x16x16x128xf32, #tpu.memory_space<vmem>>, vector<1x1x16x128xf32>
    %150 = vector.shape_cast %149 : vector<1x1x16x128xf32> to vector<16x128xf32>
    %151 = vector.shape_cast %148 : vector<16x128xf32> to vector<1x1x16x128xf32>
    tpu.vector_store %arg5[%c0_114, %c11, %c0_115, %c0_116], %151 {strides = array<i32>} : memref<1x16x16x128xf32, #tpu.memory_space<vmem>>, vector<1x1x16x128xf32>,
    %152 = vector.extract_strided_slice %103 {offsets = [216, 0], sizes = [16, 128], strides = [1, 1]} : vector<288x128xf32> to vector<16x128xf32>
    %c0_117 = arith.constant 0 : index
    %c12 = arith.constant 12 : index
    %c0_118 = arith.constant 0 : index
    %c0_119 = arith.constant 0 : index
    %153 = vector.load %arg5[%c0_117, %c12, %c0_118, %c0_119] : memref<1x16x16x128xf32, #tpu.memory_space<vmem>>, vector<1x1x16x128xf32>
    %154 = vector.shape_cast %153 : vector<1x1x16x128xf32> to vector<16x128xf32>
    %155 = vector.shape_cast %152 : vector<16x128xf32> to vector<1x1x16x128xf32>
    tpu.vector_store %arg5[%c0_117, %c12, %c0_118, %c0_119], %155 {strides = array<i32>} : memref<1x16x16x128xf32, #tpu.memory_space<vmem>>, vector<1x1x16x128xf32>,
    %156 = vector.extract_strided_slice %103 {offsets = [234, 0], sizes = [16, 128], strides = [1, 1]} : vector<288x128xf32> to vector<16x128xf32>
    %c0_120 = arith.constant 0 : index
    %c13 = arith.constant 13 : index
    %c0_121 = arith.constant 0 : index
    %c0_122 = arith.constant 0 : index
    %157 = vector.load %arg5[%c0_120, %c13, %c0_121, %c0_122] : memref<1x16x16x128xf32, #tpu.memory_space<vmem>>, vector<1x1x16x128xf32>
    %158 = vector.shape_cast %157 : vector<1x1x16x128xf32> to vector<16x128xf32>
    %159 = vector.shape_cast %156 : vector<16x128xf32> to vector<1x1x16x128xf32>
    tpu.vector_store %arg5[%c0_120, %c13, %c0_121, %c0_122], %159 {strides = array<i32>} : memref<1x16x16x128xf32, #tpu.memory_space<vmem>>, vector<1x1x16x128xf32>,
    %160 = vector.extract_strided_slice %103 {offsets = [252, 0], sizes = [16, 128], strides = [1, 1]} : vector<288x128xf32> to vector<16x128xf32>
    %c0_123 = arith.constant 0 : index
    %c14 = arith.constant 14 : index
    %c0_124 = arith.constant 0 : index
    %c0_125 = arith.constant 0 : index
    %161 = vector.load %arg5[%c0_123, %c14, %c0_124, %c0_125] : memref<1x16x16x128xf32, #tpu.memory_space<vmem>>, vector<1x1x16x128xf32>
    %162 = vector.shape_cast %161 : vector<1x1x16x128xf32> to vector<16x128xf32>
    %163 = vector.shape_cast %160 : vector<16x128xf32> to vector<1x1x16x128xf32>
    tpu.vector_store %arg5[%c0_123, %c14, %c0_124, %c0_125], %163 {strides = array<i32>} : memref<1x16x16x128xf32, #tpu.memory_space<vmem>>, vector<1x1x16x128xf32>,
    %164 = vector.extract_strided_slice %103 {offsets = [270, 0], sizes = [16, 128], strides = [1, 1]} : vector<288x128xf32> to vector<16x128xf32>
    %c0_126 = arith.constant 0 : index
    %c15 = arith.constant 15 : index
    %c0_127 = arith.constant 0 : index
    %c0_128 = arith.constant 0 : index
    %165 = vector.load %arg5[%c0_126, %c15, %c0_127, %c0_128] : memref<1x16x16x128xf32, #tpu.memory_space<vmem>>, vector<1x1x16x128xf32>
    %166 = vector.shape_cast %165 : vector<1x1x16x128xf32> to vector<16x128xf32>
    %167 = vector.shape_cast %164 : vector<16x128xf32> to vector<1x1x16x128xf32>
    tpu.vector_store %arg5[%c0_126, %c15, %c0_127, %c0_128], %167 {strides = array<i32>} : memref<1x16x16x128xf32, #tpu.memory_space<vmem>>, vector<1x1x16x128xf32>,
    return
  }
  func.func @transform_0(%arg0: i32) -> (i32, i32, i32) {
    %c0_i32 = arith.constant 0 : i32
    %c0_i32_0 = arith.constant 0 : i32
    %c0_i32_1 = arith.constant 0 : i32
    return %arg0, %c0_i32, %c0_i32_0 : i32, i32, i32
  }
  func.func @transform_1(%arg0: i32) -> (i32, i32) {
    %c0_i32 = arith.constant 0 : i32
    %c0_i32_0 = arith.constant 0 : i32
    %c0_i32_1 = arith.constant 0 : i32
    return %c0_i32, %c0_i32_0 : i32, i32
  }
  func.func @transform_2(%arg0: i32) -> (i32, i32, i32) {
    %c0_i32 = arith.constant 0 : i32
    %c0_i32_0 = arith.constant 0 : i32
    %c0_i32_1 = arith.constant 0 : i32
    %c0_i32_2 = arith.constant 0 : i32
    return %c0_i32, %c0_i32_0, %c0_i32_1 : i32, i32, i32
  }
  func.func @transform_3(%arg0: i32) -> (i32, i32) {
    %c0_i32 = arith.constant 0 : i32
    %c0_i32_0 = arith.constant 0 : i32
    %c0_i32_1 = arith.constant 0 : i32
    return %c0_i32, %c0_i32_0 : i32, i32
  }
  func.func @transform_4(%arg0: i32) -> (i32, i32, i32, i32) {
    %c0_i32 = arith.constant 0 : i32
    %c0_i32_0 = arith.constant 0 : i32
    %c0_i32_1 = arith.constant 0 : i32
    %c0_i32_2 = arith.constant 0 : i32
    return %arg0, %c0_i32, %c0_i32_0, %c0_i32_1 : i32, i32, i32, i32
  }
}

</mosaic_0001>

<llo_original>
// kernel: ceblock_pallas.1
$region0: #{ceblock_pallas.1}
  #allocation0 [shape = 'u32[]', space=smem, size = 0x4, offset = 0x4, fixed_abs, tag = 'smem constant byte address 0x4 - core index']
  #allocation1 [shape = 'u32[144,128]{1,0:T(1,128)}', space=vmem, size = 0x12000, scoped, tag = 'internal scratch']
  #allocation2 [shape = 'f32[326,128]{1,0:T(8,128)}', space=vmem, size = 0x29000, scoped, tag = 'scratch operand']
  %s0 = inlined_call_operand.vmem [shape: f32[2,256,128], index: 0, kind: input, shape index: {}]
  %s1 = inlined_call_operand.vmem [shape: f32[128,128], index: 1, kind: input, shape index: {}]
  %s2 = inlined_call_operand.vmem [shape: f32[9,128,128], index: 2, kind: input, shape index: {}]
  %s3 = inlined_call_operand.vmem [shape: f32[4,128], index: 3, kind: input, shape index: {}]
  %s4 = inlined_call_operand.hbm [shape: f32[2,16,16,128], index: 4, kind: output, shape index: {}]
  %s5 = sld [smem:[#allocation0]]
  $region49: #{ceblock_pallas.1} parent=0
    _
  %s7 = ssub.s32 1, %s5
  %s8 = scalar_select 0, %s7, %s5
  $region1: #{ceblock_pallas.1} parent=0
    #allocation3 [shape = 'u8[262144]{0}', space=vmem, size = 0x40000, scoped, tag = 'output window, operand 0']
    #allocation4 [shape = 's32[2]{0}', space=sflag, size = 0x8, scoped, tag = 'scoped memory for ceblock_pallas.1']
    %9 = vsyncpa [#allocation4], 0
    %s10 = scalar_lea.sflag [#allocation4], 1
    %11 = vsyncpa %s10, 0
    loop: start=0, step=1, limit=4
    $region2: #{ceblock_pallas.1} parent=1 // loop_pre_header
      _
    $region3: #{ceblock_pallas.1} parent=1 // loop_header
      %s13 = sphi 0, %s17
      %p14 = scmp.ge.s32.totalorder %s13, 4
      %s23 = sphi 0, %s25
      %s26 = sphi 0, %s23
      %s27 = sphi 0, %s26
      %s43 = sphi 0, %s27
      %s47 = sphi 0, %s47
      %s49 = sphi 0, %s47
      %s50 = sphi 0, %s49
      %s64 = sphi 0, %s50
      %s68 = sphi 0, %s68
      %s70 = sphi 0, %s68
      %s71 = sphi 0, %s70
      %s85 = sphi 0, %s71
      %s89 = sphi 0, %s89
      %s91 = sphi 0, %s89
      %s92 = sphi 0, %s91
      %s106 = sphi 0, %s92
      %s112 = sphi 0, %s114
      %s115 = sphi 0, %s112
      %s116 = sphi 0, %s115
      %s132 = sphi 0, %s116
    $region4: #{ceblock_pallas.1} parent=1 // loop_header_branch
      %16 = sbr.rel (%p14) target = $region8
    $region5: #{ceblock_pallas.1} parent=1 // loop_body
      %s18 = ssub.s32 %s13, 1
      %s19 = ssub.s32 %s13, 2
      %s20 = sadd.s32 %s13, 1
      %s21 = ssub.s32 %s13, %s20
      %p22 = scmp.eq.s32.totalorder %s21, 0
      %s24 = sadd.s32 %s23, 1
      %s25 = scalar_select %p22, %s23, %s24
      %p28 = pneg %p22
      %p29 = scmp.eq.s32.totalorder %s13, 1
      %p30 = por %p28, %p29
      %p31 = scmp.ne.s32.totalorder %s23, %s26
      %p32 = scmp.eq.s32.totalorder %s13, 0
      %p33 = por %p31, %p32
      %p34 = scmp.ne.s32.totalorder %s23, %s26
      %p35 = scmp.eq.s32.totalorder %s18, 1
      %p36 = por %p34, %p35
      %p37 = scmp.ne.s32.totalorder %s26, %s27
      %p38 = scmp.eq.s32.totalorder %s18, 0
      %p39 = por %p37, %p38
      %p40 = scmp.ne.s32.totalorder %s26, %s27
      %p41 = scmp.eq.s32.totalorder %s19, 1
      %p42 = por %p40, %p41
      %p44 = scmp.ne.s32.totalorder %s27, %s43
      %p45 = scmp.eq.s32.totalorder %s19, 0
      %p46 = por %p44, %p45
      %s48 = sadd.s32 %s47, 1
      %p51 = scmp.eq.s32.totalorder %s13, 1
      %p52 = scmp.ne.s32.totalorder %s47, %s49
      %p53 = scmp.eq.s32.totalorder %s13, 0
      %p54 = por %p52, %p53
      %p55 = scmp.ne.s32.totalorder %s47, %s49
      %p56 = scmp.eq.s32.totalorder %s18, 1
      %p57 = por %p55, %p56
      %p58 = scmp.ne.s32.totalorder %s49, %s50
      %p59 = scmp.eq.s32.totalorder %s18, 0
      %p60 = por %p58, %p59
      %p61 = scmp.ne.s32.totalorder %s49, %s50
      %p62 = scmp.eq.s32.totalorder %s19, 1
      %p63 = por %p61, %p62
      %p65 = scmp.ne.s32.totalorder %s50, %s64
      %p66 = scmp.eq.s32.totalorder %s19, 0
      %p67 = por %p65, %p66
      %s69 = sadd.s32 %s68, 1
      %p72 = scmp.eq.s32.totalorder %s13, 1
      %p73 = scmp.ne.s32.totalorder %s68, %s70
      %p74 = scmp.eq.s32.totalorder %s13, 0
      %p75 = por %p73, %p74
      %p76 = scmp.ne.s32.totalorder %s68, %s70
      %p77 = scmp.eq.s32.totalorder %s18, 1
      %p78 = por %p76, %p77
      %p79 = scmp.ne.s32.totalorder %s70, %s71
      %p80 = scmp.eq.s32.totalorder %s18, 0
      %p81 = por %p79, %p80
      %p82 = scmp.ne.s32.totalorder %s70, %s71
      %p83 = scmp.eq.s32.totalorder %s19, 1
      %p84 = por %p82, %p83
      %p86 = scmp.ne.s32.totalorder %s71, %s85
      %p87 = scmp.eq.s32.totalorder %s19, 0
      %p88 = por %p86, %p87
      %s90 = sadd.s32 %s89, 1
      %p93 = scmp.eq.s32.totalorder %s13, 1
      %p94 = scmp.ne.s32.totalorder %s89, %s91
      %p95 = scmp.eq.s32.totalorder %s13, 0
      %p96 = por %p94, %p95
      %p97 = scmp.ne.s32.totalorder %s89, %s91
      %p98 = scmp.eq.s32.totalorder %s18, 1
      %p99 = por %p97, %p98
      %p100 = scmp.ne.s32.totalorder %s91, %s92
      %p101 = scmp.eq.s32.totalorder %s18, 0
      %p102 = por %p100, %p101
      %p103 = scmp.ne.s32.totalorder %s91, %s92
      %p104 = scmp.eq.s32.totalorder %s19, 1
      %p105 = por %p103, %p104
      %p107 = scmp.ne.s32.totalorder %s92, %s106
      %p108 = scmp.eq.s32.totalorder %s19, 0
      %p109 = por %p107, %p108
      %s110 = ssub.s32 %s13, %s20
      %p111 = scmp.eq.s32.totalorder %s110, 0
      %s113 = sadd.s32 %s112, 1
      %s114 = scalar_select %p111, %s112, %s113
      %p117 = pneg %p111
      %p118 = scmp.eq.s32.totalorder %s13, 1
      %p119 = por %p117, %p118
      %p120 = scmp.ne.s32.totalorder %s112, %s115
      %p121 = scmp.eq.s32.totalorder %s13, 0
      %p122 = por %p120, %p121
      %p123 = scmp.ne.s32.totalorder %s112, %s115
      %p124 = scmp.eq.s32.totalorder %s18, 1
      %p125 = por %p123, %p124
      %p126 = scmp.ne.s32.totalorder %s115, %s116
      %p127 = scmp.eq.s32.totalorder %s18, 0
      %p128 = por %p126, %p127
      %p129 = scmp.ne.s32.totalorder %s115, %s116
      %p130 = scmp.eq.s32.totalorder %s19, 1
      %p131 = por %p129, %p130
      %p133 = scmp.ne.s32.totalorder %s116, %s132
      %p134 = scmp.eq.s32.totalorder %s19, 0
      %p135 = por %p133, %p134
      %p136 = scmp.le.s32.totalorder 1, %s13
      %p137 = scmp.lt.s32.totalorder %s13, 3
      %p138 = pnand %p136, %p137
      %p139 = pneg %p138
      // Predicated region
      $region9: #{ceblock_pallas.1} parent=5 // pred_check
        _
      $region10: #{ceblock_pallas.1} parent=5 // pred_check_branch
        %141 = sbr.rel (%p138) target = $region12
      $region11: #{ceblock_pallas.1} parent=5 // pred_region
        %s142 = ssub.s32 %s13, 1
        // Predicated region
        $region13: #{ceblock_pallas.1} parent=11 // pred_check
          %p143 = pneg %p60
        $region14: #{ceblock_pallas.1} parent=11 // pred_check_branch
          %145 = sbr.rel (%p143) target = $region16
        $region15: #{ceblock_pallas.1} parent=11 // pred_region
          _
        $region16: #{ceblock_pallas.1} parent=11 // pred_fallthru
          _
        // Predicated region
        $region17: #{ceblock_pallas.1} parent=11 // pred_check
          %p146 = pneg %p81
        $region18: #{ceblock_pallas.1} parent=11 // pred_check_branch
          %148 = sbr.rel (%p146) target = $region20
        $region19: #{ceblock_pallas.1} parent=11 // pred_region
          _
        $region20: #{ceblock_pallas.1} parent=11 // pred_fallthru
          _
        // Predicated region
        $region21: #{ceblock_pallas.1} parent=11 // pred_check
          %p149 = pneg %p102
        $region22: #{ceblock_pallas.1} parent=11 // pred_check_branch
          %151 = sbr.rel (%p149) target = $region24
        $region23: #{ceblock_pallas.1} parent=11 // pred_region
          _
        $region24: #{ceblock_pallas.1} parent=11 // pred_fallthru
          _
      $region12: #{ceblock_pallas.1} parent=5 // pred_fallthru
        _
      %p152 = scmp.lt.s32.totalorder %s13, 2
      // Predicated region
      $region25: #{ceblock_pallas.1} parent=5 // pred_check
        %p153 = pneg %p152
      $region26: #{ceblock_pallas.1} parent=5 // pred_check_branch
        %155 = sbr.rel (%p153) target = $region28
      $region27: #{ceblock_pallas.1} parent=5 // pred_region
        // Predicated region
        $region29: #{ceblock_pallas.1} parent=27 // pred_check
          %p156 = pneg %p33
        $region30: #{ceblock_pallas.1} parent=27 // pred_check_branch
          %158 = sbr.rel (%p156) target = $region32
        $region31: #{ceblock_pallas.1} parent=27 // pred_region
          %p159 = scmp.lt.s32.totalorder %s13, 1
          %s160 = scalar_select %p159, %s13, 1
          %s161 = smul.addr %s160, 32
          %s162 = smul.addr %s161, 8
          %s163 = scalar_lea.vmem %s0, %s162
        $region32: #{ceblock_pallas.1} parent=27 // pred_fallthru
          _
      $region28: #{ceblock_pallas.1} parent=5 // pred_fallthru
        _
      %p164 = scmp.le.s32.totalorder 1, %s13
      %p165 = scmp.lt.s32.totalorder %s13, 3
      %p166 = pnand %p164, %p165
      %p167 = pneg %p166
      // Predicated region
      $region33: #{ceblock_pallas.1} parent=5 // pred_check
        _
      $region34: #{ceblock_pallas.1} parent=5 // pred_check_branch
        %169 = sbr.rel (%p166) target = $region36
      $region35: #{ceblock_pallas.1} parent=5 // pred_region
        %s170 = ssub.s32 %s13, 1
        %p171 = scmp.lt.s32.totalorder %s18, 1
        %s172 = scalar_select %p171, %s18, 1
        %s173 = smul.addr %s172, 32
        %s174 = smul.addr %s173, 8
        %s175 = scalar_lea.vmem %s0, %s174
        %p176 = pneg %p39
        %p177 = pneg %p36
        %p178 = pneg %p60
        %p179 = pneg %p57
        %p180 = pneg %p81
        %p181 = pneg %p78
        %p182 = pneg %p102
        %p183 = pneg %p99
        %p184 = pneg %p128
        %p185 = pneg %p125
        %s186 = sand.u32 %s115, 1
        %s187 = scalar_lea.sflag [#allocation4], %s186
        %s188 = sand.u32 %s115, 1
        %s189 = smul.addr %s188, 256
        %s190 = scalar_lea.vmem [#allocation3], %s189
        %p191 = scmp.lt.s32.totalorder %s18, 1
        %s192 = scalar_select %p191, %s18, 1
        %s193 = smul.addr %s192, 32
        %s194 = smul.addr %s193, 8
        %s195 = scalar_lea.vmem %s0, %s194
        %v196 = vld [vmem:[%s195] sm:$0xff]
        %v197 = vld [vmem:[%s195 + $0x8] sm:$0xff]
        %v198 = vld [vmem:[%s195 + $0x10] sm:$0xff]
        %v199 = vld [vmem:[%s195 + $0x18] sm:$0xff]
        %v200 = vld [vmem:[%s195 + $0x20] sm:$0xff]
        %v201 = vld [vmem:[%s195 + $0x28] sm:$0xff]
        %v202 = vld [vmem:[%s195 + $0x30] sm:$0xff]
        %v203 = vld [vmem:[%s195 + $0x38] sm:$0xff]
        %v204 = vld [vmem:[%s195 + $0x40] sm:$0xff]
        %v205 = vld [vmem:[%s195 + $0x48] sm:$0xff]
        %v206 = vld [vmem:[%s195 + $0x50] sm:$0xff]
        %v207 = vld [vmem:[%s195 + $0x58] sm:$0xff]
        %v208 = vld [vmem:[%s195 + $0x60] sm:$0xff]
        %v209 = vld [vmem:[%s195 + $0x68] sm:$0xff]
        %v210 = vld [vmem:[%s195 + $0x70] sm:$0xff]
        %v211 = vld [vmem:[%s195 + $0x78] sm:$0xff]
        %v212 = vld [vmem:[%s195 + $0x80] sm:$0xff]
        %v213 = vld [vmem:[%s195 + $0x88] sm:$0xff]
        %v214 = vld [vmem:[%s195 + $0x90] sm:$0xff]
        %v215 = vld [vmem:[%s195 + $0x98] sm:$0xff]
        %v216 = vld [vmem:[%s195 + $0xa0] sm:$0xff]
        %v217 = vld [vmem:[%s195 + $0xa8] sm:$0xff]
        %v218 = vld [vmem:[%s195 + $0xb0] sm:$0xff]
        %v219 = vld [vmem:[%s195 + $0xb8] sm:$0xff]
        %v220 = vld [vmem:[%s195 + $0xc0] sm:$0xff]
        %v221 = vld [vmem:[%s195 + $0xc8] sm:$0xff]
        %v222 = vld [vmem:[%s195 + $0xd0] sm:$0xff]
        %v223 = vld [vmem:[%s195 + $0xd8] sm:$0xff]
        %v224 = vld [vmem:[%s195 + $0xe0] sm:$0xff]
        %v225 = vld [vmem:[%s195 + $0xe8] sm:$0xff]
        %v226 = vld [vmem:[%s195 + $0xf0] sm:$0xff]
        %v227 = vld [vmem:[%s195 + $0xf8] sm:$0xff]
        %v228 = vld [vmem:[%s3] sm:$0xf]
        %v229 = vadd.f32 %v196, %v197
        %v230 = vadd.f32 %v229, %v198
        %v231 = vadd.f32 %v230, %v199
        %v232 = vadd.f32 %v231, %v200
        %v233 = vadd.f32 %v232, %v201
        %v234 = vadd.f32 %v233, %v202
        %v235 = vadd.f32 %v234, %v203
        %v236 = vadd.f32 %v235, %v204
        %v237 = vadd.f32 %v236, %v205
        %v238 = vadd.f32 %v237, %v206
        %v239 = vadd.f32 %v238, %v207
        %v240 = vadd.f32 %v239, %v208
        %v241 = vadd.f32 %v240, %v209
        %v242 = vadd.f32 %v241, %v210
        %v243 = vadd.f32 %v242, %v211
        %v244 = vadd.f32 %v243, %v212
        %v245 = vadd.f32 %v244, %v213
        %v246 = vadd.f32 %v245, %v214
        %v247 = vadd.f32 %v246, %v215
        %v248 = vadd.f32 %v247, %v216
        %v249 = vadd.f32 %v248, %v217
        %v250 = vadd.f32 %v249, %v218
        %v251 = vadd.f32 %v250, %v219
        %v252 = vadd.f32 %v251, %v220
        %v253 = vadd.f32 %v252, %v221
        %v254 = vadd.f32 %v253, %v222
        %v255 = vadd.f32 %v254, %v223
        %v256 = vadd.f32 %v255, %v224
        %v257 = vadd.f32 %v256, %v225
        %v258 = vadd.f32 %v257, %v226
        %v259 = vadd.f32 %v258, %v227
        %v260 = vrot.slane %v259, 4
        %v261 = vadd.f32 %v259, %v260
        %v262 = vrot.slane %v261, 2
        %v263 = vadd.f32 %v261, %v262
        %v264 = vrot.slane %v263, 1
        %v265 = vadd.f32 %v263, %v264
        %v266 = vmul.f32 %v265, 0.00390625
        %v267 = vmul.f32 %v266, %v228
        %v269 = vrot.slane %v228, 1
        %v271 = vadd.f32 %v267, %v269
        %v272 = vld [vmem:[%s1] sm:$0xff]
        %v273 = vld [vmem:[%s1 + $0x8] sm:$0xff]
        %v274 = vld [vmem:[%s1 + $0x10] sm:$0xff]
        %v275 = vld [vmem:[%s1 + $0x18] sm:$0xff]
        %v276 = vld [vmem:[%s1 + $0x20] sm:$0xff]
        %v277 = vld [vmem:[%s1 + $0x28] sm:$0xff]
        %v278 = vld [vmem:[%s1 + $0x30] sm:$0xff]
        %v279 = vld [vmem:[%s1 + $0x38] sm:$0xff]
        %v280 = vld [vmem:[%s1 + $0x40] sm:$0xff]
        %v281 = vld [vmem:[%s1 + $0x48] sm:$0xff]
        %v282 = vld [vmem:[%s1 + $0x50] sm:$0xff]
        %v283 = vld [vmem:[%s1 + $0x58] sm:$0xff]
        %v284 = vld [vmem:[%s1 + $0x60] sm:$0xff]
        %v285 = vld [vmem:[%s1 + $0x68] sm:$0xff]
        %v286 = vld [vmem:[%s1 + $0x70] sm:$0xff]
        %v287 = vld [vmem:[%s1 + $0x78] sm:$0xff]
        %v288 = vrot.slane %v228, 2
        %290 = vmatprep.subr.mxu0 0.0
        %291 = vmatpush1.msra.mxu0 %v287
        %292 = vmatprep.subr.mxu0 0.0
        %293 = vmatpush1.msra.mxu0 %v286
        %294 = vmatprep.subr.mxu0 0.0
        %295 = vmatpush1.msra.mxu0 %v285
        %296 = vmatprep.subr.mxu0 0.0
        %297 = vmatpush1.msra.mxu0 %v284
        %298 = vmatprep.subr.mxu0 0.0
        %299 = vmatpush1.msra.mxu0 %v283
        %300 = vmatprep.subr.mxu0 0.0
        %301 = vmatpush1.msra.mxu0 %v282
        %302 = vmatprep.subr.mxu0 0.0
        %303 = vmatpush1.msra.mxu0 %v281
        %304 = vmatprep.subr.mxu0 0.0
        %305 = vmatpush1.msra.mxu0 %v280
        %306 = vmatprep.subr.mxu0 0.0
        %307 = vmatpush1.msra.mxu0 %v279
        %308 = vmatprep.subr.mxu0 0.0
        %309 = vmatpush1.msra.mxu0 %v278
        %310 = vmatprep.subr.mxu0 0.0
        %311 = vmatpush1.msra.mxu0 %v277
        %312 = vmatprep.subr.mxu0 0.0
        %313 = vmatpush1.msra.mxu0 %v276
        %314 = vmatprep.subr.mxu0 0.0
        %315 = vmatpush1.msra.mxu0 %v275
        %316 = vmatprep.subr.mxu0 0.0
        %317 = vmatpush1.msra.mxu0 %v274
        %318 = vmatprep.subr.mxu0 0.0
        %319 = vmatpush1.msra.mxu0 %v273
        %320 = vmatprep.subr.mxu0 0.0
        %321 = vmatpush1.msra.mxu0 %v272
        %322 = vmatprep.subr.mxu0 0.0
        %323 = vmatpush2.msra.mxu0 0.0
        %324 = vmatprep.subr.mxu0 0.0
        %325 = vmatpush2.msra.mxu0 0.0
        %326 = vmatprep.subr.mxu0 0.0
        %327 = vmatpush2.msra.mxu0 0.0
        %328 = vmatprep.subr.mxu0 0.0
        %329 = vmatpush2.msra.mxu0 0.0
        %330 = vmatprep.subr.mxu0 0.0
        %331 = vmatpush2.msra.mxu0 0.0
        %332 = vmatprep.subr.mxu0 0.0
        %333 = vmatpush2.msra.mxu0 0.0
        %334 = vmatprep.subr.mxu0 0.0
        %335 = vmatpush2.msra.mxu0 0.0
        %336 = vmatprep.subr.mxu0 0.0
        %337 = vmatpush2.msra.mxu0 0.0
        %338 = vmatprep.subr.mxu0 0.0
        %339 = vmatpush2.msra.mxu0 0.0
        %340 = vmatprep.subr.mxu0 0.0
        %341 = vmatpush2.msra.mxu0 0.0
        %342 = vmatprep.subr.mxu0 0.0
        %343 = vmatpush2.msra.mxu0 0.0
        %344 = vmatprep.subr.mxu0 0.0
        %345 = vmatpush2.msra.mxu0 0.0
        %346 = vmatprep.subr.mxu0 0.0
        %347 = vmatpush2.msra.mxu0 0.0
        %348 = vmatprep.subr.mxu0 0.0
        %349 = vmatpush2.msra.mxu0 0.0
        %350 = vmatprep.subr.mxu0 0.0
        %351 = vmatpush2.msra.mxu0 0.0
        %352 = vmatprep.subr.mxu0 0.0
        %353 = vmatpush2.msra.mxu0 0.0
        %354 = vmatprep.mubr.f32.mxu0 0.0
        %355 = vmatmul.mubr.f32.gmra.mxu0 %v271
        %v356 = vpop.f32.mrf.mxu0
        %v357 = vadd.f32 %v288, %v356
        %v358 = vpop.f32.mrf.mxu0
        %359 = vdwg.mxu0
        %v360 = vmax.f32 %v357, 0.0
        %361 = vst [vmem:[#allocation2] sm:$0xff] 0.0
        %362 = vst [vmem:[#allocation2 + $0x8] sm:$0xff] 0.0
        %363 = vst [vmem:[#allocation2 + $0x10] sm:$0xff] 0.0
        %364 = vst [vmem:[#allocation2 + $0x18] sm:$0xff] 0.0
        %365 = vst [vmem:[#allocation2 + $0x20] sm:$0xff] 0.0
        %366 = vst [vmem:[#allocation2 + $0x28] sm:$0xff] 0.0
        %367 = vst [vmem:[#allocation2 + $0x30] sm:$0xff] 0.0
        %368 = vst [vmem:[#allocation2 + $0x38] sm:$0xff] 0.0
        %369 = vst [vmem:[#allocation2 + $0x40] sm:$0xff] 0.0
        %370 = vst [vmem:[#allocation2 + $0x48] sm:$0xff] 0.0
        %371 = vst [vmem:[#allocation2 + $0x50] sm:$0xff] 0.0
        %372 = vst [vmem:[#allocation2 + $0x58] sm:$0xff] 0.0
        %373 = vst [vmem:[#allocation2 + $0x60] sm:$0xff] 0.0
        %374 = vst [vmem:[#allocation2 + $0x68] sm:$0xff] 0.0
        %375 = vst [vmem:[#allocation2 + $0x70] sm:$0xff] 0.0
        %376 = vst [vmem:[#allocation2 + $0x78] sm:$0xff] 0.0
        %377 = vst [vmem:[#allocation2 + $0x80] sm:$0xff] 0.0
        %378 = vst [vmem:[#allocation2 + $0x88] sm:$0xff] 0.0
        %379 = vst [vmem:[#allocation2 + $0x90] sm:$0xff] 0.0
        %380 = vst [vmem:[#allocation2 + $0x98] sm:$0xff] 0.0
        %381 = vst [vmem:[#allocation2 + $0xa0] sm:$0xff] 0.0
        %382 = vst [vmem:[#allocation2 + $0xa8] sm:$0xff] 0.0
        %383 = vst [vmem:[#allocation2 + $0xb0] sm:$0xff] 0.0
        %384 = vst [vmem:[#allocation2 + $0xb8] sm:$0xff] 0.0
        %385 = vst [vmem:[#allocation2 + $0xc0] sm:$0xff] 0.0
        %386 = vst [vmem:[#allocation2 + $0xc8] sm:$0xff] 0.0
        %387 = vst [vmem:[#allocation2 + $0xd0] sm:$0xff] 0.0
        %388 = vst [vmem:[#allocation2 + $0xd8] sm:$0xff] 0.0
        %389 = vst [vmem:[#allocation2 + $0xe0] sm:$0xff] 0.0
        %390 = vst [vmem:[#allocation2 + $0xe8] sm:$0xff] 0.0
        %391 = vst [vmem:[#allocation2 + $0xf0] sm:$0xff] 0.0
        %392 = vst [vmem:[#allocation2 + $0xf8] sm:$0xff] 0.0
        %393 = vst [vmem:[#allocation2 + $0x100] sm:$0xff] 0.0
        %394 = vst [vmem:[#allocation2 + $0x108] sm:$0xff] 0.0
        %395 = vst [vmem:[#allocation2 + $0x110] sm:$0xff] 0.0
        %396 = vst [vmem:[#allocation2 + $0x118] sm:$0xff] 0.0
        %397 = vst [vmem:[#allocation2 + $0x120] sm:$0xff] 0.0
        %398 = vst [vmem:[#allocation2 + $0x128] sm:$0xff] 0.0
        %399 = vst [vmem:[#allocation2 + $0x130] sm:$0xff] 0.0
        %400 = vst [vmem:[#allocation2 + $0x138] sm:$0xff] 0.0
        %401 = vst [vmem:[#allocation2 + $0x140] sm:$0x3f] 0.0
        %v402 = vlaneseq
        %v403 = vshrl.u32 %v402, 7
        %v404 = vsub.s32 0, %v403
        %v405 = vrot.slane %v360, %v404
        %v406 = vadd.f32 %v196, %v405
        %v407 = vadd.f32 %v197, %v405
        %v408 = vadd.f32 %v198, %v405
        %v409 = vadd.f32 %v199, %v405
        %v410 = vadd.f32 %v200, %v405
        %v411 = vadd.f32 %v201, %v405
        %v412 = vadd.f32 %v202, %v405
        %v413 = vadd.f32 %v203, %v405
        %v414 = vadd.f32 %v204, %v405
        %v415 = vadd.f32 %v205, %v405
        %v416 = vadd.f32 %v206, %v405
        %v417 = vadd.f32 %v207, %v405
        %v418 = vadd.f32 %v208, %v405
        %v419 = vadd.f32 %v209, %v405
        %v420 = vadd.f32 %v210, %v405
        %v421 = vadd.f32 %v211, %v405
        %v422 = vadd.f32 %v212, %v405
        %v423 = vadd.f32 %v213, %v405
        %v424 = vadd.f32 %v214, %v405
        %v425 = vadd.f32 %v215, %v405
        %v426 = vadd.f32 %v216, %v405
        %v427 = vadd.f32 %v217, %v405
        %v428 = vadd.f32 %v218, %v405
        %v429 = vadd.f32 %v219, %v405
        %v430 = vadd.f32 %v220, %v405
        %v431 = vadd.f32 %v221, %v405
        %v432 = vadd.f32 %v222, %v405
        %v433 = vadd.f32 %v223, %v405
        %v434 = vadd.f32 %v224, %v405
        %v435 = vadd.f32 %v225, %v405
        %v436 = vadd.f32 %v226, %v405
        %v437 = vadd.f32 %v227, %v405
        %438 = vst [vmem:[#allocation2 + $0x13] sm:$0xff] %v406
        %439 = vst [vmem:[#allocation2 + $0x1b] sm:$0xff] %v407
        %440 = vst [vmem:[#allocation2 + $0x25] sm:$0xff] %v408
        %441 = vst [vmem:[#allocation2 + $0x2d] sm:$0xff] %v409
        %442 = vst [vmem:[#allocation2 + $0x37] sm:$0xff] %v410
        %443 = vst [vmem:[#allocation2 + $0x3f] sm:$0xff] %v411
        %444 = vst [vmem:[#allocation2 + $0x49] sm:$0xff] %v412
        %445 = vst [vmem:[#allocation2 + $0x51] sm:$0xff] %v413
        %446 = vst [vmem:[#allocation2 + $0x5b] sm:$0xff] %v414
        %447 = vst [vmem:[#allocation2 + $0x63] sm:$0xff] %v415
        %448 = vst [vmem:[#allocation2 + $0x6d] sm:$0xff] %v416
        %449 = vst [vmem:[#allocation2 + $0x75] sm:$0xff] %v417
        %450 = vst [vmem:[#allocation2 + $0x7f] sm:$0xff] %v418
        %451 = vst [vmem:[#allocation2 + $0x87] sm:$0xff] %v419
        %452 = vst [vmem:[#allocation2 + $0x91] sm:$0xff] %v420
        %453 = vst [vmem:[#allocation2 + $0x99] sm:$0xff] %v421
        %454 = vst [vmem:[#allocation2 + $0xa3] sm:$0xff] %v422
        %455 = vst [vmem:[#allocation2 + $0xab] sm:$0xff] %v423
        %456 = vst [vmem:[#allocation2 + $0xb5] sm:$0xff] %v424
        %457 = vst [vmem:[#allocation2 + $0xbd] sm:$0xff] %v425
        %458 = vst [vmem:[#allocation2 + $0xc7] sm:$0xff] %v426
        %459 = vst [vmem:[#allocation2 + $0xcf] sm:$0xff] %v427
        %460 = vst [vmem:[#allocation2 + $0xd9] sm:$0xff] %v428
        %461 = vst [vmem:[#allocation2 + $0xe1] sm:$0xff] %v429
        %462 = vst [vmem:[#allocation2 + $0xeb] sm:$0xff] %v430
        %463 = vst [vmem:[#allocation2 + $0xf3] sm:$0xff] %v431
        %464 = vst [vmem:[#allocation2 + $0xfd] sm:$0xff] %v432
        %465 = vst [vmem:[#allocation2 + $0x105] sm:$0xff] %v433
        %466 = vst [vmem:[#allocation2 + $0x10f] sm:$0xff] %v434
        %467 = vst [vmem:[#allocation2 + $0x117] sm:$0xff] %v435
        %468 = vst [vmem:[#allocation2 + $0x121] sm:$0xff] %v436
        %469 = vst [vmem:[#allocation2 + $0x129] sm:$0xff] %v437
        %v470 = vld [vmem:[#allocation2] sm:$0xff]
        %v471 = vld [vmem:[#allocation2 + $0x8] sm:$0xff]
        %v472 = vld [vmem:[#allocation2 + $0x10] sm:$0xff]
        %v473 = vld [vmem:[#allocation2 + $0x18] sm:$0xff]
        %v474 = vld [vmem:[#allocation2 + $0x20] sm:$0xff]
        %v475 = vld [vmem:[#allocation2 + $0x28] sm:$0xff]
        %v476 = vld [vmem:[#allocation2 + $0x30] sm:$0xff]
        %v477 = vld [vmem:[#allocation2 + $0x38] sm:$0xff]
        %v478 = vld [vmem:[#allocation2 + $0x40] sm:$0xff]
        %v479 = vld [vmem:[#allocation2 + $0x48] sm:$0xff]
        %v480 = vld [vmem:[#allocation2 + $0x50] sm:$0xff]
        %v481 = vld [vmem:[#allocation2 + $0x58] sm:$0xff]
        %v482 = vld [vmem:[#allocation2 + $0x60] sm:$0xff]
        %v483 = vld [vmem:[#allocation2 + $0x68] sm:$0xff]
        %v484 = vld [vmem:[#allocation2 + $0x70] sm:$0xff]
        %v485 = vld [vmem:[#allocation2 + $0x78] sm:$0xff]
        %v486 = vld [vmem:[#allocation2 + $0x80] sm:$0xff]
        %v487 = vld [vmem:[#allocation2 + $0x88] sm:$0xff]
        %v488 = vld [vmem:[#allocation2 + $0x90] sm:$0xff]
        %v489 = vld [vmem:[#allocation2 + $0x98] sm:$0xff]
        %v490 = vld [vmem:[#allocation2 + $0xa0] sm:$0xff]
        %v491 = vld [vmem:[#allocation2 + $0xa8] sm:$0xff]
        %v492 = vld [vmem:[#allocation2 + $0xb0] sm:$0xff]
        %v493 = vld [vmem:[#allocation2 + $0xb8] sm:$0xff]
        %v494 = vld [vmem:[#allocation2 + $0xc0] sm:$0xff]
        %v495 = vld [vmem:[#allocation2 + $0xc8] sm:$0xff]
        %v496 = vld [vmem:[#allocation2 + $0xd0] sm:$0xff]
        %v497 = vld [vmem:[#allocation2 + $0xd8] sm:$0xff]
        %v498 = vld [vmem:[#allocation2 + $0xe0] sm:$0xff]
        %v499 = vld [vmem:[#allocation2 + $0xe8] sm:$0xff]
        %v500 = vld [vmem:[#allocation2 + $0xf0] sm:$0xff]
        %v501 = vld [vmem:[#allocation2 + $0xf8] sm:$0xff]
        %v502 = vld [vmem:[#allocation2 + $0x100] sm:$0xff]
        %v503 = vld [vmem:[#allocation2 + $0x108] sm:$0xff]
        %v504 = vld [vmem:[#allocation2 + $0x110] sm:$0xff]
        %v505 = vld [vmem:[#allocation2 + $0x118] sm:$0xff]
        %v506 = vld [vmem:[%s2] sm:$0xff]
        %v507 = vld [vmem:[%s2 + $0x8] sm:$0xff]
        %v508 = vld [vmem:[%s2 + $0x10] sm:$0xff]
        %v509 = vld [vmem:[%s2 + $0x18] sm:$0xff]
        %v510 = vld [vmem:[%s2 + $0x20] sm:$0xff]
        %v511 = vld [vmem:[%s2 + $0x28] sm:$0xff]
        %v512 = vld [vmem:[%s2 + $0x30] sm:$0xff]
        %v513 = vld [vmem:[%s2 + $0x38] sm:$0xff]
        %v514 = vld [vmem:[%s2 + $0x40] sm:$0xff]
        %v515 = vld [vmem:[%s2 + $0x48] sm:$0xff]
        %v516 = vld [vmem:[%s2 + $0x50] sm:$0xff]
        %v517 = vld [vmem:[%s2 + $0x58] sm:$0xff]
        %v518 = vld [vmem:[%s2 + $0x60] sm:$0xff]
        %v519 = vld [vmem:[%s2 + $0x68] sm:$0xff]
        %v520 = vld [vmem:[%s2 + $0x70] sm:$0xff]
        %v521 = vld [vmem:[%s2 + $0x78] sm:$0xff]
        %v522 = vld [vmem:[#allocation2 + $0x1] sm:$0xff]
        %v523 = vld [vmem:[#allocation2 + $0x9] sm:$0xff]
        %v524 = vld [vmem:[#allocation2 + $0x11] sm:$0xff]
        %v525 = vld [vmem:[#allocation2 + $0x19] sm:$0xff]
        %v526 = vld [vmem:[#allocation2 + $0x21] sm:$0xff]
        %v527 = vld [vmem:[#allocation2 + $0x29] sm:$0xff]
        %v528 = vld [vmem:[#allocation2 + $0x31] sm:$0xff]
        %v529 = vld [vmem:[#allocation2 + $0x39] sm:$0xff]
        %v530 = vld [vmem:[#allocation2 + $0x41] sm:$0xff]
        %v531 = vld [vmem:[#allocation2 + $0x49] sm:$0xff]
        %v532 = vld [vmem:[#allocation2 + $0x51] sm:$0xff]
        %v533 = vld [vmem:[#allocation2 + $0x59] sm:$0xff]
        %v534 = vld [vmem:[#allocation2 + $0x61] sm:$0xff]
        %v535 = vld [vmem:[#allocation2 + $0x69] sm:$0xff]
        %v536 = vld [vmem:[#allocation2 + $0x71] sm:$0xff]
        %v537 = vld [vmem:[#allocation2 + $0x79] sm:$0xff]
        %v538 = vld [vmem:[#allocation2 + $0x81] sm:$0xff]
        %v539 = vld [vmem:[#allocation2 + $0x89] sm:$0xff]
        %v540 = vld [vmem:[#allocation2 + $0x91] sm:$0xff]
        %v541 = vld [vmem:[#allocation2 + $0x99] sm:$0xff]
        %v542 = vld [vmem:[#allocation2 + $0xa1] sm:$0xff]
        %v543 = vld [vmem:[#allocation2 + $0xa9] sm:$0xff]
        %v544 = vld [vmem:[#allocation2 + $0xb1] sm:$0xff]
        %v545 = vld [vmem:[#allocation2 + $0xb9] sm:$0xff]
        %v546 = vld [vmem:[#allocation2 + $0xc1] sm:$0xff]
        %v547 = vld [vmem:[#allocation2 + $0xc9] sm:$0xff]
        %v548 = vld [vmem:[#allocation2 + $0xd1] sm:$0xff]
        %v549 = vld [vmem:[#allocation2 + $0xd9] sm:$0xff]
        %v550 = vld [vmem:[#allocation2 + $0xe1] sm:$0xff]
        %v551 = vld [vmem:[#allocation2 + $0xe9] sm:$0xff]
        %v552 = vld [vmem:[#allocation2 + $0xf1] sm:$0xff]
        %v553 = vld [vmem:[#allocation2 + $0xf9] sm:$0xff]
        %v554 = vld [vmem:[#allocation2 + $0x101] sm:$0xff]
        %v555 = vld [vmem:[#allocation2 + $0x109] sm:$0xff]
        %v556 = vld [vmem:[#allocation2 + $0x111] sm:$0xff]
        %v557 = vld [vmem:[#allocation2 + $0x119] sm:$0xff]
        %s558 = scalar_lea.vmem %s2, 128
        %v559 = vld [vmem:[%s558] sm:$0xff]
        %v560 = vld [vmem:[%s558 + $0x8] sm:$0xff]
        %v561 = vld [vmem:[%s558 + $0x10] sm:$0xff]
        %v562 = vld [vmem:[%s558 + $0x18] sm:$0xff]
        %v563 = vld [vmem:[%s558 + $0x20] sm:$0xff]
        %v564 = vld [vmem:[%s558 + $0x28] sm:$0xff]
        %v565 = vld [vmem:[%s558 + $0x30] sm:$0xff]
        %v566 = vld [vmem:[%s558 + $0x38] sm:$0xff]
        %v567 = vld [vmem:[%s558 + $0x40] sm:$0xff]
        %v568 = vld [vmem:[%s558 + $0x48] sm:$0xff]
        %v569 = vld [vmem:[%s558 + $0x50] sm:$0xff]
        %v570 = vld [vmem:[%s558 + $0x58] sm:$0xff]
        %v571 = vld [vmem:[%s558 + $0x60] sm:$0xff]
        %v572 = vld [vmem:[%s558 + $0x68] sm:$0xff]
        %v573 = vld [vmem:[%s558 + $0x70] sm:$0xff]
        %v574 = vld [vmem:[%s558 + $0x78] sm:$0xff]
        %575 = vmatprep.subr.mxu0 0.0
        %576 = vmatpush1.msra.mxu0 %v574
        %577 = vmatprep.subr.mxu0 0.0
        %578 = vmatpush1.msra.mxu0 %v573
        %579 = vmatprep.subr.mxu0 0.0
        %580 = vmatpush1.msra.mxu0 %v572
        %581 = vmatprep.subr.mxu0 0.0
        %582 = vmatpush1.msra.mxu0 %v571
        %583 = vmatprep.subr.mxu0 0.0
        %584 = vmatpush1.msra.mxu0 %v570
        %585 = vmatprep.subr.mxu0 0.0
        %586 = vmatpush1.msra.mxu0 %v569
        %587 = vmatprep.subr.mxu0 0.0
        %588 = vmatpush1.msra.mxu0 %v568
        %589 = vmatprep.subr.mxu0 0.0
        %590 = vmatpush1.msra.mxu0 %v567
        %591 = vmatprep.subr.mxu0 0.0
        %592 = vmatpush1.msra.mxu0 %v566
        %593 = vmatprep.subr.mxu0 0.0
        %594 = vmatpush1.msra.mxu0 %v565
        %595 = vmatprep.subr.mxu0 0.0
        %596 = vmatpush1.msra.mxu0 %v564
        %597 = vmatprep.subr.mxu0 0.0
        %598 = vmatpush1.msra.mxu0 %v563
        %599 = vmatprep.subr.mxu0 0.0
        %600 = vmatpush1.msra.mxu0 %v562
        %601 = vmatprep.subr.mxu0 0.0
        %602 = vmatpush1.msra.mxu0 %v561
        %603 = vmatprep.subr.mxu0 0.0
        %604 = vmatpush1.msra.mxu0 %v560
        %605 = vmatprep.subr.mxu0 0.0
        %606 = vmatpush1.msra.mxu0 %v559
        %607 = vmatprep.subr.mxu0 0.0
        %608 = vmatpush2.msra.mxu0 0.0
        %609 = vmatprep.subr.mxu0 0.0
        %610 = vmatpush2.msra.mxu0 0.0
        %611 = vmatprep.subr.mxu0 0.0
        %612 = vmatpush2.msra.mxu0 0.0
        %613 = vmatprep.subr.mxu0 0.0
        %614 = vmatpush2.msra.mxu0 0.0
        %615 = vmatprep.subr.mxu0 0.0
        %616 = vmatpush2.msra.mxu0 0.0
        %617 = vmatprep.subr.mxu0 0.0
        %618 = vmatpush2.msra.mxu0 0.0
        %619 = vmatprep.subr.mxu0 0.0
        %620 = vmatpush2.msra.mxu0 0.0
        %621 = vmatprep.subr.mxu0 0.0
        %622 = vmatpush2.msra.mxu0 0.0
        %623 = vmatprep.subr.mxu0 0.0
        %624 = vmatpush2.msra.mxu0 0.0
        %625 = vmatprep.subr.mxu0 0.0
        %626 = vmatpush2.msra.mxu0 0.0
        %627 = vmatprep.subr.mxu0 0.0
        %628 = vmatpush2.msra.mxu0 0.0
        %629 = vmatprep.subr.mxu0 0.0
        %630 = vmatpush2.msra.mxu0 0.0
        %631 = vmatprep.subr.mxu0 0.0
        %632 = vmatpush2.msra.mxu0 0.0
        %633 = vmatprep.subr.mxu0 0.0
        %634 = vmatpush2.msra.mxu0 0.0
        %635 = vmatprep.subr.mxu0 0.0
        %636 = vmatpush2.msra.mxu0 0.0
        %637 = vmatprep.subr.mxu0 0.0
        %638 = vmatpush2.msra.mxu0 0.0
        %639 = vmatprep.mubr.f32.mxu0 0.0
        %640 = vmatmul.mubr.f32.gmra.mxu0 %v522
        %v641 = vpop.f32.mrf.mxu0
        %v642 = vadd.f32 0.0, %v641
        %v643 = vpop.f32.mrf.mxu0
        %644 = vmatprep.mubr.f32.mxu0 0.0
        %645 = vmatmul.mubr.f32.gmra.mxu0 %v523
        %v646 = vpop.f32.mrf.mxu0
        %v647 = vadd.f32 0.0, %v646
        %v648 = vpop.f32.mrf.mxu0
        %649 = vmatprep.mubr.f32.mxu0 0.0
        %650 = vmatmul.mubr.f32.gmra.mxu0 %v524
        %v651 = vpop.f32.mrf.mxu0
        %v652 = vadd.f32 0.0, %v651
        %v653 = vpop.f32.mrf.mxu0
        %654 = vmatprep.mubr.f32.mxu0 0.0
        %655 = vmatmul.mubr.f32.gmra.mxu0 %v525
        %v656 = vpop.f32.mrf.mxu0
        %v657 = vadd.f32 0.0, %v656
        %v658 = vpop.f32.mrf.mxu0
        %659 = vmatprep.mubr.f32.mxu0 0.0
        %660 = vmatmul.mubr.f32.gmra.mxu0 %v526
        %v661 = vpop.f32.mrf.mxu0
        %v662 = vadd.f32 0.0, %v661
        %v663 = vpop.f32.mrf.mxu0
        %664 = vmatprep.mubr.f32.mxu0 0.0
        %665 = vmatmul.mubr.f32.gmra.mxu0 %v527
        %v666 = vpop.f32.mrf.mxu0
        %v667 = vadd.f32 0.0, %v666
        %v668 = vpop.f32.mrf.mxu0
        %669 = vmatprep.mubr.f32.mxu0 0.0
        %670 = vmatmul.mubr.f32.gmra.mxu0 %v528
        %v671 = vpop.f32.mrf.mxu0
        %v672 = vadd.f32 0.0, %v671
        %v673 = vpop.f32.mrf.mxu0
        %674 = vmatprep.mubr.f32.mxu0 0.0
        %675 = vmatmul.mubr.f32.gmra.mxu0 %v529
        %v676 = vpop.f32.mrf.mxu0
        %v677 = vadd.f32 0.0, %v676
        %v678 = vpop.f32.mrf.mxu0
        %679 = vmatprep.mubr.f32.mxu0 0.0
        %680 = vmatmul.mubr.f32.gmra.mxu0 %v530
        %v681 = vpop.f32.mrf.mxu0
        %v682 = vadd.f32 0.0, %v681
        %v683 = vpop.f32.mrf.mxu0
        %684 = vmatprep.mubr.f32.mxu0 0.0
        %685 = vmatmul.mubr.f32.gmra.mxu0 %v531
        %v686 = vpop.f32.mrf.mxu0
        %v687 = vadd.f32 0.0, %v686
        %v688 = vpop.f32.mrf.mxu0
        %689 = vmatprep.mubr.f32.mxu0 0.0
        %690 = vmatmul.mubr.f32.gmra.mxu0 %v532
        %v691 = vpop.f32.mrf.mxu0
        %v692 = vadd.f32 0.0, %v691
        %v693 = vpop.f32.mrf.mxu0
        %694 = vmatprep.mubr.f32.mxu0 0.0
        %695 = vmatmul.mubr.f32.gmra.mxu0 %v533
        %v696 = vpop.f32.mrf.mxu0
        %v697 = vadd.f32 0.0, %v696
        %v698 = vpop.f32.mrf.mxu0
        %699 = vmatprep.mubr.f32.mxu0 0.0
        %700 = vmatmul.mubr.f32.gmra.mxu0 %v534
        %v701 = vpop.f32.mrf.mxu0
        %v702 = vadd.f32 0.0, %v701
        %v703 = vpop.f32.mrf.mxu0
        %704 = vmatprep.mubr.f32.mxu0 0.0
        %705 = vmatmul.mubr.f32.gmra.mxu0 %v535
        %v706 = vpop.f32.mrf.mxu0
        %v707 = vadd.f32 0.0, %v706
        %v708 = vpop.f32.mrf.mxu0
        %709 = vmatprep.mubr.f32.mxu0 0.0
        %710 = vmatmul.mubr.f32.gmra.mxu0 %v536
        %v711 = vpop.f32.mrf.mxu0
        %v712 = vadd.f32 0.0, %v711
        %v713 = vpop.f32.mrf.mxu0
        %714 = vmatprep.mubr.f32.mxu0 0.0
        %715 = vmatmul.mubr.f32.gmra.mxu0 %v537
        %v716 = vpop.f32.mrf.mxu0
        %v717 = vadd.f32 0.0, %v716
        %v718 = vpop.f32.mrf.mxu0
        %719 = vmatprep.mubr.f32.mxu0 0.0
        %720 = vmatmul.mubr.f32.gmra.mxu0 %v538
        %v721 = vpop.f32.mrf.mxu0
        %v722 = vadd.f32 0.0, %v721
        %v723 = vpop.f32.mrf.mxu0
        %724 = vmatprep.mubr.f32.mxu0 0.0
        %725 = vmatmul.mubr.f32.gmra.mxu0 %v539
        %v726 = vpop.f32.mrf.mxu0
        %v727 = vadd.f32 0.0, %v726
        %v728 = vpop.f32.mrf.mxu0
        %729 = vmatprep.mubr.f32.mxu0 0.0
        %730 = vmatmul.mubr.f32.gmra.mxu0 %v540
        %v731 = vpop.f32.mrf.mxu0
        %v732 = vadd.f32 0.0, %v731
        %v733 = vpop.f32.mrf.mxu0
        %734 = vmatprep.mubr.f32.mxu0 0.0
        %735 = vmatmul.mubr.f32.gmra.mxu0 %v541
        %v736 = vpop.f32.mrf.mxu0
        %v737 = vadd.f32 0.0, %v736
        %v738 = vpop.f32.mrf.mxu0
        %739 = vmatprep.mubr.f32.mxu0 0.0
        %740 = vmatmul.mubr.f32.gmra.mxu0 %v542
        %v741 = vpop.f32.mrf.mxu0
        %v742 = vadd.f32 0.0, %v741
        %v743 = vpop.f32.mrf.mxu0
        %744 = vmatprep.mubr.f32.mxu0 0.0
        %745 = vmatmul.mubr.f32.gmra.mxu0 %v543
        %v746 = vpop.f32.mrf.mxu0
        %v747 = vadd.f32 0.0, %v746
        %v748 = vpop.f32.mrf.mxu0
        %749 = vmatprep.mubr.f32.mxu0 0.0
        %750 = vmatmul.mubr.f32.gmra.mxu0 %v544
        %v751 = vpop.f32.mrf.mxu0
        %v752 = vadd.f32 0.0, %v751
        %v753 = vpop.f32.mrf.mxu0
        %754 = vmatprep.mubr.f32.mxu0 0.0
        %755 = vmatmul.mubr.f32.gmra.mxu0 %v545
        %v756 = vpop.f32.mrf.mxu0
        %v757 = vadd.f32 0.0, %v756
        %v758 = vpop.f32.mrf.mxu0
        %759 = vmatprep.mubr.f32.mxu0 0.0
        %760 = vmatmul.mubr.f32.gmra.mxu0 %v546
        %v761 = vpop.f32.mrf.mxu0
        %v762 = vadd.f32 0.0, %v761
        %v763 = vpop.f32.mrf.mxu0
        %764 = vmatprep.mubr.f32.mxu0 0.0
        %765 = vmatmul.mubr.f32.gmra.mxu0 %v547
        %v766 = vpop.f32.mrf.mxu0
        %v767 = vadd.f32 0.0, %v766
        %v768 = vpop.f32.mrf.mxu0
        %769 = vmatprep.mubr.f32.mxu0 0.0
        %770 = vmatmul.mubr.f32.gmra.mxu0 %v548
        %v771 = vpop.f32.mrf.mxu0
        %v772 = vadd.f32 0.0, %v771
        %v773 = vpop.f32.mrf.mxu0
        %774 = vmatprep.mubr.f32.mxu0 0.0
        %775 = vmatmul.mubr.f32.gmra.mxu0 %v549
        %v776 = vpop.f32.mrf.mxu0
        %v777 = vadd.f32 0.0, %v776
        %v778 = vpop.f32.mrf.mxu0
        %779 = vmatprep.mubr.f32.mxu0 0.0
        %780 = vmatmul.mubr.f32.gmra.mxu0 %v550
        %v781 = vpop.f32.mrf.mxu0
        %v782 = vadd.f32 0.0, %v781
        %v783 = vpop.f32.mrf.mxu0
        %784 = vmatprep.mubr.f32.mxu0 0.0
        %785 = vmatmul.mubr.f32.gmra.mxu0 %v551
        %v786 = vpop.f32.mrf.mxu0
        %v787 = vadd.f32 0.0, %v786
        %v788 = vpop.f32.mrf.mxu0
        %789 = vmatprep.mubr.f32.mxu0 0.0
        %790 = vmatmul.mubr.f32.gmra.mxu0 %v552
        %v791 = vpop.f32.mrf.mxu0
        %v792 = vadd.f32 0.0, %v791
        %v793 = vpop.f32.mrf.mxu0
        %794 = vmatprep.mubr.f32.mxu0 0.0
        %795 = vmatmul.mubr.f32.gmra.mxu0 %v553
        %v796 = vpop.f32.mrf.mxu0
        %v797 = vadd.f32 0.0, %v796
        %v798 = vpop.f32.mrf.mxu0
        %799 = vmatprep.mubr.f32.mxu0 0.0
        %800 = vmatmul.mubr.f32.gmra.mxu0 %v554
        %v801 = vpop.f32.mrf.mxu0
        %v802 = vadd.f32 0.0, %v801
        %v803 = vpop.f32.mrf.mxu0
        %804 = vmatprep.mubr.f32.mxu0 0.0
        %805 = vmatmul.mubr.f32.gmra.mxu0 %v555
        %v806 = vpop.f32.mrf.mxu0
        %v807 = vadd.f32 0.0, %v806
        %v808 = vpop.f32.mrf.mxu0
        %809 = vmatprep.mubr.f32.mxu0 0.0
        %810 = vmatmul.mubr.f32.gmra.mxu0 %v556
        %v811 = vpop.f32.mrf.mxu0
        %v812 = vadd.f32 0.0, %v811
        %v813 = vpop.f32.mrf.mxu0
        %814 = vmatprep.mubr.f32.mxu0 0.0
        %815 = vmatmul.mubr.f32.gmra.mxu0 %v557
        %v816 = vpop.f32.mrf.mxu0
        %v817 = vadd.f32 0.0, %v816
        %v818 = vpop.f32.mrf.mxu0
        %819 = vdwg.mxu0
        %820 = vmatprep.subr.mxu0 0.0
        %821 = vmatpush1.msra.mxu0 %v521
        %822 = vmatprep.subr.mxu0 0.0
        %823 = vmatpush1.msra.mxu0 %v520
        %824 = vmatprep.subr.mxu0 0.0
        %825 = vmatpush1.msra.mxu0 %v519
        %826 = vmatprep.subr.mxu0 0.0
        %827 = vmatpush1.msra.mxu0 %v518
        %828 = vmatprep.subr.mxu0 0.0
        %829 = vmatpush1.msra.mxu0 %v517
        %830 = vmatprep.subr.mxu0 0.0
        %831 = vmatpush1.msra.mxu0 %v516
        %832 = vmatprep.subr.mxu0 0.0
        %833 = vmatpush1.msra.mxu0 %v515
        %834 = vmatprep.subr.mxu0 0.0
        %835 = vmatpush1.msra.mxu0 %v514
        %836 = vmatprep.subr.mxu0 0.0
        %837 = vmatpush1.msra.mxu0 %v513
        %838 = vmatprep.subr.mxu0 0.0
        %839 = vmatpush1.msra.mxu0 %v512
        %840 = vmatprep.subr.mxu0 0.0
        %841 = vmatpush1.msra.mxu0 %v511
        %842 = vmatprep.subr.mxu0 0.0
        %843 = vmatpush1.msra.mxu0 %v510
        %844 = vmatprep.subr.mxu0 0.0
        %845 = vmatpush1.msra.mxu0 %v509
        %846 = vmatprep.subr.mxu0 0.0
        %847 = vmatpush1.msra.mxu0 %v508
        %848 = vmatprep.subr.mxu0 0.0
        %849 = vmatpush1.msra.mxu0 %v507
        %850 = vmatprep.subr.mxu0 0.0
        %851 = vmatpush1.msra.mxu0 %v506
        %852 = vmatprep.subr.mxu0 0.0
        %853 = vmatpush2.msra.mxu0 0.0
        %854 = vmatprep.subr.mxu0 0.0
        %855 = vmatpush2.msra.mxu0 0.0
        %856 = vmatprep.subr.mxu0 0.0
        %857 = vmatpush2.msra.mxu0 0.0
        %858 = vmatprep.subr.mxu0 0.0
        %859 = vmatpush2.msra.mxu0 0.0
        %860 = vmatprep.subr.mxu0 0.0
        %861 = vmatpush2.msra.mxu0 0.0
        %862 = vmatprep.subr.mxu0 0.0
        %863 = vmatpush2.msra.mxu0 0.0
        %864 = vmatprep.subr.mxu0 0.0
        %865 = vmatpush2.msra.mxu0 0.0
        %866 = vmatprep.subr.mxu0 0.0
        %867 = vmatpush2.msra.mxu0 0.0
        %868 = vmatprep.subr.mxu0 0.0
        %869 = vmatpush2.msra.mxu0 0.0
        %870 = vmatprep.subr.mxu0 0.0
        %871 = vmatpush2.msra.mxu0 0.0
        %872 = vmatprep.subr.mxu0 0.0
        %873 = vmatpush2.msra.mxu0 0.0
        %874 = vmatprep.subr.mxu0 0.0
        %875 = vmatpush2.msra.mxu0 0.0
        %876 = vmatprep.subr.mxu0 0.0
        %877 = vmatpush2.msra.mxu0 0.0
        %878 = vmatprep.subr.mxu0 0.0
        %879 = vmatpush2.msra.mxu0 0.0
        %880 = vmatprep.subr.mxu0 0.0
        %881 = vmatpush2.msra.mxu0 0.0
        %882 = vmatprep.subr.mxu0 0.0
        %883 = vmatpush2.msra.mxu0 0.0
        %884 = vmatprep.mubr.f32.mxu0 0.0
        %885 = vmatmul.mubr.f32.gmra.mxu0 %v470
        %v886 = vpop.f32.mrf.mxu0
        %v887 = vadd.f32 %v642, %v886
        %v888 = vpop.f32.mrf.mxu0
        %889 = vmatprep.mubr.f32.mxu0 0.0
        %890 = vmatmul.mubr.f32.gmra.mxu0 %v471
        %v891 = vpop.f32.mrf.mxu0
        %v892 = vadd.f32 %v647, %v891
        %v893 = vpop.f32.mrf.mxu0
        %894 = vmatprep.mubr.f32.mxu0 0.0
        %895 = vmatmul.mubr.f32.gmra.mxu0 %v472
        %v896 = vpop.f32.mrf.mxu0
        %v897 = vadd.f32 %v652, %v896
        %v898 = vpop.f32.mrf.mxu0
        %899 = vmatprep.mubr.f32.mxu0 0.0
        %900 = vmatmul.mubr.f32.gmra.mxu0 %v473
        %v901 = vpop.f32.mrf.mxu0
        %v902 = vadd.f32 %v657, %v901
        %v903 = vpop.f32.mrf.mxu0
        %904 = vmatprep.mubr.f32.mxu0 0.0
        %905 = vmatmul.mubr.f32.gmra.mxu0 %v474
        %v906 = vpop.f32.mrf.mxu0
        %v907 = vadd.f32 %v662, %v906
        %v908 = vpop.f32.mrf.mxu0
        %909 = vmatprep.mubr.f32.mxu0 0.0
        %910 = vmatmul.mubr.f32.gmra.mxu0 %v475
        %v911 = vpop.f32.mrf.mxu0
        %v912 = vadd.f32 %v667, %v911
        %v913 = vpop.f32.mrf.mxu0
        %914 = vmatprep.mubr.f32.mxu0 0.0
        %915 = vmatmul.mubr.f32.gmra.mxu0 %v476
        %v916 = vpop.f32.mrf.mxu0
        %v917 = vadd.f32 %v672, %v916
        %v918 = vpop.f32.mrf.mxu0
        %919 = vmatprep.mubr.f32.mxu0 0.0
        %920 = vmatmul.mubr.f32.gmra.mxu0 %v477
        %v921 = vpop.f32.mrf.mxu0
        %v922 = vadd.f32 %v677, %v921
        %v923 = vpop.f32.mrf.mxu0
        %924 = vmatprep.mubr.f32.mxu0 0.0
        %925 = vmatmul.mubr.f32.gmra.mxu0 %v478
        %v926 = vpop.f32.mrf.mxu0
        %v927 = vadd.f32 %v682, %v926
        %v928 = vpop.f32.mrf.mxu0
        %929 = vmatprep.mubr.f32.mxu0 0.0
        %930 = vmatmul.mubr.f32.gmra.mxu0 %v479
        %v931 = vpop.f32.mrf.mxu0
        %v932 = vadd.f32 %v687, %v931
        %v933 = vpop.f32.mrf.mxu0
        %934 = vmatprep.mubr.f32.mxu0 0.0
        %935 = vmatmul.mubr.f32.gmra.mxu0 %v480
        %v936 = vpop.f32.mrf.mxu0
        %v937 = vadd.f32 %v692, %v936
        %v938 = vpop.f32.mrf.mxu0
        %939 = vmatprep.mubr.f32.mxu0 0.0
        %940 = vmatmul.mubr.f32.gmra.mxu0 %v481
        %v941 = vpop.f32.mrf.mxu0
        %v942 = vadd.f32 %v697, %v941
        %v943 = vpop.f32.mrf.mxu0
        %944 = vmatprep.mubr.f32.mxu0 0.0
        %945 = vmatmul.mubr.f32.gmra.mxu0 %v482
        %v946 = vpop.f32.mrf.mxu0
        %v947 = vadd.f32 %v702, %v946
        %v948 = vpop.f32.mrf.mxu0
        %949 = vmatprep.mubr.f32.mxu0 0.0
        %950 = vmatmul.mubr.f32.gmra.mxu0 %v483
        %v951 = vpop.f32.mrf.mxu0
        %v952 = vadd.f32 %v707, %v951
        %v953 = vpop.f32.mrf.mxu0
        %954 = vmatprep.mubr.f32.mxu0 0.0
        %955 = vmatmul.mubr.f32.gmra.mxu0 %v484
        %v956 = vpop.f32.mrf.mxu0
        %v957 = vadd.f32 %v712, %v956
        %v958 = vpop.f32.mrf.mxu0
        %959 = vmatprep.mubr.f32.mxu0 0.0
        %960 = vmatmul.mubr.f32.gmra.mxu0 %v485
        %v961 = vpop.f32.mrf.mxu0
        %v962 = vadd.f32 %v717, %v961
        %v963 = vpop.f32.mrf.mxu0
        %964 = vmatprep.mubr.f32.mxu0 0.0
        %965 = vmatmul.mubr.f32.gmra.mxu0 %v486
        %v966 = vpop.f32.mrf.mxu0
        %v967 = vadd.f32 %v722, %v966
        %v968 = vpop.f32.mrf.mxu0
        %969 = vmatprep.mubr.f32.mxu0 0.0
        %970 = vmatmul.mubr.f32.gmra.mxu0 %v487
        %v971 = vpop.f32.mrf.mxu0
        %v972 = vadd.f32 %v727, %v971
        %v973 = vpop.f32.mrf.mxu0
        %974 = vmatprep.mubr.f32.mxu0 0.0
        %975 = vmatmul.mubr.f32.gmra.mxu0 %v488
        %v976 = vpop.f32.mrf.mxu0
        %v977 = vadd.f32 %v732, %v976
        %v978 = vpop.f32.mrf.mxu0
        %979 = vmatprep.mubr.f32.mxu0 0.0
        %980 = vmatmul.mubr.f32.gmra.mxu0 %v489
        %v981 = vpop.f32.mrf.mxu0
        %v982 = vadd.f32 %v737, %v981
        %v983 = vpop.f32.mrf.mxu0
        %984 = vmatprep.mubr.f32.mxu0 0.0
        %985 = vmatmul.mubr.f32.gmra.mxu0 %v490
        %v986 = vpop.f32.mrf.mxu0
        %v987 = vadd.f32 %v742, %v986
        %v988 = vpop.f32.mrf.mxu0
        %989 = vmatprep.mubr.f32.mxu0 0.0
        %990 = vmatmul.mubr.f32.gmra.mxu0 %v491
        %v991 = vpop.f32.mrf.mxu0
        %v992 = vadd.f32 %v747, %v991
        %v993 = vpop.f32.mrf.mxu0
        %994 = vmatprep.mubr.f32.mxu0 0.0
        %995 = vmatmul.mubr.f32.gmra.mxu0 %v492
        %v996 = vpop.f32.mrf.mxu0
        %v997 = vadd.f32 %v752, %v996
        %v998 = vpop.f32.mrf.mxu0
        %999 = vmatprep.mubr.f32.mxu0 0.0
        %1000 = vmatmul.mubr.f32.gmra.mxu0 %v493
        %v1001 = vpop.f32.mrf.mxu0
        %v1002 = vadd.f32 %v757, %v1001
        %v1003 = vpop.f32.mrf.mxu0
        %1004 = vmatprep.mubr.f32.mxu0 0.0
        %1005 = vmatmul.mubr.f32.gmra.mxu0 %v494
        %v1006 = vpop.f32.mrf.mxu0
        %v1007 = vadd.f32 %v762, %v1006
        %v1008 = vpop.f32.mrf.mxu0
        %1009 = vmatprep.mubr.f32.mxu0 0.0
        %1010 = vmatmul.mubr.f32.gmra.mxu0 %v495
        %v1011 = vpop.f32.mrf.mxu0
        %v1012 = vadd.f32 %v767, %v1011
        %v1013 = vpop.f32.mrf.mxu0
        %1014 = vmatprep.mubr.f32.mxu0 0.0
        %1015 = vmatmul.mubr.f32.gmra.mxu0 %v496
        %v1016 = vpop.f32.mrf.mxu0
        %v1017 = vadd.f32 %v772, %v1016
        %v1018 = vpop.f32.mrf.mxu0
        %1019 = vmatprep.mubr.f32.mxu0 0.0
        %1020 = vmatmul.mubr.f32.gmra.mxu0 %v497
        %v1021 = vpop.f32.mrf.mxu0
        %v1022 = vadd.f32 %v777, %v1021
        %v1023 = vpop.f32.mrf.mxu0
        %1024 = vmatprep.mubr.f32.mxu0 0.0
        %1025 = vmatmul.mubr.f32.gmra.mxu0 %v498
        %v1026 = vpop.f32.mrf.mxu0
        %v1027 = vadd.f32 %v782, %v1026
        %v1028 = vpop.f32.mrf.mxu0
        %1029 = vmatprep.mubr.f32.mxu0 0.0
        %1030 = vmatmul.mubr.f32.gmra.mxu0 %v499
        %v1031 = vpop.f32.mrf.mxu0
        %v1032 = vadd.f32 %v787, %v1031
        %v1033 = vpop.f32.mrf.mxu0
        %1034 = vmatprep.mubr.f32.mxu0 0.0
        %1035 = vmatmul.mubr.f32.gmra.mxu0 %v500
        %v1036 = vpop.f32.mrf.mxu0
        %v1037 = vadd.f32 %v792, %v1036
        %v1038 = vpop.f32.mrf.mxu0
        %1039 = vmatprep.mubr.f32.mxu0 0.0
        %1040 = vmatmul.mubr.f32.gmra.mxu0 %v501
        %v1041 = vpop.f32.mrf.mxu0
        %v1042 = vadd.f32 %v797, %v1041
        %v1043 = vpop.f32.mrf.mxu0
        %1044 = vmatprep.mubr.f32.mxu0 0.0
        %1045 = vmatmul.mubr.f32.gmra.mxu0 %v502
        %v1046 = vpop.f32.mrf.mxu0
        %v1047 = vadd.f32 %v802, %v1046
        %v1048 = vpop.f32.mrf.mxu0
        %1049 = vmatprep.mubr.f32.mxu0 0.0
        %1050 = vmatmul.mubr.f32.gmra.mxu0 %v503
        %v1051 = vpop.f32.mrf.mxu0
        %v1052 = vadd.f32 %v807, %v1051
        %v1053 = vpop.f32.mrf.mxu0
        %1054 = vmatprep.mubr.f32.mxu0 0.0
        %1055 = vmatmul.mubr.f32.gmra.mxu0 %v504
        %v1056 = vpop.f32.mrf.mxu0
        %v1057 = vadd.f32 %v812, %v1056
        %v1058 = vpop.f32.mrf.mxu0
        %1059 = vmatprep.mubr.f32.mxu0 0.0
        %1060 = vmatmul.mubr.f32.gmra.mxu0 %v505
        %v1061 = vpop.f32.mrf.mxu0
        %v1062 = vadd.f32 %v817, %v1061
        %v1063 = vpop.f32.mrf.mxu0
        %1064 = vdwg.mxu0
        %v1065 = vld [vmem:[#allocation2 + $0x2] sm:$0xff]
        %v1066 = vld [vmem:[#allocation2 + $0xa] sm:$0xff]
        %v1067 = vld [vmem:[#allocation2 + $0x12] sm:$0xff]
        %v1068 = vld [vmem:[#allocation2 + $0x1a] sm:$0xff]
        %v1069 = vld [vmem:[#allocation2 + $0x22] sm:$0xff]
        %v1070 = vld [vmem:[#allocation2 + $0x2a] sm:$0xff]
        %v1071 = vld [vmem:[#allocation2 + $0x32] sm:$0xff]
        %v1072 = vld [vmem:[#allocation2 + $0x3a] sm:$0xff]
        %v1073 = vld [vmem:[#allocation2 + $0x42] sm:$0xff]
        %v1074 = vld [vmem:[#allocation2 + $0x4a] sm:$0xff]
        %v1075 = vld [vmem:[#allocation2 + $0x52] sm:$0xff]
        %v1076 = vld [vmem:[#allocation2 + $0x5a] sm:$0xff]
        %v1077 = vld [vmem:[#allocation2 + $0x62] sm:$0xff]
        %v1078 = vld [vmem:[#allocation2 + $0x6a] sm:$0xff]
        %v1079 = vld [vmem:[#allocation2 + $0x72] sm:$0xff]
        %v1080 = vld [vmem:[#allocation2 + $0x7a] sm:$0xff]
        %v1081 = vld [vmem:[#allocation2 + $0x82] sm:$0xff]
        %v1082 = vld [vmem:[#allocation2 + $0x8a] sm:$0xff]
        %v1083 = vld [vmem:[#allocation2 + $0x92] sm:$0xff]
        %v1084 = vld [vmem:[#allocation2 + $0x9a] sm:$0xff]
        %v1085 = vld [vmem:[#allocation2 + $0xa2] sm:$0xff]
        %v1086 = vld [vmem:[#allocation2 + $0xaa] sm:$0xff]
        %v1087 = vld [vmem:[#allocation2 + $0xb2] sm:$0xff]
        %v1088 = vld [vmem:[#allocation2 + $0xba] sm:$0xff]
        %v1089 = vld [vmem:[#allocation2 + $0xc2] sm:$0xff]
        %v1090 = vld [vmem:[#allocation2 + $0xca] sm:$0xff]
        %v1091 = vld [vmem:[#allocation2 + $0xd2] sm:$0xff]
        %v1092 = vld [vmem:[#allocation2 + $0xda] sm:$0xff]
        %v1093 = vld [vmem:[#allocation2 + $0xe2] sm:$0xff]
        %v1094 = vld [vmem:[#allocation2 + $0xea] sm:$0xff]
        %v1095 = vld [vmem:[#allocation2 + $0xf2] sm:$0xff]
        %v1096 = vld [vmem:[#allocation2 + $0xfa] sm:$0xff]
        %v1097 = vld [vmem:[#allocation2 + $0x102] sm:$0xff]
        %v1098 = vld [vmem:[#allocation2 + $0x10a] sm:$0xff]
        %v1099 = vld [vmem:[#allocation2 + $0x112] sm:$0xff]
        %v1100 = vld [vmem:[#allocation2 + $0x11a] sm:$0xff]
        %s1101 = scalar_lea.vmem %s2, 256
        %v1102 = vld [vmem:[%s1101] sm:$0xff]
        %v1103 = vld [vmem:[%s1101 + $0x8] sm:$0xff]
        %v1104 = vld [vmem:[%s1101 + $0x10] sm:$0xff]
        %v1105 = vld [vmem:[%s1101 + $0x18] sm:$0xff]
        %v1106 = vld [vmem:[%s1101 + $0x20] sm:$0xff]
        %v1107 = vld [vmem:[%s1101 + $0x28] sm:$0xff]
        %v1108 = vld [vmem:[%s1101 + $0x30] sm:$0xff]
        %v1109 = vld [vmem:[%s1101 + $0x38] sm:$0xff]
        %v1110 = vld [vmem:[%s1101 + $0x40] sm:$0xff]
        %v1111 = vld [vmem:[%s1101 + $0x48] sm:$0xff]
        %v1112 = vld [vmem:[%s1101 + $0x50] sm:$0xff]
        %v1113 = vld [vmem:[%s1101 + $0x58] sm:$0xff]
        %v1114 = vld [vmem:[%s1101 + $0x60] sm:$0xff]
        %v1115 = vld [vmem:[%s1101 + $0x68] sm:$0xff]
        %v1116 = vld [vmem:[%s1101 + $0x70] sm:$0xff]
        %v1117 = vld [vmem:[%s1101 + $0x78] sm:$0xff]
        %1118 = vmatprep.subr.mxu0 0.0
        %1119 = vmatpush1.msra.mxu0 %v1117
        %1120 = vmatprep.subr.mxu0 0.0
        %1121 = vmatpush1.msra.mxu0 %v1116
        %1122 = vmatprep.subr.mxu0 0.0
        %1123 = vmatpush1.msra.mxu0 %v1115
        %1124 = vmatprep.subr.mxu0 0.0
        %1125 = vmatpush1.msra.mxu0 %v1114
        %1126 = vmatprep.subr.mxu0 0.0
        %1127 = vmatpush1.msra.mxu0 %v1113
        %1128 = vmatprep.subr.mxu0 0.0
        %1129 = vmatpush1.msra.mxu0 %v1112
        %1130 = vmatprep.subr.mxu0 0.0
        %1131 = vmatpush1.msra.mxu0 %v1111
        %1132 = vmatprep.subr.mxu0 0.0
        %1133 = vmatpush1.msra.mxu0 %v1110
        %1134 = vmatprep.subr.mxu0 0.0
        %1135 = vmatpush1.msra.mxu0 %v1109
        %1136 = vmatprep.subr.mxu0 0.0
        %1137 = vmatpush1.msra.mxu0 %v1108
        %1138 = vmatprep.subr.mxu0 0.0
        %1139 = vmatpush1.msra.mxu0 %v1107
        %1140 = vmatprep.subr.mxu0 0.0
        %1141 = vmatpush1.msra.mxu0 %v1106
        %1142 = vmatprep.subr.mxu0 0.0
        %1143 = vmatpush1.msra.mxu0 %v1105
        %1144 = vmatprep.subr.mxu0 0.0
        %1145 = vmatpush1.msra.mxu0 %v1104
        %1146 = vmatprep.subr.mxu0 0.0
        %1147 = vmatpush1.msra.mxu0 %v1103
        %1148 = vmatprep.subr.mxu0 0.0
        %1149 = vmatpush1.msra.mxu0 %v1102
        %1150 = vmatprep.subr.mxu0 0.0
        %1151 = vmatpush2.msra.mxu0 0.0
        %1152 = vmatprep.subr.mxu0 0.0
        %1153 = vmatpush2.msra.mxu0 0.0
        %1154 = vmatprep.subr.mxu0 0.0
        %1155 = vmatpush2.msra.mxu0 0.0
        %1156 = vmatprep.subr.mxu0 0.0
        %1157 = vmatpush2.msra.mxu0 0.0
        %1158 = vmatprep.subr.mxu0 0.0
        %1159 = vmatpush2.msra.mxu0 0.0
        %1160 = vmatprep.subr.mxu0 0.0
        %1161 = vmatpush2.msra.mxu0 0.0
        %1162 = vmatprep.subr.mxu0 0.0
        %1163 = vmatpush2.msra.mxu0 0.0
        %1164 = vmatprep.subr.mxu0 0.0
        %1165 = vmatpush2.msra.mxu0 0.0
        %1166 = vmatprep.subr.mxu0 0.0
        %1167 = vmatpush2.msra.mxu0 0.0
        %1168 = vmatprep.subr.mxu0 0.0
        %1169 = vmatpush2.msra.mxu0 0.0
        %1170 = vmatprep.subr.mxu0 0.0
        %1171 = vmatpush2.msra.mxu0 0.0
        %1172 = vmatprep.subr.mxu0 0.0
        %1173 = vmatpush2.msra.mxu0 0.0
        %1174 = vmatprep.subr.mxu0 0.0
        %1175 = vmatpush2.msra.mxu0 0.0
        %1176 = vmatprep.subr.mxu0 0.0
        %1177 = vmatpush2.msra.mxu0 0.0
        %1178 = vmatprep.subr.mxu0 0.0
        %1179 = vmatpush2.msra.mxu0 0.0
        %1180 = vmatprep.subr.mxu0 0.0
        %1181 = vmatpush2.msra.mxu0 0.0
        %1182 = vmatprep.mubr.f32.mxu0 0.0
        %1183 = vmatmul.mubr.f32.gmra.mxu0 %v1065
        %v1184 = vpop.f32.mrf.mxu0
        %v1185 = vadd.f32 0.0, %v1184
        %v1186 = vpop.f32.mrf.mxu0
        %1187 = vmatprep.mubr.f32.mxu0 0.0
        %1188 = vmatmul.mubr.f32.gmra.mxu0 %v1066
        %v1189 = vpop.f32.mrf.mxu0
        %v1190 = vadd.f32 0.0, %v1189
        %v1191 = vpop.f32.mrf.mxu0
        %1192 = vmatprep.mubr.f32.mxu0 0.0
        %1193 = vmatmul.mubr.f32.gmra.mxu0 %v1067
        %v1194 = vpop.f32.mrf.mxu0
        %v1195 = vadd.f32 0.0, %v1194
        %v1196 = vpop.f32.mrf.mxu0
        %1197 = vmatprep.mubr.f32.mxu0 0.0
        %1198 = vmatmul.mubr.f32.gmra.mxu0 %v1068
        %v1199 = vpop.f32.mrf.mxu0
        %v1200 = vadd.f32 0.0, %v1199
        %v1201 = vpop.f32.mrf.mxu0
        %1202 = vmatprep.mubr.f32.mxu0 0.0
        %1203 = vmatmul.mubr.f32.gmra.mxu0 %v1069
        %v1204 = vpop.f32.mrf.mxu0
        %v1205 = vadd.f32 0.0, %v1204
        %v1206 = vpop.f32.mrf.mxu0
        %1207 = vmatprep.mubr.f32.mxu0 0.0
        %1208 = vmatmul.mubr.f32.gmra.mxu0 %v1070
        %v1209 = vpop.f32.mrf.mxu0
        %v1210 = vadd.f32 0.0, %v1209
        %v1211 = vpop.f32.mrf.mxu0
        %1212 = vmatprep.mubr.f32.mxu0 0.0
        %1213 = vmatmul.mubr.f32.gmra.mxu0 %v1071
        %v1214 = vpop.f32.mrf.mxu0
        %v1215 = vadd.f32 0.0, %v1214
        %v1216 = vpop.f32.mrf.mxu0
        %1217 = vmatprep.mubr.f32.mxu0 0.0
        %1218 = vmatmul.mubr.f32.gmra.mxu0 %v1072
        %v1219 = vpop.f32.mrf.mxu0
        %v1220 = vadd.f32 0.0, %v1219
        %v1221 = vpop.f32.mrf.mxu0
        %1222 = vmatprep.mubr.f32.mxu0 0.0
        %1223 = vmatmul.mubr.f32.gmra.mxu0 %v1073
        %v1224 = vpop.f32.mrf.mxu0
        %v1225 = vadd.f32 0.0, %v1224
        %v1226 = vpop.f32.mrf.mxu0
        %1227 = vmatprep.mubr.f32.mxu0 0.0
        %1228 = vmatmul.mubr.f32.gmra.mxu0 %v1074
        %v1229 = vpop.f32.mrf.mxu0
        %v1230 = vadd.f32 0.0, %v1229
        %v1231 = vpop.f32.mrf.mxu0
        %1232 = vmatprep.mubr.f32.mxu0 0.0
        %1233 = vmatmul.mubr.f32.gmra.mxu0 %v1075
        %v1234 = vpop.f32.mrf.mxu0
        %v1235 = vadd.f32 0.0, %v1234
        %v1236 = vpop.f32.mrf.mxu0
        %1237 = vmatprep.mubr.f32.mxu0 0.0
        %1238 = vmatmul.mubr.f32.gmra.mxu0 %v1076
        %v1239 = vpop.f32.mrf.mxu0
        %v1240 = vadd.f32 0.0, %v1239
        %v1241 = vpop.f32.mrf.mxu0
        %1242 = vmatprep.mubr.f32.mxu0 0.0
        %1243 = vmatmul.mubr.f32.gmra.mxu0 %v1077
        %v1244 = vpop.f32.mrf.mxu0
        %v1245 = vadd.f32 0.0, %v1244
        %v1246 = vpop.f32.mrf.mxu0
        %1247 = vmatprep.mubr.f32.mxu0 0.0
        %1248 = vmatmul.mubr.f32.gmra.mxu0 %v1078
        %v1249 = vpop.f32.mrf.mxu0
        %v1250 = vadd.f32 0.0, %v1249
        %v1251 = vpop.f32.mrf.mxu0
        %1252 = vmatprep.mubr.f32.mxu0 0.0
        %1253 = vmatmul.mubr.f32.gmra.mxu0 %v1079
        %v1254 = vpop.f32.mrf.mxu0
        %v1255 = vadd.f32 0.0, %v1254
        %v1256 = vpop.f32.mrf.mxu0
        %1257 = vmatprep.mubr.f32.mxu0 0.0
        %1258 = vmatmul.mubr.f32.gmra.mxu0 %v1080
        %v1259 = vpop.f32.mrf.mxu0
        %v1260 = vadd.f32 0.0, %v1259
        %v1261 = vpop.f32.mrf.mxu0
        %1262 = vmatprep.mubr.f32.mxu0 0.0
        %1263 = vmatmul.mubr.f32.gmra.mxu0 %v1081
        %v1264 = vpop.f32.mrf.mxu0
        %v1265 = vadd.f32 0.0, %v1264
        %v1266 = vpop.f32.mrf.mxu0
        %1267 = vmatprep.mubr.f32.mxu0 0.0
        %1268 = vmatmul.mubr.f32.gmra.mxu0 %v1082
        %v1269 = vpop.f32.mrf.mxu0
        %v1270 = vadd.f32 0.0, %v1269
        %v1271 = vpop.f32.mrf.mxu0
        %1272 = vmatprep.mubr.f32.mxu0 0.0
        %1273 = vmatmul.mubr.f32.gmra.mxu0 %v1083
        %v1274 = vpop.f32.mrf.mxu0
        %v1275 = vadd.f32 0.0, %v1274
        %v1276 = vpop.f32.mrf.mxu0
        %1277 = vmatprep.mubr.f32.mxu0 0.0
        %1278 = vmatmul.mubr.f32.gmra.mxu0 %v1084
        %v1279 = vpop.f32.mrf.mxu0
        %v1280 = vadd.f32 0.0, %v1279
        %v1281 = vpop.f32.mrf.mxu0
        %1282 = vmatprep.mubr.f32.mxu0 0.0
        %1283 = vmatmul.mubr.f32.gmra.mxu0 %v1085
        %v1284 = vpop.f32.mrf.mxu0
        %v1285 = vadd.f32 0.0, %v1284
        %v1286 = vpop.f32.mrf.mxu0
        %1287 = vmatprep.mubr.f32.mxu0 0.0
        %1288 = vmatmul.mubr.f32.gmra.mxu0 %v1086
        %v1289 = vpop.f32.mrf.mxu0
        %v1290 = vadd.f32 0.0, %v1289
        %v1291 = vpop.f32.mrf.mxu0
        %1292 = vmatprep.mubr.f32.mxu0 0.0
        %1293 = vmatmul.mubr.f32.gmra.mxu0 %v1087
        %v1294 = vpop.f32.mrf.mxu0
        %v1295 = vadd.f32 0.0, %v1294
        %v1296 = vpop.f32.mrf.mxu0
        %1297 = vmatprep.mubr.f32.mxu0 0.0
        %1298 = vmatmul.mubr.f32.gmra.mxu0 %v1088
        %v1299 = vpop.f32.mrf.mxu0
        %v1300 = vadd.f32 0.0, %v1299
        %v1301 = vpop.f32.mrf.mxu0
        %1302 = vmatprep.mubr.f32.mxu0 0.0
        %1303 = vmatmul.mubr.f32.gmra.mxu0 %v1089
        %v1304 = vpop.f32.mrf.mxu0
        %v1305 = vadd.f32 0.0, %v1304
        %v1306 = vpop.f32.mrf.mxu0
        %1307 = vmatprep.mubr.f32.mxu0 0.0
        %1308 = vmatmul.mubr.f32.gmra.mxu0 %v1090
        %v1309 = vpop.f32.mrf.mxu0
        %v1310 = vadd.f32 0.0, %v1309
        %v1311 = vpop.f32.mrf.mxu0
        %1312 = vmatprep.mubr.f32.mxu0 0.0
        %1313 = vmatmul.mubr.f32.gmra.mxu0 %v1091
        %v1314 = vpop.f32.mrf.mxu0
        %v1315 = vadd.f32 0.0, %v1314
        %v1316 = vpop.f32.mrf.mxu0
        %1317 = vmatprep.mubr.f32.mxu0 0.0
        %1318 = vmatmul.mubr.f32.gmra.mxu0 %v1092
        %v1319 = vpop.f32.mrf.mxu0
        %v1320 = vadd.f32 0.0, %v1319
        %v1321 = vpop.f32.mrf.mxu0
        %1322 = vmatprep.mubr.f32.mxu0 0.0
        %1323 = vmatmul.mubr.f32.gmra.mxu0 %v1093
        %v1324 = vpop.f32.mrf.mxu0
        %v1325 = vadd.f32 0.0, %v1324
        %v1326 = vpop.f32.mrf.mxu0
        %1327 = vmatprep.mubr.f32.mxu0 0.0
        %1328 = vmatmul.mubr.f32.gmra.mxu0 %v1094
        %v1329 = vpop.f32.mrf.mxu0
        %v1330 = vadd.f32 0.0, %v1329
        %v1331 = vpop.f32.mrf.mxu0
        %1332 = vmatprep.mubr.f32.mxu0 0.0
        %1333 = vmatmul.mubr.f32.gmra.mxu0 %v1095
        %v1334 = vpop.f32.mrf.mxu0
        %v1335 = vadd.f32 0.0, %v1334
        %v1336 = vpop.f32.mrf.mxu0
        %1337 = vmatprep.mubr.f32.mxu0 0.0
        %1338 = vmatmul.mubr.f32.gmra.mxu0 %v1096
        %v1339 = vpop.f32.mrf.mxu0
        %v1340 = vadd.f32 0.0, %v1339
        %v1341 = vpop.f32.mrf.mxu0
        %1342 = vmatprep.mubr.f32.mxu0 0.0
        %1343 = vmatmul.mubr.f32.gmra.mxu0 %v1097
        %v1344 = vpop.f32.mrf.mxu0
        %v1345 = vadd.f32 0.0, %v1344
        %v1346 = vpop.f32.mrf.mxu0
        %1347 = vmatprep.mubr.f32.mxu0 0.0
        %1348 = vmatmul.mubr.f32.gmra.mxu0 %v1098
        %v1349 = vpop.f32.mrf.mxu0
        %v1350 = vadd.f32 0.0, %v1349
        %v1351 = vpop.f32.mrf.mxu0
        %1352 = vmatprep.mubr.f32.mxu0 0.0
        %1353 = vmatmul.mubr.f32.gmra.mxu0 %v1099
        %v1354 = vpop.f32.mrf.mxu0
        %v1355 = vadd.f32 0.0, %v1354
        %v1356 = vpop.f32.mrf.mxu0
        %1357 = vmatprep.mubr.f32.mxu0 0.0
        %1358 = vmatmul.mubr.f32.gmra.mxu0 %v1100
        %v1359 = vpop.f32.mrf.mxu0
        %v1360 = vadd.f32 0.0, %v1359
        %v1361 = vpop.f32.mrf.mxu0
        %1362 = vdwg.mxu0
        %v1363 = vadd.f32 %v887, %v1185
        %v1364 = vadd.f32 %v892, %v1190
        %v1365 = vadd.f32 %v897, %v1195
        %v1366 = vadd.f32 %v902, %v1200
        %v1367 = vadd.f32 %v907, %v1205
        %v1368 = vadd.f32 %v912, %v1210
        %v1369 = vadd.f32 %v917, %v1215
        %v1370 = vadd.f32 %v922, %v1220
        %v1371 = vadd.f32 %v927, %v1225
        %v1372 = vadd.f32 %v932, %v1230
        %v1373 = vadd.f32 %v937, %v1235
        %v1374 = vadd.f32 %v942, %v1240
        %v1375 = vadd.f32 %v947, %v1245
        %v1376 = vadd.f32 %v952, %v1250
        %v1377 = vadd.f32 %v957, %v1255
        %v1378 = vadd.f32 %v962, %v1260
        %v1379 = vadd.f32 %v967, %v1265
        %v1380 = vadd.f32 %v972, %v1270
        %v1381 = vadd.f32 %v977, %v1275
        %v1382 = vadd.f32 %v982, %v1280
        %v1383 = vadd.f32 %v987, %v1285
        %v1384 = vadd.f32 %v992, %v1290
        %v1385 = vadd.f32 %v997, %v1295
        %v1386 = vadd.f32 %v1002, %v1300
        %v1387 = vadd.f32 %v1007, %v1305
        %v1388 = vadd.f32 %v1012, %v1310
        %v1389 = vadd.f32 %v1017, %v1315
        %v1390 = vadd.f32 %v1022, %v1320
        %v1391 = vadd.f32 %v1027, %v1325
        %v1392 = vadd.f32 %v1032, %v1330
        %v1393 = vadd.f32 %v1037, %v1335
        %v1394 = vadd.f32 %v1042, %v1340
        %v1395 = vadd.f32 %v1047, %v1345
        %v1396 = vadd.f32 %v1052, %v1350
        %v1397 = vadd.f32 %v1057, %v1355
        %v1398 = vadd.f32 %v1062, %v1360
        %v1399 = vld [vmem:[#allocation2 + $0x12] sm:$0xff]
        %v1400 = vld [vmem:[#allocation2 + $0x1a] sm:$0xff]
        %v1401 = vld [vmem:[#allocation2 + $0x22] sm:$0xff]
        %v1402 = vld [vmem:[#allocation2 + $0x2a] sm:$0xff]
        %v1403 = vld [vmem:[#allocation2 + $0x32] sm:$0xff]
        %v1404 = vld [vmem:[#allocation2 + $0x3a] sm:$0xff]
        %v1405 = vld [vmem:[#allocation2 + $0x42] sm:$0xff]
        %v1406 = vld [vmem:[#allocation2 + $0x4a] sm:$0xff]
        %v1407 = vld [vmem:[#allocation2 + $0x52] sm:$0xff]
        %v1408 = vld [vmem:[#allocation2 + $0x5a] sm:$0xff]
        %v1409 = vld [vmem:[#allocation2 + $0x62] sm:$0xff]
        %v1410 = vld [vmem:[#allocation2 + $0x6a] sm:$0xff]
        %v1411 = vld [vmem:[#allocation2 + $0x72] sm:$0xff]
        %v1412 = vld [vmem:[#allocation2 + $0x7a] sm:$0xff]
        %v1413 = vld [vmem:[#allocation2 + $0x82] sm:$0xff]
        %v1414 = vld [vmem:[#allocation2 + $0x8a] sm:$0xff]
        %v1415 = vld [vmem:[#allocation2 + $0x92] sm:$0xff]
        %v1416 = vld [vmem:[#allocation2 + $0x9a] sm:$0xff]
        %v1417 = vld [vmem:[#allocation2 + $0xa2] sm:$0xff]
        %v1418 = vld [vmem:[#allocation2 + $0xaa] sm:$0xff]
        %v1419 = vld [vmem:[#allocation2 + $0xb2] sm:$0xff]
        %v1420 = vld [vmem:[#allocation2 + $0xba] sm:$0xff]
        %v1421 = vld [vmem:[#allocation2 + $0xc2] sm:$0xff]
        %v1422 = vld [vmem:[#allocation2 + $0xca] sm:$0xff]
        %v1423 = vld [vmem:[#allocation2 + $0xd2] sm:$0xff]
        %v1424 = vld [vmem:[#allocation2 + $0xda] sm:$0xff]
        %v1425 = vld [vmem:[#allocation2 + $0xe2] sm:$0xff]
        %v1426 = vld [vmem:[#allocation2 + $0xea] sm:$0xff]
        %v1427 = vld [vmem:[#allocation2 + $0xf2] sm:$0xff]
        %v1428 = vld [vmem:[#allocation2 + $0xfa] sm:$0xff]
        %v1429 = vld [vmem:[#allocation2 + $0x102] sm:$0xff]
        %v1430 = vld [vmem:[#allocation2 + $0x10a] sm:$0xff]
        %v1431 = vld [vmem:[#allocation2 + $0x112] sm:$0xff]
        %v1432 = vld [vmem:[#allocation2 + $0x11a] sm:$0xff]
        %v1433 = vld [vmem:[#allocation2 + $0x122] sm:$0xff]
        %v1434 = vld [vmem:[#allocation2 + $0x12a] sm:$0xff]
        %s1435 = scalar_lea.vmem %s2, 384
        %v1436 = vld [vmem:[%s1435] sm:$0xff]
        %v1437 = vld [vmem:[%s1435 + $0x8] sm:$0xff]
        %v1438 = vld [vmem:[%s1435 + $0x10] sm:$0xff]
        %v1439 = vld [vmem:[%s1435 + $0x18] sm:$0xff]
        %v1440 = vld [vmem:[%s1435 + $0x20] sm:$0xff]
        %v1441 = vld [vmem:[%s1435 + $0x28] sm:$0xff]
        %v1442 = vld [vmem:[%s1435 + $0x30] sm:$0xff]
        %v1443 = vld [vmem:[%s1435 + $0x38] sm:$0xff]
        %v1444 = vld [vmem:[%s1435 + $0x40] sm:$0xff]
        %v1445 = vld [vmem:[%s1435 + $0x48] sm:$0xff]
        %v1446 = vld [vmem:[%s1435 + $0x50] sm:$0xff]
        %v1447 = vld [vmem:[%s1435 + $0x58] sm:$0xff]
        %v1448 = vld [vmem:[%s1435 + $0x60] sm:$0xff]
        %v1449 = vld [vmem:[%s1435 + $0x68] sm:$0xff]
        %v1450 = vld [vmem:[%s1435 + $0x70] sm:$0xff]
        %v1451 = vld [vmem:[%s1435 + $0x78] sm:$0xff]
        %1452 = vmatprep.subr.mxu0 0.0
        %1453 = vmatpush1.msra.mxu0 %v1451
        %1454 = vmatprep.subr.mxu0 0.0
        %1455 = vmatpush1.msra.mxu0 %v1450
        %1456 = vmatprep.subr.mxu0 0.0
        %1457 = vmatpush1.msra.mxu0 %v1449
        %1458 = vmatprep.subr.mxu0 0.0
        %1459 = vmatpush1.msra.mxu0 %v1448
        %1460 = vmatprep.subr.mxu0 0.0
        %1461 = vmatpush1.msra.mxu0 %v1447
        %1462 = vmatprep.subr.mxu0 0.0
        %1463 = vmatpush1.msra.mxu0 %v1446
        %1464 = vmatprep.subr.mxu0 0.0
        %1465 = vmatpush1.msra.mxu0 %v1445
        %1466 = vmatprep.subr.mxu0 0.0
        %1467 = vmatpush1.msra.mxu0 %v1444
        %1468 = vmatprep.subr.mxu0 0.0
        %1469 = vmatpush1.msra.mxu0 %v1443
        %1470 = vmatprep.subr.mxu0 0.0
        %1471 = vmatpush1.msra.mxu0 %v1442
        %1472 = vmatprep.subr.mxu0 0.0
        %1473 = vmatpush1.msra.mxu0 %v1441
        %1474 = vmatprep.subr.mxu0 0.0
        %1475 = vmatpush1.msra.mxu0 %v1440
        %1476 = vmatprep.subr.mxu0 0.0
        %1477 = vmatpush1.msra.mxu0 %v1439
        %1478 = vmatprep.subr.mxu0 0.0
        %1479 = vmatpush1.msra.mxu0 %v1438
        %1480 = vmatprep.subr.mxu0 0.0
        %1481 = vmatpush1.msra.mxu0 %v1437
        %1482 = vmatprep.subr.mxu0 0.0
        %1483 = vmatpush1.msra.mxu0 %v1436
        %1484 = vmatprep.subr.mxu0 0.0
        %1485 = vmatpush2.msra.mxu0 0.0
        %1486 = vmatprep.subr.mxu0 0.0
        %1487 = vmatpush2.msra.mxu0 0.0
        %1488 = vmatprep.subr.mxu0 0.0
        %1489 = vmatpush2.msra.mxu0 0.0
        %1490 = vmatprep.subr.mxu0 0.0
        %1491 = vmatpush2.msra.mxu0 0.0
        %1492 = vmatprep.subr.mxu0 0.0
        %1493 = vmatpush2.msra.mxu0 0.0
        %1494 = vmatprep.subr.mxu0 0.0
        %1495 = vmatpush2.msra.mxu0 0.0
        %1496 = vmatprep.subr.mxu0 0.0
        %1497 = vmatpush2.msra.mxu0 0.0
        %1498 = vmatprep.subr.mxu0 0.0
        %1499 = vmatpush2.msra.mxu0 0.0
        %1500 = vmatprep.subr.mxu0 0.0
        %1501 = vmatpush2.msra.mxu0 0.0
        %1502 = vmatprep.subr.mxu0 0.0
        %1503 = vmatpush2.msra.mxu0 0.0
        %1504 = vmatprep.subr.mxu0 0.0
        %1505 = vmatpush2.msra.mxu0 0.0
        %1506 = vmatprep.subr.mxu0 0.0
        %1507 = vmatpush2.msra.mxu0 0.0
        %1508 = vmatprep.subr.mxu0 0.0
        %1509 = vmatpush2.msra.mxu0 0.0
        %1510 = vmatprep.subr.mxu0 0.0
        %1511 = vmatpush2.msra.mxu0 0.0
        %1512 = vmatprep.subr.mxu0 0.0
        %1513 = vmatpush2.msra.mxu0 0.0
        %1514 = vmatprep.subr.mxu0 0.0
        %1515 = vmatpush2.msra.mxu0 0.0
        %1516 = vmatprep.mubr.f32.mxu0 0.0
        %1517 = vmatmul.mubr.f32.gmra.mxu0 %v1399
        %v1518 = vpop.f32.mrf.mxu0
        %v1519 = vadd.f32 0.0, %v1518
        %v1520 = vpop.f32.mrf.mxu0
        %1521 = vmatprep.mubr.f32.mxu0 0.0
        %1522 = vmatmul.mubr.f32.gmra.mxu0 %v1400
        %v1523 = vpop.f32.mrf.mxu0
        %v1524 = vadd.f32 0.0, %v1523
        %v1525 = vpop.f32.mrf.mxu0
        %1526 = vmatprep.mubr.f32.mxu0 0.0
        %1527 = vmatmul.mubr.f32.gmra.mxu0 %v1401
        %v1528 = vpop.f32.mrf.mxu0
        %v1529 = vadd.f32 0.0, %v1528
        %v1530 = vpop.f32.mrf.mxu0
        %1531 = vmatprep.mubr.f32.mxu0 0.0
        %1532 = vmatmul.mubr.f32.gmra.mxu0 %v1402
        %v1533 = vpop.f32.mrf.mxu0
        %v1534 = vadd.f32 0.0, %v1533
        %v1535 = vpop.f32.mrf.mxu0
        %1536 = vmatprep.mubr.f32.mxu0 0.0
        %1537 = vmatmul.mubr.f32.gmra.mxu0 %v1403
        %v1538 = vpop.f32.mrf.mxu0
        %v1539 = vadd.f32 0.0, %v1538
        %v1540 = vpop.f32.mrf.mxu0
        %1541 = vmatprep.mubr.f32.mxu0 0.0
        %1542 = vmatmul.mubr.f32.gmra.mxu0 %v1404
        %v1543 = vpop.f32.mrf.mxu0
        %v1544 = vadd.f32 0.0, %v1543
        %v1545 = vpop.f32.mrf.mxu0
        %1546 = vmatprep.mubr.f32.mxu0 0.0
        %1547 = vmatmul.mubr.f32.gmra.mxu0 %v1405
        %v1548 = vpop.f32.mrf.mxu0
        %v1549 = vadd.f32 0.0, %v1548
        %v1550 = vpop.f32.mrf.mxu0
        %1551 = vmatprep.mubr.f32.mxu0 0.0
        %1552 = vmatmul.mubr.f32.gmra.mxu0 %v1406
        %v1553 = vpop.f32.mrf.mxu0
        %v1554 = vadd.f32 0.0, %v1553
        %v1555 = vpop.f32.mrf.mxu0
        %1556 = vmatprep.mubr.f32.mxu0 0.0
        %1557 = vmatmul.mubr.f32.gmra.mxu0 %v1407
        %v1558 = vpop.f32.mrf.mxu0
        %v1559 = vadd.f32 0.0, %v1558
        %v1560 = vpop.f32.mrf.mxu0
        %1561 = vmatprep.mubr.f32.mxu0 0.0
        %1562 = vmatmul.mubr.f32.gmra.mxu0 %v1408
        %v1563 = vpop.f32.mrf.mxu0
        %v1564 = vadd.f32 0.0, %v1563
        %v1565 = vpop.f32.mrf.mxu0
        %1566 = vmatprep.mubr.f32.mxu0 0.0
        %1567 = vmatmul.mubr.f32.gmra.mxu0 %v1409
        %v1568 = vpop.f32.mrf.mxu0
        %v1569 = vadd.f32 0.0, %v1568
        %v1570 = vpop.f32.mrf.mxu0
        %1571 = vmatprep.mubr.f32.mxu0 0.0
        %1572 = vmatmul.mubr.f32.gmra.mxu0 %v1410
        %v1573 = vpop.f32.mrf.mxu0
        %v1574 = vadd.f32 0.0, %v1573
        %v1575 = vpop.f32.mrf.mxu0
        %1576 = vmatprep.mubr.f32.mxu0 0.0
        %1577 = vmatmul.mubr.f32.gmra.mxu0 %v1411
        %v1578 = vpop.f32.mrf.mxu0
        %v1579 = vadd.f32 0.0, %v1578
        %v1580 = vpop.f32.mrf.mxu0
        %1581 = vmatprep.mubr.f32.mxu0 0.0
        %1582 = vmatmul.mubr.f32.gmra.mxu0 %v1412
        %v1583 = vpop.f32.mrf.mxu0
        %v1584 = vadd.f32 0.0, %v1583
        %v1585 = vpop.f32.mrf.mxu0
        %1586 = vmatprep.mubr.f32.mxu0 0.0
        %1587 = vmatmul.mubr.f32.gmra.mxu0 %v1413
        %v1588 = vpop.f32.mrf.mxu0
        %v1589 = vadd.f32 0.0, %v1588
        %v1590 = vpop.f32.mrf.mxu0
        %1591 = vmatprep.mubr.f32.mxu0 0.0
        %1592 = vmatmul.mubr.f32.gmra.mxu0 %v1414
        %v1593 = vpop.f32.mrf.mxu0
        %v1594 = vadd.f32 0.0, %v1593
        %v1595 = vpop.f32.mrf.mxu0
        %1596 = vmatprep.mubr.f32.mxu0 0.0
        %1597 = vmatmul.mubr.f32.gmra.mxu0 %v1415
        %v1598 = vpop.f32.mrf.mxu0
        %v1599 = vadd.f32 0.0, %v1598
        %v1600 = vpop.f32.mrf.mxu0
        %1601 = vmatprep.mubr.f32.mxu0 0.0
        %1602 = vmatmul.mubr.f32.gmra.mxu0 %v1416
        %v1603 = vpop.f32.mrf.mxu0
        %v1604 = vadd.f32 0.0, %v1603
        %v1605 = vpop.f32.mrf.mxu0
        %1606 = vmatprep.mubr.f32.mxu0 0.0
        %1607 = vmatmul.mubr.f32.gmra.mxu0 %v1417
        %v1608 = vpop.f32.mrf.mxu0
        %v1609 = vadd.f32 0.0, %v1608
        %v1610 = vpop.f32.mrf.mxu0
        %1611 = vmatprep.mubr.f32.mxu0 0.0
        %1612 = vmatmul.mubr.f32.gmra.mxu0 %v1418
        %v1613 = vpop.f32.mrf.mxu0
        %v1614 = vadd.f32 0.0, %v1613
        %v1615 = vpop.f32.mrf.mxu0
        %1616 = vmatprep.mubr.f32.mxu0 0.0
        %1617 = vmatmul.mubr.f32.gmra.mxu0 %v1419
        %v1618 = vpop.f32.mrf.mxu0
        %v1619 = vadd.f32 0.0, %v1618
        %v1620 = vpop.f32.mrf.mxu0
        %1621 = vmatprep.mubr.f32.mxu0 0.0
        %1622 = vmatmul.mubr.f32.gmra.mxu0 %v1420
        %v1623 = vpop.f32.mrf.mxu0
        %v1624 = vadd.f32 0.0, %v1623
        %v1625 = vpop.f32.mrf.mxu0
        %1626 = vmatprep.mubr.f32.mxu0 0.0
        %1627 = vmatmul.mubr.f32.gmra.mxu0 %v1421
        %v1628 = vpop.f32.mrf.mxu0
        %v1629 = vadd.f32 0.0, %v1628
        %v1630 = vpop.f32.mrf.mxu0
        %1631 = vmatprep.mubr.f32.mxu0 0.0
        %1632 = vmatmul.mubr.f32.gmra.mxu0 %v1422
        %v1633 = vpop.f32.mrf.mxu0
        %v1634 = vadd.f32 0.0, %v1633
        %v1635 = vpop.f32.mrf.mxu0
        %1636 = vmatprep.mubr.f32.mxu0 0.0
        %1637 = vmatmul.mubr.f32.gmra.mxu0 %v1423
        %v1638 = vpop.f32.mrf.mxu0
        %v1639 = vadd.f32 0.0, %v1638
        %v1640 = vpop.f32.mrf.mxu0
        %1641 = vmatprep.mubr.f32.mxu0 0.0
        %1642 = vmatmul.mubr.f32.gmra.mxu0 %v1424
        %v1643 = vpop.f32.mrf.mxu0
        %v1644 = vadd.f32 0.0, %v1643
        %v1645 = vpop.f32.mrf.mxu0
        %1646 = vmatprep.mubr.f32.mxu0 0.0
        %1647 = vmatmul.mubr.f32.gmra.mxu0 %v1425
        %v1648 = vpop.f32.mrf.mxu0
        %v1649 = vadd.f32 0.0, %v1648
        %v1650 = vpop.f32.mrf.mxu0
        %1651 = vmatprep.mubr.f32.mxu0 0.0
        %1652 = vmatmul.mubr.f32.gmra.mxu0 %v1426
        %v1653 = vpop.f32.mrf.mxu0
        %v1654 = vadd.f32 0.0, %v1653
        %v1655 = vpop.f32.mrf.mxu0
        %1656 = vmatprep.mubr.f32.mxu0 0.0
        %1657 = vmatmul.mubr.f32.gmra.mxu0 %v1427
        %v1658 = vpop.f32.mrf.mxu0
        %v1659 = vadd.f32 0.0, %v1658
        %v1660 = vpop.f32.mrf.mxu0
        %1661 = vmatprep.mubr.f32.mxu0 0.0
        %1662 = vmatmul.mubr.f32.gmra.mxu0 %v1428
        %v1663 = vpop.f32.mrf.mxu0
        %v1664 = vadd.f32 0.0, %v1663
        %v1665 = vpop.f32.mrf.mxu0
        %1666 = vmatprep.mubr.f32.mxu0 0.0
        %1667 = vmatmul.mubr.f32.gmra.mxu0 %v1429
        %v1668 = vpop.f32.mrf.mxu0
        %v1669 = vadd.f32 0.0, %v1668
        %v1670 = vpop.f32.mrf.mxu0
        %1671 = vmatprep.mubr.f32.mxu0 0.0
        %1672 = vmatmul.mubr.f32.gmra.mxu0 %v1430
        %v1673 = vpop.f32.mrf.mxu0
        %v1674 = vadd.f32 0.0, %v1673
        %v1675 = vpop.f32.mrf.mxu0
        %1676 = vmatprep.mubr.f32.mxu0 0.0
        %1677 = vmatmul.mubr.f32.gmra.mxu0 %v1431
        %v1678 = vpop.f32.mrf.mxu0
        %v1679 = vadd.f32 0.0, %v1678
        %v1680 = vpop.f32.mrf.mxu0
        %1681 = vmatprep.mubr.f32.mxu0 0.0
        %1682 = vmatmul.mubr.f32.gmra.mxu0 %v1432
        %v1683 = vpop.f32.mrf.mxu0
        %v1684 = vadd.f32 0.0, %v1683
        %v1685 = vpop.f32.mrf.mxu0
        %1686 = vmatprep.mubr.f32.mxu0 0.0
        %1687 = vmatmul.mubr.f32.gmra.mxu0 %v1433
        %v1688 = vpop.f32.mrf.mxu0
        %v1689 = vadd.f32 0.0, %v1688
        %v1690 = vpop.f32.mrf.mxu0
        %1691 = vmatprep.mubr.f32.mxu0 0.0
        %1692 = vmatmul.mubr.f32.gmra.mxu0 %v1434
        %v1693 = vpop.f32.mrf.mxu0
        %v1694 = vadd.f32 0.0, %v1693
        %v1695 = vpop.f32.mrf.mxu0
        %1696 = vdwg.mxu0
        %v1697 = vadd.f32 %v1363, %v1519
        %v1698 = vadd.f32 %v1364, %v1524
        %v1699 = vadd.f32 %v1365, %v1529
        %v1700 = vadd.f32 %v1366, %v1534
        %v1701 = vadd.f32 %v1367, %v1539
        %v1702 = vadd.f32 %v1368, %v1544
        %v1703 = vadd.f32 %v1369, %v1549
        %v1704 = vadd.f32 %v1370, %v1554
        %v1705 = vadd.f32 %v1371, %v1559
        %v1706 = vadd.f32 %v1372, %v1564
        %v1707 = vadd.f32 %v1373, %v1569
        %v1708 = vadd.f32 %v1374, %v1574
        %v1709 = vadd.f32 %v1375, %v1579
        %v1710 = vadd.f32 %v1376, %v1584
        %v1711 = vadd.f32 %v1377, %v1589
        %v1712 = vadd.f32 %v1378, %v1594
        %v1713 = vadd.f32 %v1379, %v1599
        %v1714 = vadd.f32 %v1380, %v1604
        %v1715 = vadd.f32 %v1381, %v1609
        %v1716 = vadd.f32 %v1382, %v1614
        %v1717 = vadd.f32 %v1383, %v1619
        %v1718 = vadd.f32 %v1384, %v1624
        %v1719 = vadd.f32 %v1385, %v1629
        %v1720 = vadd.f32 %v1386, %v1634
        %v1721 = vadd.f32 %v1387, %v1639
        %v1722 = vadd.f32 %v1388, %v1644
        %v1723 = vadd.f32 %v1389, %v1649
        %v1724 = vadd.f32 %v1390, %v1654
        %v1725 = vadd.f32 %v1391, %v1659
        %v1726 = vadd.f32 %v1392, %v1664
        %v1727 = vadd.f32 %v1393, %v1669
        %v1728 = vadd.f32 %v1394, %v1674
        %v1729 = vadd.f32 %v1395, %v1679
        %v1730 = vadd.f32 %v1396, %v1684
        %v1731 = vadd.f32 %v1397, %v1689
        %v1732 = vadd.f32 %v1398, %v1694
        %v1733 = vld [vmem:[#allocation2 + $0x13] sm:$0xff]
        %v1734 = vld [vmem:[#allocation2 + $0x1b] sm:$0xff]
        %v1735 = vld [vmem:[#allocation2 + $0x23] sm:$0xff]
        %v1736 = vld [vmem:[#allocation2 + $0x2b] sm:$0xff]
        %v1737 = vld [vmem:[#allocation2 + $0x33] sm:$0xff]
        %v1738 = vld [vmem:[#allocation2 + $0x3b] sm:$0xff]
        %v1739 = vld [vmem:[#allocation2 + $0x43] sm:$0xff]
        %v1740 = vld [vmem:[#allocation2 + $0x4b] sm:$0xff]
        %v1741 = vld [vmem:[#allocation2 + $0x53] sm:$0xff]
        %v1742 = vld [vmem:[#allocation2 + $0x5b] sm:$0xff]
        %v1743 = vld [vmem:[#allocation2 + $0x63] sm:$0xff]
        %v1744 = vld [vmem:[#allocation2 + $0x6b] sm:$0xff]
        %v1745 = vld [vmem:[#allocation2 + $0x73] sm:$0xff]
        %v1746 = vld [vmem:[#allocation2 + $0x7b] sm:$0xff]
        %v1747 = vld [vmem:[#allocation2 + $0x83] sm:$0xff]
        %v1748 = vld [vmem:[#allocation2 + $0x8b] sm:$0xff]
        %v1749 = vld [vmem:[#allocation2 + $0x93] sm:$0xff]
        %v1750 = vld [vmem:[#allocation2 + $0x9b] sm:$0xff]
        %v1751 = vld [vmem:[#allocation2 + $0xa3] sm:$0xff]
        %v1752 = vld [vmem:[#allocation2 + $0xab] sm:$0xff]
        %v1753 = vld [vmem:[#allocation2 + $0xb3] sm:$0xff]
        %v1754 = vld [vmem:[#allocation2 + $0xbb] sm:$0xff]
        %v1755 = vld [vmem:[#allocation2 + $0xc3] sm:$0xff]
        %v1756 = vld [vmem:[#allocation2 + $0xcb] sm:$0xff]
        %v1757 = vld [vmem:[#allocation2 + $0xd3] sm:$0xff]
        %v1758 = vld [vmem:[#allocation2 + $0xdb] sm:$0xff]
        %v1759 = vld [vmem:[#allocation2 + $0xe3] sm:$0xff]
        %v1760 = vld [vmem:[#allocation2 + $0xeb] sm:$0xff]
        %v1761 = vld [vmem:[#allocation2 + $0xf3] sm:$0xff]
        %v1762 = vld [vmem:[#allocation2 + $0xfb] sm:$0xff]
        %v1763 = vld [vmem:[#allocation2 + $0x103] sm:$0xff]
        %v1764 = vld [vmem:[#allocation2 + $0x10b] sm:$0xff]
        %v1765 = vld [vmem:[#allocation2 + $0x113] sm:$0xff]
        %v1766 = vld [vmem:[#allocation2 + $0x11b] sm:$0xff]
        %v1767 = vld [vmem:[#allocation2 + $0x123] sm:$0xff]
        %v1768 = vld [vmem:[#allocation2 + $0x12b] sm:$0xff]
        %s1769 = scalar_lea.vmem %s2, 512
        %v1770 = vld [vmem:[%s1769] sm:$0xff]
        %v1771 = vld [vmem:[%s1769 + $0x8] sm:$0xff]
        %v1772 = vld [vmem:[%s1769 + $0x10] sm:$0xff]
        %v1773 = vld [vmem:[%s1769 + $0x18] sm:$0xff]
        %v1774 = vld [vmem:[%s1769 + $0x20] sm:$0xff]
        %v1775 = vld [vmem:[%s1769 + $0x28] sm:$0xff]
        %v1776 = vld [vmem:[%s1769 + $0x30] sm:$0xff]
        %v1777 = vld [vmem:[%s1769 + $0x38] sm:$0xff]
        %v1778 = vld [vmem:[%s1769 + $0x40] sm:$0xff]
        %v1779 = vld [vmem:[%s1769 + $0x48] sm:$0xff]
        %v1780 = vld [vmem:[%s1769 + $0x50] sm:$0xff]
        %v1781 = vld [vmem:[%s1769 + $0x58] sm:$0xff]
        %v1782 = vld [vmem:[%s1769 + $0x60] sm:$0xff]
        %v1783 = vld [vmem:[%s1769 + $0x68] sm:$0xff]
        %v1784 = vld [vmem:[%s1769 + $0x70] sm:$0xff]
        %v1785 = vld [vmem:[%s1769 + $0x78] sm:$0xff]
        %1786 = vmatprep.subr.mxu0 0.0
        %1787 = vmatpush1.msra.mxu0 %v1785
        %1788 = vmatprep.subr.mxu0 0.0
        %1789 = vmatpush1.msra.mxu0 %v1784
        %1790 = vmatprep.subr.mxu0 0.0
        %1791 = vmatpush1.msra.mxu0 %v1783
        %1792 = vmatprep.subr.mxu0 0.0
        %1793 = vmatpush1.msra.mxu0 %v1782
        %1794 = vmatprep.subr.mxu0 0.0
        %1795 = vmatpush1.msra.mxu0 %v1781
        %1796 = vmatprep.subr.mxu0 0.0
        %1797 = vmatpush1.msra.mxu0 %v1780
        %1798 = vmatprep.subr.mxu0 0.0
        %1799 = vmatpush1.msra.mxu0 %v1779
        %1800 = vmatprep.subr.mxu0 0.0
        %1801 = vmatpush1.msra.mxu0 %v1778
        %1802 = vmatprep.subr.mxu0 0.0
        %1803 = vmatpush1.msra.mxu0 %v1777
        %1804 = vmatprep.subr.mxu0 0.0
        %1805 = vmatpush1.msra.mxu0 %v1776
        %1806 = vmatprep.subr.mxu0 0.0
        %1807 = vmatpush1.msra.mxu0 %v1775
        %1808 = vmatprep.subr.mxu0 0.0
        %1809 = vmatpush1.msra.mxu0 %v1774
        %1810 = vmatprep.subr.mxu0 0.0
        %1811 = vmatpush1.msra.mxu0 %v1773
        %1812 = vmatprep.subr.mxu0 0.0
        %1813 = vmatpush1.msra.mxu0 %v1772
        %1814 = vmatprep.subr.mxu0 0.0
        %1815 = vmatpush1.msra.mxu0 %v1771
        %1816 = vmatprep.subr.mxu0 0.0
        %1817 = vmatpush1.msra.mxu0 %v1770
        %1818 = vmatprep.subr.mxu0 0.0
        %1819 = vmatpush2.msra.mxu0 0.0
        %1820 = vmatprep.subr.mxu0 0.0
        %1821 = vmatpush2.msra.mxu0 0.0
        %1822 = vmatprep.subr.mxu0 0.0
        %1823 = vmatpush2.msra.mxu0 0.0
        %1824 = vmatprep.subr.mxu0 0.0
        %1825 = vmatpush2.msra.mxu0 0.0
        %1826 = vmatprep.subr.mxu0 0.0
        %1827 = vmatpush2.msra.mxu0 0.0
        %1828 = vmatprep.subr.mxu0 0.0
        %1829 = vmatpush2.msra.mxu0 0.0
        %1830 = vmatprep.subr.mxu0 0.0
        %1831 = vmatpush2.msra.mxu0 0.0
        %1832 = vmatprep.subr.mxu0 0.0
        %1833 = vmatpush2.msra.mxu0 0.0
        %1834 = vmatprep.subr.mxu0 0.0
        %1835 = vmatpush2.msra.mxu0 0.0
        %1836 = vmatprep.subr.mxu0 0.0
        %1837 = vmatpush2.msra.mxu0 0.0
        %1838 = vmatprep.subr.mxu0 0.0
        %1839 = vmatpush2.msra.mxu0 0.0
        %1840 = vmatprep.subr.mxu0 0.0
        %1841 = vmatpush2.msra.mxu0 0.0
        %1842 = vmatprep.subr.mxu0 0.0
        %1843 = vmatpush2.msra.mxu0 0.0
        %1844 = vmatprep.subr.mxu0 0.0
        %1845 = vmatpush2.msra.mxu0 0.0
        %1846 = vmatprep.subr.mxu0 0.0
        %1847 = vmatpush2.msra.mxu0 0.0
        %1848 = vmatprep.subr.mxu0 0.0
        %1849 = vmatpush2.msra.mxu0 0.0
        %1850 = vmatprep.mubr.f32.mxu0 0.0
        %1851 = vmatmul.mubr.f32.gmra.mxu0 %v1733
        %v1852 = vpop.f32.mrf.mxu0
        %v1853 = vadd.f32 0.0, %v1852
        %v1854 = vpop.f32.mrf.mxu0
        %1855 = vmatprep.mubr.f32.mxu0 0.0
        %1856 = vmatmul.mubr.f32.gmra.mxu0 %v1734
        %v1857 = vpop.f32.mrf.mxu0
        %v1858 = vadd.f32 0.0, %v1857
        %v1859 = vpop.f32.mrf.mxu0
        %1860 = vmatprep.mubr.f32.mxu0 0.0
        %1861 = vmatmul.mubr.f32.gmra.mxu0 %v1735
        %v1862 = vpop.f32.mrf.mxu0
        %v1863 = vadd.f32 0.0, %v1862
        %v1864 = vpop.f32.mrf.mxu0
        %1865 = vmatprep.mubr.f32.mxu0 0.0
        %1866 = vmatmul.mubr.f32.gmra.mxu0 %v1736
        %v1867 = vpop.f32.mrf.mxu0
        %v1868 = vadd.f32 0.0, %v1867
        %v1869 = vpop.f32.mrf.mxu0
        %1870 = vmatprep.mubr.f32.mxu0 0.0
        %1871 = vmatmul.mubr.f32.gmra.mxu0 %v1737
        %v1872 = vpop.f32.mrf.mxu0
        %v1873 = vadd.f32 0.0, %v1872
        %v1874 = vpop.f32.mrf.mxu0
        %1875 = vmatprep.mubr.f32.mxu0 0.0
        %1876 = vmatmul.mubr.f32.gmra.mxu0 %v1738
        %v1877 = vpop.f32.mrf.mxu0
        %v1878 = vadd.f32 0.0, %v1877
        %v1879 = vpop.f32.mrf.mxu0
        %1880 = vmatprep.mubr.f32.mxu0 0.0
        %1881 = vmatmul.mubr.f32.gmra.mxu0 %v1739
        %v1882 = vpop.f32.mrf.mxu0
        %v1883 = vadd.f32 0.0, %v1882
        %v1884 = vpop.f32.mrf.mxu0
        %1885 = vmatprep.mubr.f32.mxu0 0.0
        %1886 = vmatmul.mubr.f32.gmra.mxu0 %v1740
        %v1887 = vpop.f32.mrf.mxu0
        %v1888 = vadd.f32 0.0, %v1887
        %v1889 = vpop.f32.mrf.mxu0
        %1890 = vmatprep.mubr.f32.mxu0 0.0
        %1891 = vmatmul.mubr.f32.gmra.mxu0 %v1741
        %v1892 = vpop.f32.mrf.mxu0
        %v1893 = vadd.f32 0.0, %v1892
        %v1894 = vpop.f32.mrf.mxu0
        %1895 = vmatprep.mubr.f32.mxu0 0.0
        %1896 = vmatmul.mubr.f32.gmra.mxu0 %v1742
        %v1897 = vpop.f32.mrf.mxu0
        %v1898 = vadd.f32 0.0, %v1897
        %v1899 = vpop.f32.mrf.mxu0
        %1900 = vmatprep.mubr.f32.mxu0 0.0
        %1901 = vmatmul.mubr.f32.gmra.mxu0 %v1743
        %v1902 = vpop.f32.mrf.mxu0
        %v1903 = vadd.f32 0.0, %v1902
        %v1904 = vpop.f32.mrf.mxu0
        %1905 = vmatprep.mubr.f32.mxu0 0.0
        %1906 = vmatmul.mubr.f32.gmra.mxu0 %v1744
        %v1907 = vpop.f32.mrf.mxu0
        %v1908 = vadd.f32 0.0, %v1907
        %v1909 = vpop.f32.mrf.mxu0
        %1910 = vmatprep.mubr.f32.mxu0 0.0
        %1911 = vmatmul.mubr.f32.gmra.mxu0 %v1745
        %v1912 = vpop.f32.mrf.mxu0
        %v1913 = vadd.f32 0.0, %v1912
        %v1914 = vpop.f32.mrf.mxu0
        %1915 = vmatprep.mubr.f32.mxu0 0.0
        %1916 = vmatmul.mubr.f32.gmra.mxu0 %v1746
        %v1917 = vpop.f32.mrf.mxu0
        %v1918 = vadd.f32 0.0, %v1917
        %v1919 = vpop.f32.mrf.mxu0
        %1920 = vmatprep.mubr.f32.mxu0 0.0
        %1921 = vmatmul.mubr.f32.gmra.mxu0 %v1747
        %v1922 = vpop.f32.mrf.mxu0
        %v1923 = vadd.f32 0.0, %v1922
        %v1924 = vpop.f32.mrf.mxu0
        %1925 = vmatprep.mubr.f32.mxu0 0.0
        %1926 = vmatmul.mubr.f32.gmra.mxu0 %v1748
        %v1927 = vpop.f32.mrf.mxu0
        %v1928 = vadd.f32 0.0, %v1927
        %v1929 = vpop.f32.mrf.mxu0
        %1930 = vmatprep.mubr.f32.mxu0 0.0
        %1931 = vmatmul.mubr.f32.gmra.mxu0 %v1749
        %v1932 = vpop.f32.mrf.mxu0
        %v1933 = vadd.f32 0.0, %v1932
        %v1934 = vpop.f32.mrf.mxu0
        %1935 = vmatprep.mubr.f32.mxu0 0.0
        %1936 = vmatmul.mubr.f32.gmra.mxu0 %v1750
        %v1937 = vpop.f32.mrf.mxu0
        %v1938 = vadd.f32 0.0, %v1937
        %v1939 = vpop.f32.mrf.mxu0
        %1940 = vmatprep.mubr.f32.mxu0 0.0
        %1941 = vmatmul.mubr.f32.gmra.mxu0 %v1751
        %v1942 = vpop.f32.mrf.mxu0
        %v1943 = vadd.f32 0.0, %v1942
        %v1944 = vpop.f32.mrf.mxu0
        %1945 = vmatprep.mubr.f32.mxu0 0.0
        %1946 = vmatmul.mubr.f32.gmra.mxu0 %v1752
        %v1947 = vpop.f32.mrf.mxu0
        %v1948 = vadd.f32 0.0, %v1947
        %v1949 = vpop.f32.mrf.mxu0
        %1950 = vmatprep.mubr.f32.mxu0 0.0
        %1951 = vmatmul.mubr.f32.gmra.mxu0 %v1753
        %v1952 = vpop.f32.mrf.mxu0
        %v1953 = vadd.f32 0.0, %v1952
        %v1954 = vpop.f32.mrf.mxu0
        %1955 = vmatprep.mubr.f32.mxu0 0.0
        %1956 = vmatmul.mubr.f32.gmra.mxu0 %v1754
        %v1957 = vpop.f32.mrf.mxu0
        %v1958 = vadd.f32 0.0, %v1957
        %v1959 = vpop.f32.mrf.mxu0
        %1960 = vmatprep.mubr.f32.mxu0 0.0
        %1961 = vmatmul.mubr.f32.gmra.mxu0 %v1755
        %v1962 = vpop.f32.mrf.mxu0
        %v1963 = vadd.f32 0.0, %v1962
        %v1964 = vpop.f32.mrf.mxu0
        %1965 = vmatprep.mubr.f32.mxu0 0.0
        %1966 = vmatmul.mubr.f32.gmra.mxu0 %v1756
        %v1967 = vpop.f32.mrf.mxu0
        %v1968 = vadd.f32 0.0, %v1967
        %v1969 = vpop.f32.mrf.mxu0
        %1970 = vmatprep.mubr.f32.mxu0 0.0
        %1971 = vmatmul.mubr.f32.gmra.mxu0 %v1757
        %v1972 = vpop.f32.mrf.mxu0
        %v1973 = vadd.f32 0.0, %v1972
        %v1974 = vpop.f32.mrf.mxu0
        %1975 = vmatprep.mubr.f32.mxu0 0.0
        %1976 = vmatmul.mubr.f32.gmra.mxu0 %v1758
        %v1977 = vpop.f32.mrf.mxu0
        %v1978 = vadd.f32 0.0, %v1977
        %v1979 = vpop.f32.mrf.mxu0
        %1980 = vmatprep.mubr.f32.mxu0 0.0
        %1981 = vmatmul.mubr.f32.gmra.mxu0 %v1759
        %v1982 = vpop.f32.mrf.mxu0
        %v1983 = vadd.f32 0.0, %v1982
        %v1984 = vpop.f32.mrf.mxu0
        %1985 = vmatprep.mubr.f32.mxu0 0.0
        %1986 = vmatmul.mubr.f32.gmra.mxu0 %v1760
        %v1987 = vpop.f32.mrf.mxu0
        %v1988 = vadd.f32 0.0, %v1987
        %v1989 = vpop.f32.mrf.mxu0
        %1990 = vmatprep.mubr.f32.mxu0 0.0
        %1991 = vmatmul.mubr.f32.gmra.mxu0 %v1761
        %v1992 = vpop.f32.mrf.mxu0
        %v1993 = vadd.f32 0.0, %v1992
        %v1994 = vpop.f32.mrf.mxu0
        %1995 = vmatprep.mubr.f32.mxu0 0.0
        %1996 = vmatmul.mubr.f32.gmra.mxu0 %v1762
        %v1997 = vpop.f32.mrf.mxu0
        %v1998 = vadd.f32 0.0, %v1997
        %v1999 = vpop.f32.mrf.mxu0
        %2000 = vmatprep.mubr.f32.mxu0 0.0
        %2001 = vmatmul.mubr.f32.gmra.mxu0 %v1763
        %v2002 = vpop.f32.mrf.mxu0
        %v2003 = vadd.f32 0.0, %v2002
        %v2004 = vpop.f32.mrf.mxu0
        %2005 = vmatprep.mubr.f32.mxu0 0.0
        %2006 = vmatmul.mubr.f32.gmra.mxu0 %v1764
        %v2007 = vpop.f32.mrf.mxu0
        %v2008 = vadd.f32 0.0, %v2007
        %v2009 = vpop.f32.mrf.mxu0
        %2010 = vmatprep.mubr.f32.mxu0 0.0
        %2011 = vmatmul.mubr.f32.gmra.mxu0 %v1765
        %v2012 = vpop.f32.mrf.mxu0
        %v2013 = vadd.f32 0.0, %v2012
        %v2014 = vpop.f32.mrf.mxu0
        %2015 = vmatprep.mubr.f32.mxu0 0.0
        %2016 = vmatmul.mubr.f32.gmra.mxu0 %v1766
        %v2017 = vpop.f32.mrf.mxu0
        %v2018 = vadd.f32 0.0, %v2017
        %v2019 = vpop.f32.mrf.mxu0
        %2020 = vmatprep.mubr.f32.mxu0 0.0
        %2021 = vmatmul.mubr.f32.gmra.mxu0 %v1767
        %v2022 = vpop.f32.mrf.mxu0
        %v2023 = vadd.f32 0.0, %v2022
        %v2024 = vpop.f32.mrf.mxu0
        %2025 = vmatprep.mubr.f32.mxu0 0.0
        %2026 = vmatmul.mubr.f32.gmra.mxu0 %v1768
        %v2027 = vpop.f32.mrf.mxu0
        %v2028 = vadd.f32 0.0, %v2027
        %v2029 = vpop.f32.mrf.mxu0
        %2030 = vdwg.mxu0
        %v2031 = vadd.f32 %v1697, %v1853
        %v2032 = vadd.f32 %v1698, %v1858
        %v2033 = vadd.f32 %v1699, %v1863
        %v2034 = vadd.f32 %v1700, %v1868
        %v2035 = vadd.f32 %v1701, %v1873
        %v2036 = vadd.f32 %v1702, %v1878
        %v2037 = vadd.f32 %v1703, %v1883
        %v2038 = vadd.f32 %v1704, %v1888
        %v2039 = vadd.f32 %v1705, %v1893
        %v2040 = vadd.f32 %v1706, %v1898
        %v2041 = vadd.f32 %v1707, %v1903
        %v2042 = vadd.f32 %v1708, %v1908
        %v2043 = vadd.f32 %v1709, %v1913
        %v2044 = vadd.f32 %v1710, %v1918
        %v2045 = vadd.f32 %v1711, %v1923
        %v2046 = vadd.f32 %v1712, %v1928
        %v2047 = vadd.f32 %v1713, %v1933
        %v2048 = vadd.f32 %v1714, %v1938
        %v2049 = vadd.f32 %v1715, %v1943
        %v2050 = vadd.f32 %v1716, %v1948
        %v2051 = vadd.f32 %v1717, %v1953
        %v2052 = vadd.f32 %v1718, %v1958
        %v2053 = vadd.f32 %v1719, %v1963
        %v2054 = vadd.f32 %v1720, %v1968
        %v2055 = vadd.f32 %v1721, %v1973
        %v2056 = vadd.f32 %v1722, %v1978
        %v2057 = vadd.f32 %v1723, %v1983
        %v2058 = vadd.f32 %v1724, %v1988
        %v2059 = vadd.f32 %v1725, %v1993
        %v2060 = vadd.f32 %v1726, %v1998
        %v2061 = vadd.f32 %v1727, %v2003
        %v2062 = vadd.f32 %v1728, %v2008
        %v2063 = vadd.f32 %v1729, %v2013
        %v2064 = vadd.f32 %v1730, %v2018
        %v2065 = vadd.f32 %v1731, %v2023
        %v2066 = vadd.f32 %v1732, %v2028
        %v2067 = vld [vmem:[#allocation2 + $0x14] sm:$0xff]
        %v2068 = vld [vmem:[#allocation2 + $0x1c] sm:$0xff]
        %v2069 = vld [vmem:[#allocation2 + $0x24] sm:$0xff]
        %v2070 = vld [vmem:[#allocation2 + $0x2c] sm:$0xff]
        %v2071 = vld [vmem:[#allocation2 + $0x34] sm:$0xff]
        %v2072 = vld [vmem:[#allocation2 + $0x3c] sm:$0xff]
        %v2073 = vld [vmem:[#allocation2 + $0x44] sm:$0xff]
        %v2074 = vld [vmem:[#allocation2 + $0x4c] sm:$0xff]
        %v2075 = vld [vmem:[#allocation2 + $0x54] sm:$0xff]
        %v2076 = vld [vmem:[#allocation2 + $0x5c] sm:$0xff]
        %v2077 = vld [vmem:[#allocation2 + $0x64] sm:$0xff]
        %v2078 = vld [vmem:[#allocation2 + $0x6c] sm:$0xff]
        %v2079 = vld [vmem:[#allocation2 + $0x74] sm:$0xff]
        %v2080 = vld [vmem:[#allocation2 + $0x7c] sm:$0xff]
        %v2081 = vld [vmem:[#allocation2 + $0x84] sm:$0xff]
        %v2082 = vld [vmem:[#allocation2 + $0x8c] sm:$0xff]
        %v2083 = vld [vmem:[#allocation2 + $0x94] sm:$0xff]
        %v2084 = vld [vmem:[#allocation2 + $0x9c] sm:$0xff]
        %v2085 = vld [vmem:[#allocation2 + $0xa4] sm:$0xff]
        %v2086 = vld [vmem:[#allocation2 + $0xac] sm:$0xff]
        %v2087 = vld [vmem:[#allocation2 + $0xb4] sm:$0xff]
        %v2088 = vld [vmem:[#allocation2 + $0xbc] sm:$0xff]
        %v2089 = vld [vmem:[#allocation2 + $0xc4] sm:$0xff]
        %v2090 = vld [vmem:[#allocation2 + $0xcc] sm:$0xff]
        %v2091 = vld [vmem:[#allocation2 + $0xd4] sm:$0xff]
        %v2092 = vld [vmem:[#allocation2 + $0xdc] sm:$0xff]
        %v2093 = vld [vmem:[#allocation2 + $0xe4] sm:$0xff]
        %v2094 = vld [vmem:[#allocation2 + $0xec] sm:$0xff]
        %v2095 = vld [vmem:[#allocation2 + $0xf4] sm:$0xff]
        %v2096 = vld [vmem:[#allocation2 + $0xfc] sm:$0xff]
        %v2097 = vld [vmem:[#allocation2 + $0x104] sm:$0xff]
        %v2098 = vld [vmem:[#allocation2 + $0x10c] sm:$0xff]
        %v2099 = vld [vmem:[#allocation2 + $0x114] sm:$0xff]
        %v2100 = vld [vmem:[#allocation2 + $0x11c] sm:$0xff]
        %v2101 = vld [vmem:[#allocation2 + $0x124] sm:$0xff]
        %v2102 = vld [vmem:[#allocation2 + $0x12c] sm:$0xff]
        %s2103 = scalar_lea.vmem %s2, 640
        %v2104 = vld [vmem:[%s2103] sm:$0xff]
        %v2105 = vld [vmem:[%s2103 + $0x8] sm:$0xff]
        %v2106 = vld [vmem:[%s2103 + $0x10] sm:$0xff]
        %v2107 = vld [vmem:[%s2103 + $0x18] sm:$0xff]
        %v2108 = vld [vmem:[%s2103 + $0x20] sm:$0xff]
        %v2109 = vld [vmem:[%s2103 + $0x28] sm:$0xff]
        %v2110 = vld [vmem:[%s2103 + $0x30] sm:$0xff]
        %v2111 = vld [vmem:[%s2103 + $0x38] sm:$0xff]
        %v2112 = vld [vmem:[%s2103 + $0x40] sm:$0xff]
        %v2113 = vld [vmem:[%s2103 + $0x48] sm:$0xff]
        %v2114 = vld [vmem:[%s2103 + $0x50] sm:$0xff]
        %v2115 = vld [vmem:[%s2103 + $0x58] sm:$0xff]
        %v2116 = vld [vmem:[%s2103 + $0x60] sm:$0xff]
        %v2117 = vld [vmem:[%s2103 + $0x68] sm:$0xff]
        %v2118 = vld [vmem:[%s2103 + $0x70] sm:$0xff]
        %v2119 = vld [vmem:[%s2103 + $0x78] sm:$0xff]
        %2120 = vmatprep.subr.mxu0 0.0
        %2121 = vmatpush1.msra.mxu0 %v2119
        %2122 = vmatprep.subr.mxu0 0.0
        %2123 = vmatpush1.msra.mxu0 %v2118
        %2124 = vmatprep.subr.mxu0 0.0
        %2125 = vmatpush1.msra.mxu0 %v2117
        %2126 = vmatprep.subr.mxu0 0.0
        %2127 = vmatpush1.msra.mxu0 %v2116
        %2128 = vmatprep.subr.mxu0 0.0
        %2129 = vmatpush1.msra.mxu0 %v2115
        %2130 = vmatprep.subr.mxu0 0.0
        %2131 = vmatpush1.msra.mxu0 %v2114
        %2132 = vmatprep.subr.mxu0 0.0
        %2133 = vmatpush1.msra.mxu0 %v2113
        %2134 = vmatprep.subr.mxu0 0.0
        %2135 = vmatpush1.msra.mxu0 %v2112
        %2136 = vmatprep.subr.mxu0 0.0
        %2137 = vmatpush1.msra.mxu0 %v2111
        %2138 = vmatprep.subr.mxu0 0.0
        %2139 = vmatpush1.msra.mxu0 %v2110
        %2140 = vmatprep.subr.mxu0 0.0
        %2141 = vmatpush1.msra.mxu0 %v2109
        %2142 = vmatprep.subr.mxu0 0.0
        %2143 = vmatpush1.msra.mxu0 %v2108
        %2144 = vmatprep.subr.mxu0 0.0
        %2145 = vmatpush1.msra.mxu0 %v2107
        %2146 = vmatprep.subr.mxu0 0.0
        %2147 = vmatpush1.msra.mxu0 %v2106
        %2148 = vmatprep.subr.mxu0 0.0
        %2149 = vmatpush1.msra.mxu0 %v2105
        %2150 = vmatprep.subr.mxu0 0.0
        %2151 = vmatpush1.msra.mxu0 %v2104
        %2152 = vmatprep.subr.mxu0 0.0
        %2153 = vmatpush2.msra.mxu0 0.0
        %2154 = vmatprep.subr.mxu0 0.0
        %2155 = vmatpush2.msra.mxu0 0.0
        %2156 = vmatprep.subr.mxu0 0.0
        %2157 = vmatpush2.msra.mxu0 0.0
        %2158 = vmatprep.subr.mxu0 0.0
        %2159 = vmatpush2.msra.mxu0 0.0
        %2160 = vmatprep.subr.mxu0 0.0
        %2161 = vmatpush2.msra.mxu0 0.0
        %2162 = vmatprep.subr.mxu0 0.0
        %2163 = vmatpush2.msra.mxu0 0.0
        %2164 = vmatprep.subr.mxu0 0.0
        %2165 = vmatpush2.msra.mxu0 0.0
        %2166 = vmatprep.subr.mxu0 0.0
        %2167 = vmatpush2.msra.mxu0 0.0
        %2168 = vmatprep.subr.mxu0 0.0
        %2169 = vmatpush2.msra.mxu0 0.0
        %2170 = vmatprep.subr.mxu0 0.0
        %2171 = vmatpush2.msra.mxu0 0.0
        %2172 = vmatprep.subr.mxu0 0.0
        %2173 = vmatpush2.msra.mxu0 0.0
        %2174 = vmatprep.subr.mxu0 0.0
        %2175 = vmatpush2.msra.mxu0 0.0
        %2176 = vmatprep.subr.mxu0 0.0
        %2177 = vmatpush2.msra.mxu0 0.0
        %2178 = vmatprep.subr.mxu0 0.0
        %2179 = vmatpush2.msra.mxu0 0.0
        %2180 = vmatprep.subr.mxu0 0.0
        %2181 = vmatpush2.msra.mxu0 0.0
        %2182 = vmatprep.subr.mxu0 0.0
        %2183 = vmatpush2.msra.mxu0 0.0
        %2184 = vmatprep.mubr.f32.mxu0 0.0
        %2185 = vmatmul.mubr.f32.gmra.mxu0 %v2067
        %v2186 = vpop.f32.mrf.mxu0
        %v2187 = vadd.f32 0.0, %v2186
        %v2188 = vpop.f32.mrf.mxu0
        %2189 = vmatprep.mubr.f32.mxu0 0.0
        %2190 = vmatmul.mubr.f32.gmra.mxu0 %v2068
        %v2191 = vpop.f32.mrf.mxu0
        %v2192 = vadd.f32 0.0, %v2191
        %v2193 = vpop.f32.mrf.mxu0
        %2194 = vmatprep.mubr.f32.mxu0 0.0
        %2195 = vmatmul.mubr.f32.gmra.mxu0 %v2069
        %v2196 = vpop.f32.mrf.mxu0
        %v2197 = vadd.f32 0.0, %v2196
        %v2198 = vpop.f32.mrf.mxu0
        %2199 = vmatprep.mubr.f32.mxu0 0.0
        %2200 = vmatmul.mubr.f32.gmra.mxu0 %v2070
        %v2201 = vpop.f32.mrf.mxu0
        %v2202 = vadd.f32 0.0, %v2201
        %v2203 = vpop.f32.mrf.mxu0
        %2204 = vmatprep.mubr.f32.mxu0 0.0
        %2205 = vmatmul.mubr.f32.gmra.mxu0 %v2071
        %v2206 = vpop.f32.mrf.mxu0
        %v2207 = vadd.f32 0.0, %v2206
        %v2208 = vpop.f32.mrf.mxu0
        %2209 = vmatprep.mubr.f32.mxu0 0.0
        %2210 = vmatmul.mubr.f32.gmra.mxu0 %v2072
        %v2211 = vpop.f32.mrf.mxu0
        %v2212 = vadd.f32 0.0, %v2211
        %v2213 = vpop.f32.mrf.mxu0
        %2214 = vmatprep.mubr.f32.mxu0 0.0
        %2215 = vmatmul.mubr.f32.gmra.mxu0 %v2073
        %v2216 = vpop.f32.mrf.mxu0
        %v2217 = vadd.f32 0.0, %v2216
        %v2218 = vpop.f32.mrf.mxu0
        %2219 = vmatprep.mubr.f32.mxu0 0.0
        %2220 = vmatmul.mubr.f32.gmra.mxu0 %v2074
        %v2221 = vpop.f32.mrf.mxu0
        %v2222 = vadd.f32 0.0, %v2221
        %v2223 = vpop.f32.mrf.mxu0
        %2224 = vmatprep.mubr.f32.mxu0 0.0
        %2225 = vmatmul.mubr.f32.gmra.mxu0 %v2075
        %v2226 = vpop.f32.mrf.mxu0
        %v2227 = vadd.f32 0.0, %v2226
        %v2228 = vpop.f32.mrf.mxu0
        %2229 = vmatprep.mubr.f32.mxu0 0.0
        %2230 = vmatmul.mubr.f32.gmra.mxu0 %v2076
        %v2231 = vpop.f32.mrf.mxu0
        %v2232 = vadd.f32 0.0, %v2231
        %v2233 = vpop.f32.mrf.mxu0
        %2234 = vmatprep.mubr.f32.mxu0 0.0
        %2235 = vmatmul.mubr.f32.gmra.mxu0 %v2077
        %v2236 = vpop.f32.mrf.mxu0
        %v2237 = vadd.f32 0.0, %v2236
        %v2238 = vpop.f32.mrf.mxu0
        %2239 = vmatprep.mubr.f32.mxu0 0.0
        %2240 = vmatmul.mubr.f32.gmra.mxu0 %v2078
        %v2241 = vpop.f32.mrf.mxu0
        %v2242 = vadd.f32 0.0, %v2241
        %v2243 = vpop.f32.mrf.mxu0
        %2244 = vmatprep.mubr.f32.mxu0 0.0
        %2245 = vmatmul.mubr.f32.gmra.mxu0 %v2079
        %v2246 = vpop.f32.mrf.mxu0
        %v2247 = vadd.f32 0.0, %v2246
        %v2248 = vpop.f32.mrf.mxu0
        %2249 = vmatprep.mubr.f32.mxu0 0.0
        %2250 = vmatmul.mubr.f32.gmra.mxu0 %v2080
        %v2251 = vpop.f32.mrf.mxu0
        %v2252 = vadd.f32 0.0, %v2251
        %v2253 = vpop.f32.mrf.mxu0
        %2254 = vmatprep.mubr.f32.mxu0 0.0
        %2255 = vmatmul.mubr.f32.gmra.mxu0 %v2081
        %v2256 = vpop.f32.mrf.mxu0
        %v2257 = vadd.f32 0.0, %v2256
        %v2258 = vpop.f32.mrf.mxu0
        %2259 = vmatprep.mubr.f32.mxu0 0.0
        %2260 = vmatmul.mubr.f32.gmra.mxu0 %v2082
        %v2261 = vpop.f32.mrf.mxu0
        %v2262 = vadd.f32 0.0, %v2261
        %v2263 = vpop.f32.mrf.mxu0
        %2264 = vmatprep.mubr.f32.mxu0 0.0
        %2265 = vmatmul.mubr.f32.gmra.mxu0 %v2083
        %v2266 = vpop.f32.mrf.mxu0
        %v2267 = vadd.f32 0.0, %v2266
        %v2268 = vpop.f32.mrf.mxu0
        %2269 = vmatprep.mubr.f32.mxu0 0.0
        %2270 = vmatmul.mubr.f32.gmra.mxu0 %v2084
        %v2271 = vpop.f32.mrf.mxu0
        %v2272 = vadd.f32 0.0, %v2271
        %v2273 = vpop.f32.mrf.mxu0
        %2274 = vmatprep.mubr.f32.mxu0 0.0
        %2275 = vmatmul.mubr.f32.gmra.mxu0 %v2085
        %v2276 = vpop.f32.mrf.mxu0
        %v2277 = vadd.f32 0.0, %v2276
        %v2278 = vpop.f32.mrf.mxu0
        %2279 = vmatprep.mubr.f32.mxu0 0.0
        %2280 = vmatmul.mubr.f32.gmra.mxu0 %v2086
        %v2281 = vpop.f32.mrf.mxu0
        %v2282 = vadd.f32 0.0, %v2281
        %v2283 = vpop.f32.mrf.mxu0
        %2284 = vmatprep.mubr.f32.mxu0 0.0
        %2285 = vmatmul.mubr.f32.gmra.mxu0 %v2087
        %v2286 = vpop.f32.mrf.mxu0
        %v2287 = vadd.f32 0.0, %v2286
        %v2288 = vpop.f32.mrf.mxu0
        %2289 = vmatprep.mubr.f32.mxu0 0.0
        %2290 = vmatmul.mubr.f32.gmra.mxu0 %v2088
        %v2291 = vpop.f32.mrf.mxu0
        %v2292 = vadd.f32 0.0, %v2291
        %v2293 = vpop.f32.mrf.mxu0
        %2294 = vmatprep.mubr.f32.mxu0 0.0
        %2295 = vmatmul.mubr.f32.gmra.mxu0 %v2089
        %v2296 = vpop.f32.mrf.mxu0
        %v2297 = vadd.f32 0.0, %v2296
        %v2298 = vpop.f32.mrf.mxu0
        %2299 = vmatprep.mubr.f32.mxu0 0.0
        %2300 = vmatmul.mubr.f32.gmra.mxu0 %v2090
        %v2301 = vpop.f32.mrf.mxu0
        %v2302 = vadd.f32 0.0, %v2301
        %v2303 = vpop.f32.mrf.mxu0
        %2304 = vmatprep.mubr.f32.mxu0 0.0
        %2305 = vmatmul.mubr.f32.gmra.mxu0 %v2091
        %v2306 = vpop.f32.mrf.mxu0
        %v2307 = vadd.f32 0.0, %v2306
        %v2308 = vpop.f32.mrf.mxu0
        %2309 = vmatprep.mubr.f32.mxu0 0.0
        %2310 = vmatmul.mubr.f32.gmra.mxu0 %v2092
        %v2311 = vpop.f32.mrf.mxu0
        %v2312 = vadd.f32 0.0, %v2311
        %v2313 = vpop.f32.mrf.mxu0
        %2314 = vmatprep.mubr.f32.mxu0 0.0
        %2315 = vmatmul.mubr.f32.gmra.mxu0 %v2093
        %v2316 = vpop.f32.mrf.mxu0
        %v2317 = vadd.f32 0.0, %v2316
        %v2318 = vpop.f32.mrf.mxu0
        %2319 = vmatprep.mubr.f32.mxu0 0.0
        %2320 = vmatmul.mubr.f32.gmra.mxu0 %v2094
        %v2321 = vpop.f32.mrf.mxu0
        %v2322 = vadd.f32 0.0, %v2321
        %v2323 = vpop.f32.mrf.mxu0
        %2324 = vmatprep.mubr.f32.mxu0 0.0
        %2325 = vmatmul.mubr.f32.gmra.mxu0 %v2095
        %v2326 = vpop.f32.mrf.mxu0
        %v2327 = vadd.f32 0.0, %v2326
        %v2328 = vpop.f32.mrf.mxu0
        %2329 = vmatprep.mubr.f32.mxu0 0.0
        %2330 = vmatmul.mubr.f32.gmra.mxu0 %v2096
        %v2331 = vpop.f32.mrf.mxu0
        %v2332 = vadd.f32 0.0, %v2331
        %v2333 = vpop.f32.mrf.mxu0
        %2334 = vmatprep.mubr.f32.mxu0 0.0
        %2335 = vmatmul.mubr.f32.gmra.mxu0 %v2097
        %v2336 = vpop.f32.mrf.mxu0
        %v2337 = vadd.f32 0.0, %v2336
        %v2338 = vpop.f32.mrf.mxu0
        %2339 = vmatprep.mubr.f32.mxu0 0.0
        %2340 = vmatmul.mubr.f32.gmra.mxu0 %v2098
        %v2341 = vpop.f32.mrf.mxu0
        %v2342 = vadd.f32 0.0, %v2341
        %v2343 = vpop.f32.mrf.mxu0
        %2344 = vmatprep.mubr.f32.mxu0 0.0
        %2345 = vmatmul.mubr.f32.gmra.mxu0 %v2099
        %v2346 = vpop.f32.mrf.mxu0
        %v2347 = vadd.f32 0.0, %v2346
        %v2348 = vpop.f32.mrf.mxu0
        %2349 = vmatprep.mubr.f32.mxu0 0.0
        %2350 = vmatmul.mubr.f32.gmra.mxu0 %v2100
        %v2351 = vpop.f32.mrf.mxu0
        %v2352 = vadd.f32 0.0, %v2351
        %v2353 = vpop.f32.mrf.mxu0
        %2354 = vmatprep.mubr.f32.mxu0 0.0
        %2355 = vmatmul.mubr.f32.gmra.mxu0 %v2101
        %v2356 = vpop.f32.mrf.mxu0
        %v2357 = vadd.f32 0.0, %v2356
        %v2358 = vpop.f32.mrf.mxu0
        %2359 = vmatprep.mubr.f32.mxu0 0.0
        %2360 = vmatmul.mubr.f32.gmra.mxu0 %v2102
        %v2361 = vpop.f32.mrf.mxu0
        %v2362 = vadd.f32 0.0, %v2361
        %v2363 = vpop.f32.mrf.mxu0
        %2364 = vdwg.mxu0
        %v2365 = vadd.f32 %v2031, %v2187
        %v2366 = vadd.f32 %v2032, %v2192
        %v2367 = vadd.f32 %v2033, %v2197
        %v2368 = vadd.f32 %v2034, %v2202
        %v2369 = vadd.f32 %v2035, %v2207
        %v2370 = vadd.f32 %v2036, %v2212
        %v2371 = vadd.f32 %v2037, %v2217
        %v2372 = vadd.f32 %v2038, %v2222
        %v2373 = vadd.f32 %v2039, %v2227
        %v2374 = vadd.f32 %v2040, %v2232
        %v2375 = vadd.f32 %v2041, %v2237
        %v2376 = vadd.f32 %v2042, %v2242
        %v2377 = vadd.f32 %v2043, %v2247
        %v2378 = vadd.f32 %v2044, %v2252
        %v2379 = vadd.f32 %v2045, %v2257
        %v2380 = vadd.f32 %v2046, %v2262
        %v2381 = vadd.f32 %v2047, %v2267
        %v2382 = vadd.f32 %v2048, %v2272
        %v2383 = vadd.f32 %v2049, %v2277
        %v2384 = vadd.f32 %v2050, %v2282
        %v2385 = vadd.f32 %v2051, %v2287
        %v2386 = vadd.f32 %v2052, %v2292
        %v2387 = vadd.f32 %v2053, %v2297
        %v2388 = vadd.f32 %v2054, %v2302
        %v2389 = vadd.f32 %v2055, %v2307
        %v2390 = vadd.f32 %v2056, %v2312
        %v2391 = vadd.f32 %v2057, %v2317
        %v2392 = vadd.f32 %v2058, %v2322
        %v2393 = vadd.f32 %v2059, %v2327
        %v2394 = vadd.f32 %v2060, %v2332
        %v2395 = vadd.f32 %v2061, %v2337
        %v2396 = vadd.f32 %v2062, %v2342
        %v2397 = vadd.f32 %v2063, %v2347
        %v2398 = vadd.f32 %v2064, %v2352
        %v2399 = vadd.f32 %v2065, %v2357
        %v2400 = vadd.f32 %v2066, %v2362
        %v2401 = vld [vmem:[#allocation2 + $0x24] sm:$0xff]
        %v2402 = vld [vmem:[#allocation2 + $0x2c] sm:$0xff]
        %v2403 = vld [vmem:[#allocation2 + $0x34] sm:$0xff]
        %v2404 = vld [vmem:[#allocation2 + $0x3c] sm:$0xff]
        %v2405 = vld [vmem:[#allocation2 + $0x44] sm:$0xff]
        %v2406 = vld [vmem:[#allocation2 + $0x4c] sm:$0xff]
        %v2407 = vld [vmem:[#allocation2 + $0x54] sm:$0xff]
        %v2408 = vld [vmem:[#allocation2 + $0x5c] sm:$0xff]
        %v2409 = vld [vmem:[#allocation2 + $0x64] sm:$0xff]
        %v2410 = vld [vmem:[#allocation2 + $0x6c] sm:$0xff]
        %v2411 = vld [vmem:[#allocation2 + $0x74] sm:$0xff]
        %v2412 = vld [vmem:[#allocation2 + $0x7c] sm:$0xff]
        %v2413 = vld [vmem:[#allocation2 + $0x84] sm:$0xff]
        %v2414 = vld [vmem:[#allocation2 + $0x8c] sm:$0xff]
        %v2415 = vld [vmem:[#allocation2 + $0x94] sm:$0xff]
        %v2416 = vld [vmem:[#allocation2 + $0x9c] sm:$0xff]
        %v2417 = vld [vmem:[#allocation2 + $0xa4] sm:$0xff]
        %v2418 = vld [vmem:[#allocation2 + $0xac] sm:$0xff]
        %v2419 = vld [vmem:[#allocation2 + $0xb4] sm:$0xff]
        %v2420 = vld [vmem:[#allocation2 + $0xbc] sm:$0xff]
        %v2421 = vld [vmem:[#allocation2 + $0xc4] sm:$0xff]
        %v2422 = vld [vmem:[#allocation2 + $0xcc] sm:$0xff]
        %v2423 = vld [vmem:[#allocation2 + $0xd4] sm:$0xff]
        %v2424 = vld [vmem:[#allocation2 + $0xdc] sm:$0xff]
        %v2425 = vld [vmem:[#allocation2 + $0xe4] sm:$0xff]
        %v2426 = vld [vmem:[#allocation2 + $0xec] sm:$0xff]
        %v2427 = vld [vmem:[#allocation2 + $0xf4] sm:$0xff]
        %v2428 = vld [vmem:[#allocation2 + $0xfc] sm:$0xff]
        %v2429 = vld [vmem:[#allocation2 + $0x104] sm:$0xff]
        %v2430 = vld [vmem:[#allocation2 + $0x10c] sm:$0xff]
        %v2431 = vld [vmem:[#allocation2 + $0x114] sm:$0xff]
        %v2432 = vld [vmem:[#allocation2 + $0x11c] sm:$0xff]
        %v2433 = vld [vmem:[#allocation2 + $0x124] sm:$0xff]
        %v2434 = vld [vmem:[#allocation2 + $0x12c] sm:$0xff]
        %v2435 = vld [vmem:[#allocation2 + $0x134] sm:$0xff]
        %v2436 = vld [vmem:[#allocation2 + $0x13c] sm:$0xff]
        %s2437 = scalar_lea.vmem %s2, 768
        %v2438 = vld [vmem:[%s2437] sm:$0xff]
        %v2439 = vld [vmem:[%s2437 + $0x8] sm:$0xff]
        %v2440 = vld [vmem:[%s2437 + $0x10] sm:$0xff]
        %v2441 = vld [vmem:[%s2437 + $0x18] sm:$0xff]
        %v2442 = vld [vmem:[%s2437 + $0x20] sm:$0xff]
        %v2443 = vld [vmem:[%s2437 + $0x28] sm:$0xff]
        %v2444 = vld [vmem:[%s2437 + $0x30] sm:$0xff]
        %v2445 = vld [vmem:[%s2437 + $0x38] sm:$0xff]
        %v2446 = vld [vmem:[%s2437 + $0x40] sm:$0xff]
        %v2447 = vld [vmem:[%s2437 + $0x48] sm:$0xff]
        %v2448 = vld [vmem:[%s2437 + $0x50] sm:$0xff]
        %v2449 = vld [vmem:[%s2437 + $0x58] sm:$0xff]
        %v2450 = vld [vmem:[%s2437 + $0x60] sm:$0xff]
        %v2451 = vld [vmem:[%s2437 + $0x68] sm:$0xff]
        %v2452 = vld [vmem:[%s2437 + $0x70] sm:$0xff]
        %v2453 = vld [vmem:[%s2437 + $0x78] sm:$0xff]
        %2454 = vmatprep.subr.mxu0 0.0
        %2455 = vmatpush1.msra.mxu0 %v2453
        %2456 = vmatprep.subr.mxu0 0.0
        %2457 = vmatpush1.msra.mxu0 %v2452
        %2458 = vmatprep.subr.mxu0 0.0
        %2459 = vmatpush1.msra.mxu0 %v2451
        %2460 = vmatprep.subr.mxu0 0.0
        %2461 = vmatpush1.msra.mxu0 %v2450
        %2462 = vmatprep.subr.mxu0 0.0
        %2463 = vmatpush1.msra.mxu0 %v2449
        %2464 = vmatprep.subr.mxu0 0.0
        %2465 = vmatpush1.msra.mxu0 %v2448
        %2466 = vmatprep.subr.mxu0 0.0
        %2467 = vmatpush1.msra.mxu0 %v2447
        %2468 = vmatprep.subr.mxu0 0.0
        %2469 = vmatpush1.msra.mxu0 %v2446
        %2470 = vmatprep.subr.mxu0 0.0
        %2471 = vmatpush1.msra.mxu0 %v2445
        %2472 = vmatprep.subr.mxu0 0.0
        %2473 = vmatpush1.msra.mxu0 %v2444
        %2474 = vmatprep.subr.mxu0 0.0
        %2475 = vmatpush1.msra.mxu0 %v2443
        %2476 = vmatprep.subr.mxu0 0.0
        %2477 = vmatpush1.msra.mxu0 %v2442
        %2478 = vmatprep.subr.mxu0 0.0
        %2479 = vmatpush1.msra.mxu0 %v2441
        %2480 = vmatprep.subr.mxu0 0.0
        %2481 = vmatpush1.msra.mxu0 %v2440
        %2482 = vmatprep.subr.mxu0 0.0
        %2483 = vmatpush1.msra.mxu0 %v2439
        %2484 = vmatprep.subr.mxu0 0.0
        %2485 = vmatpush1.msra.mxu0 %v2438
        %2486 = vmatprep.subr.mxu0 0.0
        %2487 = vmatpush2.msra.mxu0 0.0
        %2488 = vmatprep.subr.mxu0 0.0
        %2489 = vmatpush2.msra.mxu0 0.0
        %2490 = vmatprep.subr.mxu0 0.0
        %2491 = vmatpush2.msra.mxu0 0.0
        %2492 = vmatprep.subr.mxu0 0.0
        %2493 = vmatpush2.msra.mxu0 0.0
        %2494 = vmatprep.subr.mxu0 0.0
        %2495 = vmatpush2.msra.mxu0 0.0
        %2496 = vmatprep.subr.mxu0 0.0
        %2497 = vmatpush2.msra.mxu0 0.0
        %2498 = vmatprep.subr.mxu0 0.0
        %2499 = vmatpush2.msra.mxu0 0.0
        %2500 = vmatprep.subr.mxu0 0.0
        %2501 = vmatpush2.msra.mxu0 0.0
        %2502 = vmatprep.subr.mxu0 0.0
        %2503 = vmatpush2.msra.mxu0 0.0
        %2504 = vmatprep.subr.mxu0 0.0
        %2505 = vmatpush2.msra.mxu0 0.0
        %2506 = vmatprep.subr.mxu0 0.0
        %2507 = vmatpush2.msra.mxu0 0.0
        %2508 = vmatprep.subr.mxu0 0.0
        %2509 = vmatpush2.msra.mxu0 0.0
        %2510 = vmatprep.subr.mxu0 0.0
        %2511 = vmatpush2.msra.mxu0 0.0
        %2512 = vmatprep.subr.mxu0 0.0
        %2513 = vmatpush2.msra.mxu0 0.0
        %2514 = vmatprep.subr.mxu0 0.0
        %2515 = vmatpush2.msra.mxu0 0.0
        %2516 = vmatprep.subr.mxu0 0.0
        %2517 = vmatpush2.msra.mxu0 0.0
        %2518 = vmatprep.mubr.f32.mxu0 0.0
        %2519 = vmatmul.mubr.f32.gmra.mxu0 %v2401
        %v2520 = vpop.f32.mrf.mxu0
        %v2521 = vadd.f32 0.0, %v2520
        %v2522 = vpop.f32.mrf.mxu0
        %2523 = vmatprep.mubr.f32.mxu0 0.0
        %2524 = vmatmul.mubr.f32.gmra.mxu0 %v2402
        %v2525 = vpop.f32.mrf.mxu0
        %v2526 = vadd.f32 0.0, %v2525
        %v2527 = vpop.f32.mrf.mxu0
        %2528 = vmatprep.mubr.f32.mxu0 0.0
        %2529 = vmatmul.mubr.f32.gmra.mxu0 %v2403
        %v2530 = vpop.f32.mrf.mxu0
        %v2531 = vadd.f32 0.0, %v2530
        %v2532 = vpop.f32.mrf.mxu0
        %2533 = vmatprep.mubr.f32.mxu0 0.0
        %2534 = vmatmul.mubr.f32.gmra.mxu0 %v2404
        %v2535 = vpop.f32.mrf.mxu0
        %v2536 = vadd.f32 0.0, %v2535
        %v2537 = vpop.f32.mrf.mxu0
        %2538 = vmatprep.mubr.f32.mxu0 0.0
        %2539 = vmatmul.mubr.f32.gmra.mxu0 %v2405
        %v2540 = vpop.f32.mrf.mxu0
        %v2541 = vadd.f32 0.0, %v2540
        %v2542 = vpop.f32.mrf.mxu0
        %2543 = vmatprep.mubr.f32.mxu0 0.0
        %2544 = vmatmul.mubr.f32.gmra.mxu0 %v2406
        %v2545 = vpop.f32.mrf.mxu0
        %v2546 = vadd.f32 0.0, %v2545
        %v2547 = vpop.f32.mrf.mxu0
        %2548 = vmatprep.mubr.f32.mxu0 0.0
        %2549 = vmatmul.mubr.f32.gmra.mxu0 %v2407
        %v2550 = vpop.f32.mrf.mxu0
        %v2551 = vadd.f32 0.0, %v2550
        %v2552 = vpop.f32.mrf.mxu0
        %2553 = vmatprep.mubr.f32.mxu0 0.0
        %2554 = vmatmul.mubr.f32.gmra.mxu0 %v2408
        %v2555 = vpop.f32.mrf.mxu0
        %v2556 = vadd.f32 0.0, %v2555
        %v2557 = vpop.f32.mrf.mxu0
        %2558 = vmatprep.mubr.f32.mxu0 0.0
        %2559 = vmatmul.mubr.f32.gmra.mxu0 %v2409
        %v2560 = vpop.f32.mrf.mxu0
        %v2561 = vadd.f32 0.0, %v2560
        %v2562 = vpop.f32.mrf.mxu0
        %2563 = vmatprep.mubr.f32.mxu0 0.0
        %2564 = vmatmul.mubr.f32.gmra.mxu0 %v2410
        %v2565 = vpop.f32.mrf.mxu0
        %v2566 = vadd.f32 0.0, %v2565
        %v2567 = vpop.f32.mrf.mxu0
        %2568 = vmatprep.mubr.f32.mxu0 0.0
        %2569 = vmatmul.mubr.f32.gmra.mxu0 %v2411
        %v2570 = vpop.f32.mrf.mxu0
        %v2571 = vadd.f32 0.0, %v2570
        %v2572 = vpop.f32.mrf.mxu0
        %2573 = vmatprep.mubr.f32.mxu0 0.0
        %2574 = vmatmul.mubr.f32.gmra.mxu0 %v2412
        %v2575 = vpop.f32.mrf.mxu0
        %v2576 = vadd.f32 0.0, %v2575
        %v2577 = vpop.f32.mrf.mxu0
        %2578 = vmatprep.mubr.f32.mxu0 0.0
        %2579 = vmatmul.mubr.f32.gmra.mxu0 %v2413
        %v2580 = vpop.f32.mrf.mxu0
        %v2581 = vadd.f32 0.0, %v2580
        %v2582 = vpop.f32.mrf.mxu0
        %2583 = vmatprep.mubr.f32.mxu0 0.0
        %2584 = vmatmul.mubr.f32.gmra.mxu0 %v2414
        %v2585 = vpop.f32.mrf.mxu0
        %v2586 = vadd.f32 0.0, %v2585
        %v2587 = vpop.f32.mrf.mxu0
        %2588 = vmatprep.mubr.f32.mxu0 0.0
        %2589 = vmatmul.mubr.f32.gmra.mxu0 %v2415
        %v2590 = vpop.f32.mrf.mxu0
        %v2591 = vadd.f32 0.0, %v2590
        %v2592 = vpop.f32.mrf.mxu0
        %2593 = vmatprep.mubr.f32.mxu0 0.0
        %2594 = vmatmul.mubr.f32.gmra.mxu0 %v2416
        %v2595 = vpop.f32.mrf.mxu0
        %v2596 = vadd.f32 0.0, %v2595
        %v2597 = vpop.f32.mrf.mxu0
        %2598 = vmatprep.mubr.f32.mxu0 0.0
        %2599 = vmatmul.mubr.f32.gmra.mxu0 %v2417
        %v2600 = vpop.f32.mrf.mxu0
        %v2601 = vadd.f32 0.0, %v2600
        %v2602 = vpop.f32.mrf.mxu0
        %2603 = vmatprep.mubr.f32.mxu0 0.0
        %2604 = vmatmul.mubr.f32.gmra.mxu0 %v2418
        %v2605 = vpop.f32.mrf.mxu0
        %v2606 = vadd.f32 0.0, %v2605
        %v2607 = vpop.f32.mrf.mxu0
        %2608 = vmatprep.mubr.f32.mxu0 0.0
        %2609 = vmatmul.mubr.f32.gmra.mxu0 %v2419
        %v2610 = vpop.f32.mrf.mxu0
        %v2611 = vadd.f32 0.0, %v2610
        %v2612 = vpop.f32.mrf.mxu0
        %2613 = vmatprep.mubr.f32.mxu0 0.0
        %2614 = vmatmul.mubr.f32.gmra.mxu0 %v2420
        %v2615 = vpop.f32.mrf.mxu0
        %v2616 = vadd.f32 0.0, %v2615
        %v2617 = vpop.f32.mrf.mxu0
        %2618 = vmatprep.mubr.f32.mxu0 0.0
        %2619 = vmatmul.mubr.f32.gmra.mxu0 %v2421
        %v2620 = vpop.f32.mrf.mxu0
        %v2621 = vadd.f32 0.0, %v2620
        %v2622 = vpop.f32.mrf.mxu0
        %2623 = vmatprep.mubr.f32.mxu0 0.0
        %2624 = vmatmul.mubr.f32.gmra.mxu0 %v2422
        %v2625 = vpop.f32.mrf.mxu0
        %v2626 = vadd.f32 0.0, %v2625
        %v2627 = vpop.f32.mrf.mxu0
        %2628 = vmatprep.mubr.f32.mxu0 0.0
        %2629 = vmatmul.mubr.f32.gmra.mxu0 %v2423
        %v2630 = vpop.f32.mrf.mxu0
        %v2631 = vadd.f32 0.0, %v2630
        %v2632 = vpop.f32.mrf.mxu0
        %2633 = vmatprep.mubr.f32.mxu0 0.0
        %2634 = vmatmul.mubr.f32.gmra.mxu0 %v2424
        %v2635 = vpop.f32.mrf.mxu0
        %v2636 = vadd.f32 0.0, %v2635
        %v2637 = vpop.f32.mrf.mxu0
        %2638 = vmatprep.mubr.f32.mxu0 0.0
        %2639 = vmatmul.mubr.f32.gmra.mxu0 %v2425
        %v2640 = vpop.f32.mrf.mxu0
        %v2641 = vadd.f32 0.0, %v2640
        %v2642 = vpop.f32.mrf.mxu0
        %2643 = vmatprep.mubr.f32.mxu0 0.0
        %2644 = vmatmul.mubr.f32.gmra.mxu0 %v2426
        %v2645 = vpop.f32.mrf.mxu0
        %v2646 = vadd.f32 0.0, %v2645
        %v2647 = vpop.f32.mrf.mxu0
        %2648 = vmatprep.mubr.f32.mxu0 0.0
        %2649 = vmatmul.mubr.f32.gmra.mxu0 %v2427
        %v2650 = vpop.f32.mrf.mxu0
        %v2651 = vadd.f32 0.0, %v2650
        %v2652 = vpop.f32.mrf.mxu0
        %2653 = vmatprep.mubr.f32.mxu0 0.0
        %2654 = vmatmul.mubr.f32.gmra.mxu0 %v2428
        %v2655 = vpop.f32.mrf.mxu0
        %v2656 = vadd.f32 0.0, %v2655
        %v2657 = vpop.f32.mrf.mxu0
        %2658 = vmatprep.mubr.f32.mxu0 0.0
        %2659 = vmatmul.mubr.f32.gmra.mxu0 %v2429
        %v2660 = vpop.f32.mrf.mxu0
        %v2661 = vadd.f32 0.0, %v2660
        %v2662 = vpop.f32.mrf.mxu0
        %2663 = vmatprep.mubr.f32.mxu0 0.0
        %2664 = vmatmul.mubr.f32.gmra.mxu0 %v2430
        %v2665 = vpop.f32.mrf.mxu0
        %v2666 = vadd.f32 0.0, %v2665
        %v2667 = vpop.f32.mrf.mxu0
        %2668 = vmatprep.mubr.f32.mxu0 0.0
        %2669 = vmatmul.mubr.f32.gmra.mxu0 %v2431
        %v2670 = vpop.f32.mrf.mxu0
        %v2671 = vadd.f32 0.0, %v2670
        %v2672 = vpop.f32.mrf.mxu0
        %2673 = vmatprep.mubr.f32.mxu0 0.0
        %2674 = vmatmul.mubr.f32.gmra.mxu0 %v2432
        %v2675 = vpop.f32.mrf.mxu0
        %v2676 = vadd.f32 0.0, %v2675
        %v2677 = vpop.f32.mrf.mxu0
        %2678 = vmatprep.mubr.f32.mxu0 0.0
        %2679 = vmatmul.mubr.f32.gmra.mxu0 %v2433
        %v2680 = vpop.f32.mrf.mxu0
        %v2681 = vadd.f32 0.0, %v2680
        %v2682 = vpop.f32.mrf.mxu0
        %2683 = vmatprep.mubr.f32.mxu0 0.0
        %2684 = vmatmul.mubr.f32.gmra.mxu0 %v2434
        %v2685 = vpop.f32.mrf.mxu0
        %v2686 = vadd.f32 0.0, %v2685
        %v2687 = vpop.f32.mrf.mxu0
        %2688 = vmatprep.mubr.f32.mxu0 0.0
        %2689 = vmatmul.mubr.f32.gmra.mxu0 %v2435
        %v2690 = vpop.f32.mrf.mxu0
        %v2691 = vadd.f32 0.0, %v2690
        %v2692 = vpop.f32.mrf.mxu0
        %2693 = vmatprep.mubr.f32.mxu0 0.0
        %2694 = vmatmul.mubr.f32.gmra.mxu0 %v2436
        %v2695 = vpop.f32.mrf.mxu0
        %v2696 = vadd.f32 0.0, %v2695
        %v2697 = vpop.f32.mrf.mxu0
        %2698 = vdwg.mxu0
        %v2699 = vadd.f32 %v2365, %v2521
        %v2700 = vadd.f32 %v2366, %v2526
        %v2701 = vadd.f32 %v2367, %v2531
        %v2702 = vadd.f32 %v2368, %v2536
        %v2703 = vadd.f32 %v2369, %v2541
        %v2704 = vadd.f32 %v2370, %v2546
        %v2705 = vadd.f32 %v2371, %v2551
        %v2706 = vadd.f32 %v2372, %v2556
        %v2707 = vadd.f32 %v2373, %v2561
        %v2708 = vadd.f32 %v2374, %v2566
        %v2709 = vadd.f32 %v2375, %v2571
        %v2710 = vadd.f32 %v2376, %v2576
        %v2711 = vadd.f32 %v2377, %v2581
        %v2712 = vadd.f32 %v2378, %v2586
        %v2713 = vadd.f32 %v2379, %v2591
        %v2714 = vadd.f32 %v2380, %v2596
        %v2715 = vadd.f32 %v2381, %v2601
        %v2716 = vadd.f32 %v2382, %v2606
        %v2717 = vadd.f32 %v2383, %v2611
        %v2718 = vadd.f32 %v2384, %v2616
        %v2719 = vadd.f32 %v2385, %v2621
        %v2720 = vadd.f32 %v2386, %v2626
        %v2721 = vadd.f32 %v2387, %v2631
        %v2722 = vadd.f32 %v2388, %v2636
        %v2723 = vadd.f32 %v2389, %v2641
        %v2724 = vadd.f32 %v2390, %v2646
        %v2725 = vadd.f32 %v2391, %v2651
        %v2726 = vadd.f32 %v2392, %v2656
        %v2727 = vadd.f32 %v2393, %v2661
        %v2728 = vadd.f32 %v2394, %v2666
        %v2729 = vadd.f32 %v2395, %v2671
        %v2730 = vadd.f32 %v2396, %v2676
        %v2731 = vadd.f32 %v2397, %v2681
        %v2732 = vadd.f32 %v2398, %v2686
        %v2733 = vadd.f32 %v2399, %v2691
        %v2734 = vadd.f32 %v2400, %v2696
        %v2735 = vld [vmem:[#allocation2 + $0x25] sm:$0xff]
        %v2736 = vld [vmem:[#allocation2 + $0x2d] sm:$0xff]
        %v2737 = vld [vmem:[#allocation2 + $0x35] sm:$0xff]
        %v2738 = vld [vmem:[#allocation2 + $0x3d] sm:$0xff]
        %v2739 = vld [vmem:[#allocation2 + $0x45] sm:$0xff]
        %v2740 = vld [vmem:[#allocation2 + $0x4d] sm:$0xff]
        %v2741 = vld [vmem:[#allocation2 + $0x55] sm:$0xff]
        %v2742 = vld [vmem:[#allocation2 + $0x5d] sm:$0xff]
        %v2743 = vld [vmem:[#allocation2 + $0x65] sm:$0xff]
        %v2744 = vld [vmem:[#allocation2 + $0x6d] sm:$0xff]
        %v2745 = vld [vmem:[#allocation2 + $0x75] sm:$0xff]
        %v2746 = vld [vmem:[#allocation2 + $0x7d] sm:$0xff]
        %v2747 = vld [vmem:[#allocation2 + $0x85] sm:$0xff]
        %v2748 = vld [vmem:[#allocation2 + $0x8d] sm:$0xff]
        %v2749 = vld [vmem:[#allocation2 + $0x95] sm:$0xff]
        %v2750 = vld [vmem:[#allocation2 + $0x9d] sm:$0xff]
        %v2751 = vld [vmem:[#allocation2 + $0xa5] sm:$0xff]
        %v2752 = vld [vmem:[#allocation2 + $0xad] sm:$0xff]
        %v2753 = vld [vmem:[#allocation2 + $0xb5] sm:$0xff]
        %v2754 = vld [vmem:[#allocation2 + $0xbd] sm:$0xff]
        %v2755 = vld [vmem:[#allocation2 + $0xc5] sm:$0xff]
        %v2756 = vld [vmem:[#allocation2 + $0xcd] sm:$0xff]
        %v2757 = vld [vmem:[#allocation2 + $0xd5] sm:$0xff]
        %v2758 = vld [vmem:[#allocation2 + $0xdd] sm:$0xff]
        %v2759 = vld [vmem:[#allocation2 + $0xe5] sm:$0xff]
        %v2760 = vld [vmem:[#allocation2 + $0xed] sm:$0xff]
        %v2761 = vld [vmem:[#allocation2 + $0xf5] sm:$0xff]
        %v2762 = vld [vmem:[#allocation2 + $0xfd] sm:$0xff]
        %v2763 = vld [vmem:[#allocation2 + $0x105] sm:$0xff]
        %v2764 = vld [vmem:[#allocation2 + $0x10d] sm:$0xff]
        %v2765 = vld [vmem:[#allocation2 + $0x115] sm:$0xff]
        %v2766 = vld [vmem:[#allocation2 + $0x11d] sm:$0xff]
        %v2767 = vld [vmem:[#allocation2 + $0x125] sm:$0xff]
        %v2768 = vld [vmem:[#allocation2 + $0x12d] sm:$0xff]
        %v2769 = vld [vmem:[#allocation2 + $0x135] sm:$0xff]
        %v2770 = vld [vmem:[#allocation2 + $0x13d] sm:$0xff]
        %s2771 = scalar_lea.vmem %s2, 896
        %v2772 = vld [vmem:[%s2771] sm:$0xff]
        %v2773 = vld [vmem:[%s2771 + $0x8] sm:$0xff]
        %v2774 = vld [vmem:[%s2771 + $0x10] sm:$0xff]
        %v2775 = vld [vmem:[%s2771 + $0x18] sm:$0xff]
        %v2776 = vld [vmem:[%s2771 + $0x20] sm:$0xff]
        %v2777 = vld [vmem:[%s2771 + $0x28] sm:$0xff]
        %v2778 = vld [vmem:[%s2771 + $0x30] sm:$0xff]
        %v2779 = vld [vmem:[%s2771 + $0x38] sm:$0xff]
        %v2780 = vld [vmem:[%s2771 + $0x40] sm:$0xff]
        %v2781 = vld [vmem:[%s2771 + $0x48] sm:$0xff]
        %v2782 = vld [vmem:[%s2771 + $0x50] sm:$0xff]
        %v2783 = vld [vmem:[%s2771 + $0x58] sm:$0xff]
        %v2784 = vld [vmem:[%s2771 + $0x60] sm:$0xff]
        %v2785 = vld [vmem:[%s2771 + $0x68] sm:$0xff]
        %v2786 = vld [vmem:[%s2771 + $0x70] sm:$0xff]
        %v2787 = vld [vmem:[%s2771 + $0x78] sm:$0xff]
        %2788 = vmatprep.subr.mxu0 0.0
        %2789 = vmatpush1.msra.mxu0 %v2787
        %2790 = vmatprep.subr.mxu0 0.0
        %2791 = vmatpush1.msra.mxu0 %v2786
        %2792 = vmatprep.subr.mxu0 0.0
        %2793 = vmatpush1.msra.mxu0 %v2785
        %2794 = vmatprep.subr.mxu0 0.0
        %2795 = vmatpush1.msra.mxu0 %v2784
        %2796 = vmatprep.subr.mxu0 0.0
        %2797 = vmatpush1.msra.mxu0 %v2783
        %2798 = vmatprep.subr.mxu0 0.0
        %2799 = vmatpush1.msra.mxu0 %v2782
        %2800 = vmatprep.subr.mxu0 0.0
        %2801 = vmatpush1.msra.mxu0 %v2781
        %2802 = vmatprep.subr.mxu0 0.0
        %2803 = vmatpush1.msra.mxu0 %v2780
        %2804 = vmatprep.subr.mxu0 0.0
        %2805 = vmatpush1.msra.mxu0 %v2779
        %2806 = vmatprep.subr.mxu0 0.0
        %2807 = vmatpush1.msra.mxu0 %v2778
        %2808 = vmatprep.subr.mxu0 0.0
        %2809 = vmatpush1.msra.mxu0 %v2777
        %2810 = vmatprep.subr.mxu0 0.0
        %2811 = vmatpush1.msra.mxu0 %v2776
        %2812 = vmatprep.subr.mxu0 0.0
        %2813 = vmatpush1.msra.mxu0 %v2775
        %2814 = vmatprep.subr.mxu0 0.0
        %2815 = vmatpush1.msra.mxu0 %v2774
        %2816 = vmatprep.subr.mxu0 0.0
        %2817 = vmatpush1.msra.mxu0 %v2773
        %2818 = vmatprep.subr.mxu0 0.0
        %2819 = vmatpush1.msra.mxu0 %v2772
        %2820 = vmatprep.subr.mxu0 0.0
        %2821 = vmatpush2.msra.mxu0 0.0
        %2822 = vmatprep.subr.mxu0 0.0
        %2823 = vmatpush2.msra.mxu0 0.0
        %2824 = vmatprep.subr.mxu0 0.0
        %2825 = vmatpush2.msra.mxu0 0.0
        %2826 = vmatprep.subr.mxu0 0.0
        %2827 = vmatpush2.msra.mxu0 0.0
        %2828 = vmatprep.subr.mxu0 0.0
        %2829 = vmatpush2.msra.mxu0 0.0
        %2830 = vmatprep.subr.mxu0 0.0
        %2831 = vmatpush2.msra.mxu0 0.0
        %2832 = vmatprep.subr.mxu0 0.0
        %2833 = vmatpush2.msra.mxu0 0.0
        %2834 = vmatprep.subr.mxu0 0.0
        %2835 = vmatpush2.msra.mxu0 0.0
        %2836 = vmatprep.subr.mxu0 0.0
        %2837 = vmatpush2.msra.mxu0 0.0
        %2838 = vmatprep.subr.mxu0 0.0
        %2839 = vmatpush2.msra.mxu0 0.0
        %2840 = vmatprep.subr.mxu0 0.0
        %2841 = vmatpush2.msra.mxu0 0.0
        %2842 = vmatprep.subr.mxu0 0.0
        %2843 = vmatpush2.msra.mxu0 0.0
        %2844 = vmatprep.subr.mxu0 0.0
        %2845 = vmatpush2.msra.mxu0 0.0
        %2846 = vmatprep.subr.mxu0 0.0
        %2847 = vmatpush2.msra.mxu0 0.0
        %2848 = vmatprep.subr.mxu0 0.0
        %2849 = vmatpush2.msra.mxu0 0.0
        %2850 = vmatprep.subr.mxu0 0.0
        %2851 = vmatpush2.msra.mxu0 0.0
        %2852 = vmatprep.mubr.f32.mxu0 0.0
        %2853 = vmatmul.mubr.f32.gmra.mxu0 %v2735
        %v2854 = vpop.f32.mrf.mxu0
        %v2855 = vadd.f32 0.0, %v2854
        %v2856 = vpop.f32.mrf.mxu0
        %2857 = vmatprep.mubr.f32.mxu0 0.0
        %2858 = vmatmul.mubr.f32.gmra.mxu0 %v2736
        %v2859 = vpop.f32.mrf.mxu0
        %v2860 = vadd.f32 0.0, %v2859
        %v2861 = vpop.f32.mrf.mxu0
        %2862 = vmatprep.mubr.f32.mxu0 0.0
        %2863 = vmatmul.mubr.f32.gmra.mxu0 %v2737
        %v2864 = vpop.f32.mrf.mxu0
        %v2865 = vadd.f32 0.0, %v2864
        %v2866 = vpop.f32.mrf.mxu0
        %2867 = vmatprep.mubr.f32.mxu0 0.0
        %2868 = vmatmul.mubr.f32.gmra.mxu0 %v2738
        %v2869 = vpop.f32.mrf.mxu0
        %v2870 = vadd.f32 0.0, %v2869
        %v2871 = vpop.f32.mrf.mxu0
        %2872 = vmatprep.mubr.f32.mxu0 0.0
        %2873 = vmatmul.mubr.f32.gmra.mxu0 %v2739
        %v2874 = vpop.f32.mrf.mxu0
        %v2875 = vadd.f32 0.0, %v2874
        %v2876 = vpop.f32.mrf.mxu0
        %2877 = vmatprep.mubr.f32.mxu0 0.0
        %2878 = vmatmul.mubr.f32.gmra.mxu0 %v2740
        %v2879 = vpop.f32.mrf.mxu0
        %v2880 = vadd.f32 0.0, %v2879
        %v2881 = vpop.f32.mrf.mxu0
        %2882 = vmatprep.mubr.f32.mxu0 0.0
        %2883 = vmatmul.mubr.f32.gmra.mxu0 %v2741
        %v2884 = vpop.f32.mrf.mxu0
        %v2885 = vadd.f32 0.0, %v2884
        %v2886 = vpop.f32.mrf.mxu0
        %2887 = vmatprep.mubr.f32.mxu0 0.0
        %2888 = vmatmul.mubr.f32.gmra.mxu0 %v2742
        %v2889 = vpop.f32.mrf.mxu0
        %v2890 = vadd.f32 0.0, %v2889
        %v2891 = vpop.f32.mrf.mxu0
        %2892 = vmatprep.mubr.f32.mxu0 0.0
        %2893 = vmatmul.mubr.f32.gmra.mxu0 %v2743
        %v2894 = vpop.f32.mrf.mxu0
        %v2895 = vadd.f32 0.0, %v2894
        %v2896 = vpop.f32.mrf.mxu0
        %2897 = vmatprep.mubr.f32.mxu0 0.0
        %2898 = vmatmul.mubr.f32.gmra.mxu0 %v2744
        %v2899 = vpop.f32.mrf.mxu0
        %v2900 = vadd.f32 0.0, %v2899
        %v2901 = vpop.f32.mrf.mxu0
        %2902 = vmatprep.mubr.f32.mxu0 0.0
        %2903 = vmatmul.mubr.f32.gmra.mxu0 %v2745
        %v2904 = vpop.f32.mrf.mxu0
        %v2905 = vadd.f32 0.0, %v2904
        %v2906 = vpop.f32.mrf.mxu0
        %2907 = vmatprep.mubr.f32.mxu0 0.0
        %2908 = vmatmul.mubr.f32.gmra.mxu0 %v2746
        %v2909 = vpop.f32.mrf.mxu0
        %v2910 = vadd.f32 0.0, %v2909
        %v2911 = vpop.f32.mrf.mxu0
        %2912 = vmatprep.mubr.f32.mxu0 0.0
        %2913 = vmatmul.mubr.f32.gmra.mxu0 %v2747
        %v2914 = vpop.f32.mrf.mxu0
        %v2915 = vadd.f32 0.0, %v2914
        %v2916 = vpop.f32.mrf.mxu0
        %2917 = vmatprep.mubr.f32.mxu0 0.0
        %2918 = vmatmul.mubr.f32.gmra.mxu0 %v2748
        %v2919 = vpop.f32.mrf.mxu0
        %v2920 = vadd.f32 0.0, %v2919
        %v2921 = vpop.f32.mrf.mxu0
        %2922 = vmatprep.mubr.f32.mxu0 0.0
        %2923 = vmatmul.mubr.f32.gmra.mxu0 %v2749
        %v2924 = vpop.f32.mrf.mxu0
        %v2925 = vadd.f32 0.0, %v2924
        %v2926 = vpop.f32.mrf.mxu0
        %2927 = vmatprep.mubr.f32.mxu0 0.0
        %2928 = vmatmul.mubr.f32.gmra.mxu0 %v2750
        %v2929 = vpop.f32.mrf.mxu0
        %v2930 = vadd.f32 0.0, %v2929
        %v2931 = vpop.f32.mrf.mxu0
        %2932 = vmatprep.mubr.f32.mxu0 0.0
        %2933 = vmatmul.mubr.f32.gmra.mxu0 %v2751
        %v2934 = vpop.f32.mrf.mxu0
        %v2935 = vadd.f32 0.0, %v2934
        %v2936 = vpop.f32.mrf.mxu0
        %2937 = vmatprep.mubr.f32.mxu0 0.0
        %2938 = vmatmul.mubr.f32.gmra.mxu0 %v2752
        %v2939 = vpop.f32.mrf.mxu0
        %v2940 = vadd.f32 0.0, %v2939
        %v2941 = vpop.f32.mrf.mxu0
        %2942 = vmatprep.mubr.f32.mxu0 0.0
        %2943 = vmatmul.mubr.f32.gmra.mxu0 %v2753
        %v2944 = vpop.f32.mrf.mxu0
        %v2945 = vadd.f32 0.0, %v2944
        %v2946 = vpop.f32.mrf.mxu0
        %2947 = vmatprep.mubr.f32.mxu0 0.0
        %2948 = vmatmul.mubr.f32.gmra.mxu0 %v2754
        %v2949 = vpop.f32.mrf.mxu0
        %v2950 = vadd.f32 0.0, %v2949
        %v2951 = vpop.f32.mrf.mxu0
        %2952 = vmatprep.mubr.f32.mxu0 0.0
        %2953 = vmatmul.mubr.f32.gmra.mxu0 %v2755
        %v2954 = vpop.f32.mrf.mxu0
        %v2955 = vadd.f32 0.0, %v2954
        %v2956 = vpop.f32.mrf.mxu0
        %2957 = vmatprep.mubr.f32.mxu0 0.0
        %2958 = vmatmul.mubr.f32.gmra.mxu0 %v2756
        %v2959 = vpop.f32.mrf.mxu0
        %v2960 = vadd.f32 0.0, %v2959
        %v2961 = vpop.f32.mrf.mxu0
        %2962 = vmatprep.mubr.f32.mxu0 0.0
        %2963 = vmatmul.mubr.f32.gmra.mxu0 %v2757
        %v2964 = vpop.f32.mrf.mxu0
        %v2965 = vadd.f32 0.0, %v2964
        %v2966 = vpop.f32.mrf.mxu0
        %2967 = vmatprep.mubr.f32.mxu0 0.0
        %2968 = vmatmul.mubr.f32.gmra.mxu0 %v2758
        %v2969 = vpop.f32.mrf.mxu0
        %v2970 = vadd.f32 0.0, %v2969
        %v2971 = vpop.f32.mrf.mxu0
        %2972 = vmatprep.mubr.f32.mxu0 0.0
        %2973 = vmatmul.mubr.f32.gmra.mxu0 %v2759
        %v2974 = vpop.f32.mrf.mxu0
        %v2975 = vadd.f32 0.0, %v2974
        %v2976 = vpop.f32.mrf.mxu0
        %2977 = vmatprep.mubr.f32.mxu0 0.0
        %2978 = vmatmul.mubr.f32.gmra.mxu0 %v2760
        %v2979 = vpop.f32.mrf.mxu0
        %v2980 = vadd.f32 0.0, %v2979
        %v2981 = vpop.f32.mrf.mxu0
        %2982 = vmatprep.mubr.f32.mxu0 0.0
        %2983 = vmatmul.mubr.f32.gmra.mxu0 %v2761
        %v2984 = vpop.f32.mrf.mxu0
        %v2985 = vadd.f32 0.0, %v2984
        %v2986 = vpop.f32.mrf.mxu0
        %2987 = vmatprep.mubr.f32.mxu0 0.0
        %2988 = vmatmul.mubr.f32.gmra.mxu0 %v2762
        %v2989 = vpop.f32.mrf.mxu0
        %v2990 = vadd.f32 0.0, %v2989
        %v2991 = vpop.f32.mrf.mxu0
        %2992 = vmatprep.mubr.f32.mxu0 0.0
        %2993 = vmatmul.mubr.f32.gmra.mxu0 %v2763
        %v2994 = vpop.f32.mrf.mxu0
        %v2995 = vadd.f32 0.0, %v2994
        %v2996 = vpop.f32.mrf.mxu0
        %2997 = vmatprep.mubr.f32.mxu0 0.0
        %2998 = vmatmul.mubr.f32.gmra.mxu0 %v2764
        %v2999 = vpop.f32.mrf.mxu0
        %v3000 = vadd.f32 0.0, %v2999
        %v3001 = vpop.f32.mrf.mxu0
        %3002 = vmatprep.mubr.f32.mxu0 0.0
        %3003 = vmatmul.mubr.f32.gmra.mxu0 %v2765
        %v3004 = vpop.f32.mrf.mxu0
        %v3005 = vadd.f32 0.0, %v3004
        %v3006 = vpop.f32.mrf.mxu0
        %3007 = vmatprep.mubr.f32.mxu0 0.0
        %3008 = vmatmul.mubr.f32.gmra.mxu0 %v2766
        %v3009 = vpop.f32.mrf.mxu0
        %v3010 = vadd.f32 0.0, %v3009
        %v3011 = vpop.f32.mrf.mxu0
        %3012 = vmatprep.mubr.f32.mxu0 0.0
        %3013 = vmatmul.mubr.f32.gmra.mxu0 %v2767
        %v3014 = vpop.f32.mrf.mxu0
        %v3015 = vadd.f32 0.0, %v3014
        %v3016 = vpop.f32.mrf.mxu0
        %3017 = vmatprep.mubr.f32.mxu0 0.0
        %3018 = vmatmul.mubr.f32.gmra.mxu0 %v2768
        %v3019 = vpop.f32.mrf.mxu0
        %v3020 = vadd.f32 0.0, %v3019
        %v3021 = vpop.f32.mrf.mxu0
        %3022 = vmatprep.mubr.f32.mxu0 0.0
        %3023 = vmatmul.mubr.f32.gmra.mxu0 %v2769
        %v3024 = vpop.f32.mrf.mxu0
        %v3025 = vadd.f32 0.0, %v3024
        %v3026 = vpop.f32.mrf.mxu0
        %3027 = vmatprep.mubr.f32.mxu0 0.0
        %3028 = vmatmul.mubr.f32.gmra.mxu0 %v2770
        %v3029 = vpop.f32.mrf.mxu0
        %v3030 = vadd.f32 0.0, %v3029
        %v3031 = vpop.f32.mrf.mxu0
        %3032 = vdwg.mxu0
        %v3033 = vadd.f32 %v2699, %v2855
        %v3034 = vadd.f32 %v2700, %v2860
        %v3035 = vadd.f32 %v2701, %v2865
        %v3036 = vadd.f32 %v2702, %v2870
        %v3037 = vadd.f32 %v2703, %v2875
        %v3038 = vadd.f32 %v2704, %v2880
        %v3039 = vadd.f32 %v2705, %v2885
        %v3040 = vadd.f32 %v2706, %v2890
        %v3041 = vadd.f32 %v2707, %v2895
        %v3042 = vadd.f32 %v2708, %v2900
        %v3043 = vadd.f32 %v2709, %v2905
        %v3044 = vadd.f32 %v2710, %v2910
        %v3045 = vadd.f32 %v2711, %v2915
        %v3046 = vadd.f32 %v2712, %v2920
        %v3047 = vadd.f32 %v2713, %v2925
        %v3048 = vadd.f32 %v2714, %v2930
        %v3049 = vadd.f32 %v2715, %v2935
        %v3050 = vadd.f32 %v2716, %v2940
        %v3051 = vadd.f32 %v2717, %v2945
        %v3052 = vadd.f32 %v2718, %v2950
        %v3053 = vadd.f32 %v2719, %v2955
        %v3054 = vadd.f32 %v2720, %v2960
        %v3055 = vadd.f32 %v2721, %v2965
        %v3056 = vadd.f32 %v2722, %v2970
        %v3057 = vadd.f32 %v2723, %v2975
        %v3058 = vadd.f32 %v2724, %v2980
        %v3059 = vadd.f32 %v2725, %v2985
        %v3060 = vadd.f32 %v2726, %v2990
        %v3061 = vadd.f32 %v2727, %v2995
        %v3062 = vadd.f32 %v2728, %v3000
        %v3063 = vadd.f32 %v2729, %v3005
        %v3064 = vadd.f32 %v2730, %v3010
        %v3065 = vadd.f32 %v2731, %v3015
        %v3066 = vadd.f32 %v2732, %v3020
        %v3067 = vadd.f32 %v2733, %v3025
        %v3068 = vadd.f32 %v2734, %v3030
        %v3069 = vld [vmem:[#allocation2 + $0x26] sm:$0xff]
        %v3070 = vld [vmem:[#allocation2 + $0x2e] sm:$0xff]
        %v3071 = vld [vmem:[#allocation2 + $0x36] sm:$0xff]
        %v3072 = vld [vmem:[#allocation2 + $0x3e] sm:$0xff]
        %v3073 = vld [vmem:[#allocation2 + $0x46] sm:$0xff]
        %v3074 = vld [vmem:[#allocation2 + $0x4e] sm:$0xff]
        %v3075 = vld [vmem:[#allocation2 + $0x56] sm:$0xff]
        %v3076 = vld [vmem:[#allocation2 + $0x5e] sm:$0xff]
        %v3077 = vld [vmem:[#allocation2 + $0x66] sm:$0xff]
        %v3078 = vld [vmem:[#allocation2 + $0x6e] sm:$0xff]
        %v3079 = vld [vmem:[#allocation2 + $0x76] sm:$0xff]
        %v3080 = vld [vmem:[#allocation2 + $0x7e] sm:$0xff]
        %v3081 = vld [vmem:[#allocation2 + $0x86] sm:$0xff]
        %v3082 = vld [vmem:[#allocation2 + $0x8e] sm:$0xff]
        %v3083 = vld [vmem:[#allocation2 + $0x96] sm:$0xff]
        %v3084 = vld [vmem:[#allocation2 + $0x9e] sm:$0xff]
        %v3085 = vld [vmem:[#allocation2 + $0xa6] sm:$0xff]
        %v3086 = vld [vmem:[#allocation2 + $0xae] sm:$0xff]
        %v3087 = vld [vmem:[#allocation2 + $0xb6] sm:$0xff]
        %v3088 = vld [vmem:[#allocation2 + $0xbe] sm:$0xff]
        %v3089 = vld [vmem:[#allocation2 + $0xc6] sm:$0xff]
        %v3090 = vld [vmem:[#allocation2 + $0xce] sm:$0xff]
        %v3091 = vld [vmem:[#allocation2 + $0xd6] sm:$0xff]
        %v3092 = vld [vmem:[#allocation2 + $0xde] sm:$0xff]
        %v3093 = vld [vmem:[#allocation2 + $0xe6] sm:$0xff]
        %v3094 = vld [vmem:[#allocation2 + $0xee] sm:$0xff]
        %v3095 = vld [vmem:[#allocation2 + $0xf6] sm:$0xff]
        %v3096 = vld [vmem:[#allocation2 + $0xfe] sm:$0xff]
        %v3097 = vld [vmem:[#allocation2 + $0x106] sm:$0xff]
        %v3098 = vld [vmem:[#allocation2 + $0x10e] sm:$0xff]
        %v3099 = vld [vmem:[#allocation2 + $0x116] sm:$0xff]
        %v3100 = vld [vmem:[#allocation2 + $0x11e] sm:$0xff]
        %v3101 = vld [vmem:[#allocation2 + $0x126] sm:$0xff]
        %v3102 = vld [vmem:[#allocation2 + $0x12e] sm:$0xff]
        %v3103 = vld [vmem:[#allocation2 + $0x136] sm:$0xff]
        %v3104 = vld [vmem:[#allocation2 + $0x13e] sm:$0xff]
        %s3105 = scalar_lea.vmem %s2, 1024
        %v3106 = vld [vmem:[%s3105] sm:$0xff]
        %v3107 = vld [vmem:[%s3105 + $0x8] sm:$0xff]
        %v3108 = vld [vmem:[%s3105 + $0x10] sm:$0xff]
        %v3109 = vld [vmem:[%s3105 + $0x18] sm:$0xff]
        %v3110 = vld [vmem:[%s3105 + $0x20] sm:$0xff]
        %v3111 = vld [vmem:[%s3105 + $0x28] sm:$0xff]
        %v3112 = vld [vmem:[%s3105 + $0x30] sm:$0xff]
        %v3113 = vld [vmem:[%s3105 + $0x38] sm:$0xff]
        %v3114 = vld [vmem:[%s3105 + $0x40] sm:$0xff]
        %v3115 = vld [vmem:[%s3105 + $0x48] sm:$0xff]
        %v3116 = vld [vmem:[%s3105 + $0x50] sm:$0xff]
        %v3117 = vld [vmem:[%s3105 + $0x58] sm:$0xff]
        %v3118 = vld [vmem:[%s3105 + $0x60] sm:$0xff]
        %v3119 = vld [vmem:[%s3105 + $0x68] sm:$0xff]
        %v3120 = vld [vmem:[%s3105 + $0x70] sm:$0xff]
        %v3121 = vld [vmem:[%s3105 + $0x78] sm:$0xff]
        %3122 = vmatprep.subr.mxu0 0.0
        %3123 = vmatpush1.msra.mxu0 %v3121
        %3124 = vmatprep.subr.mxu0 0.0
        %3125 = vmatpush1.msra.mxu0 %v3120
        %3126 = vmatprep.subr.mxu0 0.0
        %3127 = vmatpush1.msra.mxu0 %v3119
        %3128 = vmatprep.subr.mxu0 0.0
        %3129 = vmatpush1.msra.mxu0 %v3118
        %3130 = vmatprep.subr.mxu0 0.0
        %3131 = vmatpush1.msra.mxu0 %v3117
        %3132 = vmatprep.subr.mxu0 0.0
        %3133 = vmatpush1.msra.mxu0 %v3116
        %3134 = vmatprep.subr.mxu0 0.0
        %3135 = vmatpush1.msra.mxu0 %v3115
        %3136 = vmatprep.subr.mxu0 0.0
        %3137 = vmatpush1.msra.mxu0 %v3114
        %3138 = vmatprep.subr.mxu0 0.0
        %3139 = vmatpush1.msra.mxu0 %v3113
        %3140 = vmatprep.subr.mxu0 0.0
        %3141 = vmatpush1.msra.mxu0 %v3112
        %3142 = vmatprep.subr.mxu0 0.0
        %3143 = vmatpush1.msra.mxu0 %v3111
        %3144 = vmatprep.subr.mxu0 0.0
        %3145 = vmatpush1.msra.mxu0 %v3110
        %3146 = vmatprep.subr.mxu0 0.0
        %3147 = vmatpush1.msra.mxu0 %v3109
        %3148 = vmatprep.subr.mxu0 0.0
        %3149 = vmatpush1.msra.mxu0 %v3108
        %3150 = vmatprep.subr.mxu0 0.0
        %3151 = vmatpush1.msra.mxu0 %v3107
        %3152 = vmatprep.subr.mxu0 0.0
        %3153 = vmatpush1.msra.mxu0 %v3106
        %3154 = vmatprep.subr.mxu0 0.0
        %3155 = vmatpush2.msra.mxu0 0.0
        %3156 = vmatprep.subr.mxu0 0.0
        %3157 = vmatpush2.msra.mxu0 0.0
        %3158 = vmatprep.subr.mxu0 0.0
        %3159 = vmatpush2.msra.mxu0 0.0
        %3160 = vmatprep.subr.mxu0 0.0
        %3161 = vmatpush2.msra.mxu0 0.0
        %3162 = vmatprep.subr.mxu0 0.0
        %3163 = vmatpush2.msra.mxu0 0.0
        %3164 = vmatprep.subr.mxu0 0.0
        %3165 = vmatpush2.msra.mxu0 0.0
        %3166 = vmatprep.subr.mxu0 0.0
        %3167 = vmatpush2.msra.mxu0 0.0
        %3168 = vmatprep.subr.mxu0 0.0
        %3169 = vmatpush2.msra.mxu0 0.0
        %3170 = vmatprep.subr.mxu0 0.0
        %3171 = vmatpush2.msra.mxu0 0.0
        %3172 = vmatprep.subr.mxu0 0.0
        %3173 = vmatpush2.msra.mxu0 0.0
        %3174 = vmatprep.subr.mxu0 0.0
        %3175 = vmatpush2.msra.mxu0 0.0
        %3176 = vmatprep.subr.mxu0 0.0
        %3177 = vmatpush2.msra.mxu0 0.0
        %3178 = vmatprep.subr.mxu0 0.0
        %3179 = vmatpush2.msra.mxu0 0.0
        %3180 = vmatprep.subr.mxu0 0.0
        %3181 = vmatpush2.msra.mxu0 0.0
        %3182 = vmatprep.subr.mxu0 0.0
        %3183 = vmatpush2.msra.mxu0 0.0
        %3184 = vmatprep.subr.mxu0 0.0
        %3185 = vmatpush2.msra.mxu0 0.0
        %3186 = vmatprep.mubr.f32.mxu0 0.0
        %3187 = vmatmul.mubr.f32.gmra.mxu0 %v3069
        %v3188 = vpop.f32.mrf.mxu0
        %v3189 = vadd.f32 0.0, %v3188
        %v3190 = vpop.f32.mrf.mxu0
        %3191 = vmatprep.mubr.f32.mxu0 0.0
        %3192 = vmatmul.mubr.f32.gmra.mxu0 %v3070
        %v3193 = vpop.f32.mrf.mxu0
        %v3194 = vadd.f32 0.0, %v3193
        %v3195 = vpop.f32.mrf.mxu0
        %3196 = vmatprep.mubr.f32.mxu0 0.0
        %3197 = vmatmul.mubr.f32.gmra.mxu0 %v3071
        %v3198 = vpop.f32.mrf.mxu0
        %v3199 = vadd.f32 0.0, %v3198
        %v3200 = vpop.f32.mrf.mxu0
        %3201 = vmatprep.mubr.f32.mxu0 0.0
        %3202 = vmatmul.mubr.f32.gmra.mxu0 %v3072
        %v3203 = vpop.f32.mrf.mxu0
        %v3204 = vadd.f32 0.0, %v3203
        %v3205 = vpop.f32.mrf.mxu0
        %3206 = vmatprep.mubr.f32.mxu0 0.0
        %3207 = vmatmul.mubr.f32.gmra.mxu0 %v3073
        %v3208 = vpop.f32.mrf.mxu0
        %v3209 = vadd.f32 0.0, %v3208
        %v3210 = vpop.f32.mrf.mxu0
        %3211 = vmatprep.mubr.f32.mxu0 0.0
        %3212 = vmatmul.mubr.f32.gmra.mxu0 %v3074
        %v3213 = vpop.f32.mrf.mxu0
        %v3214 = vadd.f32 0.0, %v3213
        %v3215 = vpop.f32.mrf.mxu0
        %3216 = vmatprep.mubr.f32.mxu0 0.0
        %3217 = vmatmul.mubr.f32.gmra.mxu0 %v3075
        %v3218 = vpop.f32.mrf.mxu0
        %v3219 = vadd.f32 0.0, %v3218
        %v3220 = vpop.f32.mrf.mxu0
        %3221 = vmatprep.mubr.f32.mxu0 0.0
        %3222 = vmatmul.mubr.f32.gmra.mxu0 %v3076
        %v3223 = vpop.f32.mrf.mxu0
        %v3224 = vadd.f32 0.0, %v3223
        %v3225 = vpop.f32.mrf.mxu0
        %3226 = vmatprep.mubr.f32.mxu0 0.0
        %3227 = vmatmul.mubr.f32.gmra.mxu0 %v3077
        %v3228 = vpop.f32.mrf.mxu0
        %v3229 = vadd.f32 0.0, %v3228
        %v3230 = vpop.f32.mrf.mxu0
        %3231 = vmatprep.mubr.f32.mxu0 0.0
        %3232 = vmatmul.mubr.f32.gmra.mxu0 %v3078
        %v3233 = vpop.f32.mrf.mxu0
        %v3234 = vadd.f32 0.0, %v3233
        %v3235 = vpop.f32.mrf.mxu0
        %3236 = vmatprep.mubr.f32.mxu0 0.0
        %3237 = vmatmul.mubr.f32.gmra.mxu0 %v3079
        %v3238 = vpop.f32.mrf.mxu0
        %v3239 = vadd.f32 0.0, %v3238
        %v3240 = vpop.f32.mrf.mxu0
        %3241 = vmatprep.mubr.f32.mxu0 0.0
        %3242 = vmatmul.mubr.f32.gmra.mxu0 %v3080
        %v3243 = vpop.f32.mrf.mxu0
        %v3244 = vadd.f32 0.0, %v3243
        %v3245 = vpop.f32.mrf.mxu0
        %3246 = vmatprep.mubr.f32.mxu0 0.0
        %3247 = vmatmul.mubr.f32.gmra.mxu0 %v3081
        %v3248 = vpop.f32.mrf.mxu0
        %v3249 = vadd.f32 0.0, %v3248
        %v3250 = vpop.f32.mrf.mxu0
        %3251 = vmatprep.mubr.f32.mxu0 0.0
        %3252 = vmatmul.mubr.f32.gmra.mxu0 %v3082
        %v3253 = vpop.f32.mrf.mxu0
        %v3254 = vadd.f32 0.0, %v3253
        %v3255 = vpop.f32.mrf.mxu0
        %3256 = vmatprep.mubr.f32.mxu0 0.0
        %3257 = vmatmul.mubr.f32.gmra.mxu0 %v3083
        %v3258 = vpop.f32.mrf.mxu0
        %v3259 = vadd.f32 0.0, %v3258
        %v3260 = vpop.f32.mrf.mxu0
        %3261 = vmatprep.mubr.f32.mxu0 0.0
        %3262 = vmatmul.mubr.f32.gmra.mxu0 %v3084
        %v3263 = vpop.f32.mrf.mxu0
        %v3264 = vadd.f32 0.0, %v3263
        %v3265 = vpop.f32.mrf.mxu0
        %3266 = vmatprep.mubr.f32.mxu0 0.0
        %3267 = vmatmul.mubr.f32.gmra.mxu0 %v3085
        %v3268 = vpop.f32.mrf.mxu0
        %v3269 = vadd.f32 0.0, %v3268
        %v3270 = vpop.f32.mrf.mxu0
        %3271 = vmatprep.mubr.f32.mxu0 0.0
        %3272 = vmatmul.mubr.f32.gmra.mxu0 %v3086
        %v3273 = vpop.f32.mrf.mxu0
        %v3274 = vadd.f32 0.0, %v3273
        %v3275 = vpop.f32.mrf.mxu0
        %3276 = vmatprep.mubr.f32.mxu0 0.0
        %3277 = vmatmul.mubr.f32.gmra.mxu0 %v3087
        %v3278 = vpop.f32.mrf.mxu0
        %v3279 = vadd.f32 0.0, %v3278
        %v3280 = vpop.f32.mrf.mxu0
        %3281 = vmatprep.mubr.f32.mxu0 0.0
        %3282 = vmatmul.mubr.f32.gmra.mxu0 %v3088
        %v3283 = vpop.f32.mrf.mxu0
        %v3284 = vadd.f32 0.0, %v3283
        %v3285 = vpop.f32.mrf.mxu0
        %3286 = vmatprep.mubr.f32.mxu0 0.0
        %3287 = vmatmul.mubr.f32.gmra.mxu0 %v3089
        %v3288 = vpop.f32.mrf.mxu0
        %v3289 = vadd.f32 0.0, %v3288
        %v3290 = vpop.f32.mrf.mxu0
        %3291 = vmatprep.mubr.f32.mxu0 0.0
        %3292 = vmatmul.mubr.f32.gmra.mxu0 %v3090
        %v3293 = vpop.f32.mrf.mxu0
        %v3294 = vadd.f32 0.0, %v3293
        %v3295 = vpop.f32.mrf.mxu0
        %3296 = vmatprep.mubr.f32.mxu0 0.0
        %3297 = vmatmul.mubr.f32.gmra.mxu0 %v3091
        %v3298 = vpop.f32.mrf.mxu0
        %v3299 = vadd.f32 0.0, %v3298
        %v3300 = vpop.f32.mrf.mxu0
        %3301 = vmatprep.mubr.f32.mxu0 0.0
        %3302 = vmatmul.mubr.f32.gmra.mxu0 %v3092
        %v3303 = vpop.f32.mrf.mxu0
        %v3304 = vadd.f32 0.0, %v3303
        %v3305 = vpop.f32.mrf.mxu0
        %3306 = vmatprep.mubr.f32.mxu0 0.0
        %3307 = vmatmul.mubr.f32.gmra.mxu0 %v3093
        %v3308 = vpop.f32.mrf.mxu0
        %v3309 = vadd.f32 0.0, %v3308
        %v3310 = vpop.f32.mrf.mxu0
        %3311 = vmatprep.mubr.f32.mxu0 0.0
        %3312 = vmatmul.mubr.f32.gmra.mxu0 %v3094
        %v3313 = vpop.f32.mrf.mxu0
        %v3314 = vadd.f32 0.0, %v3313
        %v3315 = vpop.f32.mrf.mxu0
        %3316 = vmatprep.mubr.f32.mxu0 0.0
        %3317 = vmatmul.mubr.f32.gmra.mxu0 %v3095
        %v3318 = vpop.f32.mrf.mxu0
        %v3319 = vadd.f32 0.0, %v3318
        %v3320 = vpop.f32.mrf.mxu0
        %3321 = vmatprep.mubr.f32.mxu0 0.0
        %3322 = vmatmul.mubr.f32.gmra.mxu0 %v3096
        %v3323 = vpop.f32.mrf.mxu0
        %v3324 = vadd.f32 0.0, %v3323
        %v3325 = vpop.f32.mrf.mxu0
        %3326 = vmatprep.mubr.f32.mxu0 0.0
        %3327 = vmatmul.mubr.f32.gmra.mxu0 %v3097
        %v3328 = vpop.f32.mrf.mxu0
        %v3329 = vadd.f32 0.0, %v3328
        %v3330 = vpop.f32.mrf.mxu0
        %3331 = vmatprep.mubr.f32.mxu0 0.0
        %3332 = vmatmul.mubr.f32.gmra.mxu0 %v3098
        %v3333 = vpop.f32.mrf.mxu0
        %v3334 = vadd.f32 0.0, %v3333
        %v3335 = vpop.f32.mrf.mxu0
        %3336 = vmatprep.mubr.f32.mxu0 0.0
        %3337 = vmatmul.mubr.f32.gmra.mxu0 %v3099
        %v3338 = vpop.f32.mrf.mxu0
        %v3339 = vadd.f32 0.0, %v3338
        %v3340 = vpop.f32.mrf.mxu0
        %3341 = vmatprep.mubr.f32.mxu0 0.0
        %3342 = vmatmul.mubr.f32.gmra.mxu0 %v3100
        %v3343 = vpop.f32.mrf.mxu0
        %v3344 = vadd.f32 0.0, %v3343
        %v3345 = vpop.f32.mrf.mxu0
        %3346 = vmatprep.mubr.f32.mxu0 0.0
        %3347 = vmatmul.mubr.f32.gmra.mxu0 %v3101
        %v3348 = vpop.f32.mrf.mxu0
        %v3349 = vadd.f32 0.0, %v3348
        %v3350 = vpop.f32.mrf.mxu0
        %3351 = vmatprep.mubr.f32.mxu0 0.0
        %3352 = vmatmul.mubr.f32.gmra.mxu0 %v3102
        %v3353 = vpop.f32.mrf.mxu0
        %v3354 = vadd.f32 0.0, %v3353
        %v3355 = vpop.f32.mrf.mxu0
        %3356 = vmatprep.mubr.f32.mxu0 0.0
        %3357 = vmatmul.mubr.f32.gmra.mxu0 %v3103
        %v3358 = vpop.f32.mrf.mxu0
        %v3359 = vadd.f32 0.0, %v3358
        %v3360 = vpop.f32.mrf.mxu0
        %3361 = vmatprep.mubr.f32.mxu0 0.0
        %3362 = vmatmul.mubr.f32.gmra.mxu0 %v3104
        %v3363 = vpop.f32.mrf.mxu0
        %v3364 = vadd.f32 0.0, %v3363
        %v3365 = vpop.f32.mrf.mxu0
        %3366 = vdwg.mxu0
        %v3367 = vadd.f32 %v3033, %v3189
        %v3368 = vadd.f32 %v3034, %v3194
        %v3369 = vadd.f32 %v3035, %v3199
        %v3370 = vadd.f32 %v3036, %v3204
        %v3371 = vadd.f32 %v3037, %v3209
        %v3372 = vadd.f32 %v3038, %v3214
        %v3373 = vadd.f32 %v3039, %v3219
        %v3374 = vadd.f32 %v3040, %v3224
        %v3375 = vadd.f32 %v3041, %v3229
        %v3376 = vadd.f32 %v3042, %v3234
        %v3377 = vadd.f32 %v3043, %v3239
        %v3378 = vadd.f32 %v3044, %v3244
        %v3379 = vadd.f32 %v3045, %v3249
        %v3380 = vadd.f32 %v3046, %v3254
        %v3381 = vadd.f32 %v3047, %v3259
        %v3382 = vadd.f32 %v3048, %v3264
        %v3383 = vadd.f32 %v3049, %v3269
        %v3384 = vadd.f32 %v3050, %v3274
        %v3385 = vadd.f32 %v3051, %v3279
        %v3386 = vadd.f32 %v3052, %v3284
        %v3387 = vadd.f32 %v3053, %v3289
        %v3388 = vadd.f32 %v3054, %v3294
        %v3389 = vadd.f32 %v3055, %v3299
        %v3390 = vadd.f32 %v3056, %v3304
        %v3391 = vadd.f32 %v3057, %v3309
        %v3392 = vadd.f32 %v3058, %v3314
        %v3393 = vadd.f32 %v3059, %v3319
        %v3394 = vadd.f32 %v3060, %v3324
        %v3395 = vadd.f32 %v3061, %v3329
        %v3396 = vadd.f32 %v3062, %v3334
        %v3397 = vadd.f32 %v3063, %v3339
        %v3398 = vadd.f32 %v3064, %v3344
        %v3399 = vadd.f32 %v3065, %v3349
        %v3400 = vadd.f32 %v3066, %v3354
        %v3401 = vadd.f32 %v3067, %v3359
        %v3402 = vadd.f32 %v3068, %v3364
        %v3403 = vlaneseq
        %v3404 = vshrl.u32 %v3403, 7
        %v3405 = vsub.s32 3, %v3404
        %v3406 = vrot.slane %v228, %v3405
        %v3407 = vadd.f32 %v3367, %v3406
        %v3408 = vadd.f32 %v3368, %v3406
        %v3409 = vadd.f32 %v3369, %v3406
        %v3410 = vadd.f32 %v3370, %v3406
        %v3411 = vadd.f32 %v3371, %v3406
        %v3412 = vadd.f32 %v3372, %v3406
        %v3413 = vadd.f32 %v3373, %v3406
        %v3414 = vadd.f32 %v3374, %v3406
        %v3415 = vadd.f32 %v3375, %v3406
        %v3416 = vadd.f32 %v3376, %v3406
        %v3417 = vadd.f32 %v3377, %v3406
        %v3418 = vadd.f32 %v3378, %v3406
        %v3419 = vadd.f32 %v3379, %v3406
        %v3420 = vadd.f32 %v3380, %v3406
        %v3421 = vadd.f32 %v3381, %v3406
        %v3422 = vadd.f32 %v3382, %v3406
        %v3423 = vadd.f32 %v3383, %v3406
        %v3424 = vadd.f32 %v3384, %v3406
        %v3425 = vadd.f32 %v3385, %v3406
        %v3426 = vadd.f32 %v3386, %v3406
        %v3427 = vadd.f32 %v3387, %v3406
        %v3428 = vadd.f32 %v3388, %v3406
        %v3429 = vadd.f32 %v3389, %v3406
        %v3430 = vadd.f32 %v3390, %v3406
        %v3431 = vadd.f32 %v3391, %v3406
        %v3432 = vadd.f32 %v3392, %v3406
        %v3433 = vadd.f32 %v3393, %v3406
        %v3434 = vadd.f32 %v3394, %v3406
        %v3435 = vadd.f32 %v3395, %v3406
        %v3436 = vadd.f32 %v3396, %v3406
        %v3437 = vadd.f32 %v3397, %v3406
        %v3438 = vadd.f32 %v3398, %v3406
        %v3439 = vadd.f32 %v3399, %v3406
        %v3440 = vadd.f32 %v3400, %v3406
        %v3441 = vadd.f32 %v3401, %v3406
        %v3442 = vadd.f32 %v3402, %v3406
        %v3443 = vmax.f32 %v3407, 0.0
        %v3444 = vmax.f32 %v3408, 0.0
        %v3445 = vmax.f32 %v3409, 0.0
        %v3446 = vmax.f32 %v3410, 0.0
        %v3447 = vmax.f32 %v3411, 0.0
        %v3448 = vmax.f32 %v3412, 0.0
        %v3449 = vmax.f32 %v3413, 0.0
        %v3450 = vmax.f32 %v3414, 0.0
        %v3451 = vmax.f32 %v3415, 0.0
        %v3452 = vmax.f32 %v3416, 0.0
        %v3453 = vmax.f32 %v3417, 0.0
        %v3454 = vmax.f32 %v3418, 0.0
        %v3455 = vmax.f32 %v3419, 0.0
        %v3456 = vmax.f32 %v3420, 0.0
        %v3457 = vmax.f32 %v3421, 0.0
        %v3458 = vmax.f32 %v3422, 0.0
        %v3459 = vmax.f32 %v3423, 0.0
        %v3460 = vmax.f32 %v3424, 0.0
        %v3461 = vmax.f32 %v3425, 0.0
        %v3462 = vmax.f32 %v3426, 0.0
        %v3463 = vmax.f32 %v3427, 0.0
        %v3464 = vmax.f32 %v3428, 0.0
        %v3465 = vmax.f32 %v3429, 0.0
        %v3466 = vmax.f32 %v3430, 0.0
        %v3467 = vmax.f32 %v3431, 0.0
        %v3468 = vmax.f32 %v3432, 0.0
        %v3469 = vmax.f32 %v3433, 0.0
        %v3470 = vmax.f32 %v3434, 0.0
        %v3471 = vmax.f32 %v3435, 0.0
        %v3472 = vmax.f32 %v3436, 0.0
        %v3473 = vmax.f32 %v3437, 0.0
        %v3474 = vmax.f32 %v3438, 0.0
        %v3475 = vmax.f32 %v3439, 0.0
        %v3476 = vmax.f32 %v3440, 0.0
        %v3477 = vmax.f32 %v3441, 0.0
        %v3478 = vmax.f32 %v3442, 0.0
        %3479 = vst [vmem:[%s190] sm:$0xff] %v3443
        %3480 = vst [vmem:[%s190 + $0x8] sm:$0xff] %v3444
        %s3481 = scalar_lea.vmem %s190, 16 [#allocation3]
        %3482 = vst [vmem:[%s3481 - $0x2] sm:$0xfc] %v3445
        %3483 = vst [vmem:[%s3481 + $0x6] sm:$0xff] %v3446
        %3484 = vst [vmem:[%s3481 + $0xe] sm:$0x3] %v3447
        %s3485 = scalar_lea.vmem %s190, 32 [#allocation3]
        %3486 = vst [vmem:[%s3485 - $0x4] sm:$0xf0] %v3447
        %3487 = vst [vmem:[%s3485 + $0x4] sm:$0xff] %v3448
        %3488 = vst [vmem:[%s3485 + $0xc] sm:$0xf] %v3449
        %s3489 = scalar_lea.vmem %s190, 48 [#allocation3]
        %3490 = vst [vmem:[%s3489 - $0x6] sm:$0xc0] %v3449
        %3491 = vst [vmem:[%s3489 + $0x2] sm:$0xff] %v3450
        %3492 = vst [vmem:[%s3489 + $0xa] sm:$0x3f] %v3451
        %s3493 = scalar_lea.vmem %s190, 64 [#allocation3]
        %3494 = vst [vmem:[%s3493] sm:$0xff] %v3452
        %3495 = vst [vmem:[%s3493 + $0x8] sm:$0xff] %v3453
        %s3496 = scalar_lea.vmem %s190, 80 [#allocation3]
        %3497 = vst [vmem:[%s3496 - $0x2] sm:$0xfc] %v3454
        %3498 = vst [vmem:[%s3496 + $0x6] sm:$0xff] %v3455
        %3499 = vst [vmem:[%s3496 + $0xe] sm:$0x3] %v3456
        %s3500 = scalar_lea.vmem %s190, 96 [#allocation3]
        %3501 = vst [vmem:[%s3500 - $0x4] sm:$0xf0] %v3456
        %3502 = vst [vmem:[%s3500 + $0x4] sm:$0xff] %v3457
        %3503 = vst [vmem:[%s3500 + $0xc] sm:$0xf] %v3458
        %s3504 = scalar_lea.vmem %s190, 112 [#allocation3]
        %3505 = vst [vmem:[%s3504 - $0x6] sm:$0xc0] %v3458
        %3506 = vst [vmem:[%s3504 + $0x2] sm:$0xff] %v3459
        %3507 = vst [vmem:[%s3504 + $0xa] sm:$0x3f] %v3460
        %s3508 = scalar_lea.vmem %s190, 128 [#allocation3]
        %3509 = vst [vmem:[%s3508] sm:$0xff] %v3461
        %3510 = vst [vmem:[%s3508 + $0x8] sm:$0xff] %v3462
        %s3511 = scalar_lea.vmem %s190, 144 [#allocation3]
        %3512 = vst [vmem:[%s3511 - $0x2] sm:$0xfc] %v3463
        %3513 = vst [vmem:[%s3511 + $0x6] sm:$0xff] %v3464
        %3514 = vst [vmem:[%s3511 + $0xe] sm:$0x3] %v3465
        %s3515 = scalar_lea.vmem %s190, 160 [#allocation3]
        %3516 = vst [vmem:[%s3515 - $0x4] sm:$0xf0] %v3465
        %3517 = vst [vmem:[%s3515 + $0x4] sm:$0xff] %v3466
        %3518 = vst [vmem:[%s3515 + $0xc] sm:$0xf] %v3467
        %s3519 = scalar_lea.vmem %s190, 176 [#allocation3]
        %3520 = vst [vmem:[%s3519 - $0x6] sm:$0xc0] %v3467
        %3521 = vst [vmem:[%s3519 + $0x2] sm:$0xff] %v3468
        %3522 = vst [vmem:[%s3519 + $0xa] sm:$0x3f] %v3469
        %s3523 = scalar_lea.vmem %s190, 192 [#allocation3]
        %3524 = vst [vmem:[%s3523] sm:$0xff] %v3470
        %3525 = vst [vmem:[%s3523 + $0x8] sm:$0xff] %v3471
        %s3526 = scalar_lea.vmem %s190, 208 [#allocation3]
        %3527 = vst [vmem:[%s3526 - $0x2] sm:$0xfc] %v3472
        %3528 = vst [vmem:[%s3526 + $0x6] sm:$0xff] %v3473
        %3529 = vst [vmem:[%s3526 + $0xe] sm:$0x3] %v3474
        %s3530 = scalar_lea.vmem %s190, 224 [#allocation3]
        %3531 = vst [vmem:[%s3530 - $0x4] sm:$0xf0] %v3474
        %3532 = vst [vmem:[%s3530 + $0x4] sm:$0xff] %v3475
        %3533 = vst [vmem:[%s3530 + $0xc] sm:$0xf] %v3476
        %s3534 = scalar_lea.vmem %s190, 240 [#allocation3]
        %3535 = vst [vmem:[%s3534 - $0x6] sm:$0xc0] %v3476
        %3536 = vst [vmem:[%s3534 + $0x2] sm:$0xff] %v3477
        %3537 = vst [vmem:[%s3534 + $0xa] sm:$0x3f] %v3478
        %s3538 = sand.u32 %s115, 1
        %s3539 = scalar_lea.sflag [#allocation4], %s3538
        %s3540 = sand.u32 %s115, 1
        %s3541 = smul.addr %s3540, 256
        %s3542 = scalar_lea.vmem [#allocation3], %s3541
        // Predicated region
        $region37: #{ceblock_pallas.1} parent=35 // pred_check
          %p3543 = pneg %p125
        $region38: #{ceblock_pallas.1} parent=35 // pred_check_branch
          %3545 = sbr.rel (%p3543) target = $region40
        $region39: #{ceblock_pallas.1} parent=35 // pred_region
          %s3547 = ssub.s32 4096, 4096
          %3548 = vsyncadd %s3539, %s3547
          %s3549 = smul.addr %s18, 32
          %s3550 = smul.addr %s3549, 128
          %s3551 = scalar_lea.hbm %s4, %s3550
          %s3552 = sshll.u32 %s3542, 4
          %s3553 = int_to_ptr.vmem [resolvable:$true] %s3552
          %3558 = dma.vmem_to_hbm [thread:$0]  %s3553, 4096, %s3551, %s3539, 128, 128, 8
        $region40: #{ceblock_pallas.1} parent=35 // pred_fallthru
          _
      $region36: #{ceblock_pallas.1} parent=5 // pred_fallthru
        _
      %p3559 = scmp.le.s32.totalorder 2, %s13
      // Predicated region
      $region41: #{ceblock_pallas.1} parent=5 // pred_check
        %p3560 = pneg %p3559
      $region42: #{ceblock_pallas.1} parent=5 // pred_check_branch
        %3562 = sbr.rel (%p3560) target = $region44
      $region43: #{ceblock_pallas.1} parent=5 // pred_region
        %s3563 = ssub.s32 %s13, 2
        // Predicated region
        $region45: #{ceblock_pallas.1} parent=43 // pred_check
          %p3564 = pneg %p131
        $region46: #{ceblock_pallas.1} parent=43 // pred_check_branch
          %3566 = sbr.rel (%p3564) target = $region48
        $region47: #{ceblock_pallas.1} parent=43 // pred_region
          %s3567 = sand.u32 %s116, 1
          %s3568 = scalar_lea.sflag [#allocation4], %s3567
          %s3569 = sand.u32 %s116, 1
          %s3570 = smul.addr %s3569, 256
          %s3571 = scalar_lea.vmem [#allocation3], %s3570
          %3572 = dma.done %s3568, 4096
        $region48: #{ceblock_pallas.1} parent=43 // pred_fallthru
          _
      $region44: #{ceblock_pallas.1} parent=5 // pred_fallthru
        _
    $region6: #{ceblock_pallas.1} parent=1 // loop_footer
      %s17 = sadd.s32 1, %s13
    $region7: #{ceblock_pallas.1} parent=1 // loop_footer_branch
      %12 = sbr.rel target = $region3
    $region8: #{ceblock_pallas.1} parent=1 // loop_exit
      _
    %3573 = vsyncpa [#allocation4], 1
    %s3574 = scalar_lea.sflag [#allocation4], 1
    %3575 = vsyncpa %s3574, 1

</llo_original>
